<compile_context>
chip_gen: v6e
topology: v6e:2x2x1
jax: 0.10.0
libtpu: 0.0.40
codegen_flags: <defaults>
</compile_context>

<pallas_src>
import functools

import jax
import jax.numpy as jnp
from jax import lax
from jax.experimental import pallas as pl
from jax.experimental.pallas import tpu as pltpu

NEG_INF = -1e15  # matches the torch masked_fill value -1000000000000000.0


# --------------------------- fused forward kernel ----------------------------
def _mha_kernel(hidden_size, q_proj, k_proj, v_proj, r_proj,
                # scalar-prefetch ref (SMEM)
                len_ref,
                # tensor refs (VMEM blocks)
                q_ref, k_ref, v_ref, rel_ref,
                wq_ref, bq_ref, wk_ref, bk_ref, wv_ref, bv_ref,
                wr_ref, br_ref, u_ref, vp_ref,
                # output
                o_ref,
                # scratch
                wau_ref, wbd_ref, m_ref, l_ref, acc_ref):
    D = hidden_size
    S = q_ref.shape[1]            # query length (kept whole)
    Sk = k_ref.shape[1]           # key tile length
    T = q_ref.shape[2]            # H * D (flat head layout)
    Hp = wau_ref.shape[1]         # heads padded to a sublane multiple (8)

    b = pl.program_id(0)
    kb = pl.program_id(1)
    n_kb = pl.num_programs(1)
    f32 = jnp.float32

    # One-hot head-segment matrix: seg[h, t] = 1 iff column t belongs to head h.
    # Rows of padded heads (h*D >= T) are automatically all-zero.
    t_idx = lax.broadcasted_iota(jnp.int32, (Hp, T), 1)
    h_idx = lax.broadcasted_iota(jnp.int32, (Hp, T), 0)
    seg = jnp.where((t_idx >= h_idx * D) & (t_idx < h_idx * D + D),
                    1.0, 0.0).astype(f32)                         # (Hp, T)

    inp = q_ref[0]                                                # (S, T) residual

    # ---- per-batch init: q projection + online-softmax state (kb == 0) ----
    @pl.when(kb == 0)
    def _init():
        q = inp
        if q_proj:
            q = jnp.dot(q, wq_ref[...], preferred_element_type=f32) + bq_ref[...]
        qu = q + u_ref[...]                                       # (S, T)
        qv = q + vp_ref[...]                                      # (S, T)
        # Head-segmented q operands: wau[s, h, t] = (q+u)[s, t] * seg[h, t].
        wau_ref[...] = qu[:, None, :] * seg[None, :, :]           # (S, Hp, T)
        wbd_ref[...] = qv[:, None, :] * seg[None, :, :]           # (S, Hp, T)
        m_ref[...] = jnp.full((S, Hp), NEG_INF, dtype=f32)
        l_ref[...] = jnp.zeros((S, Hp), dtype=f32)
        acc_ref[...] = jnp.zeros((S, T), dtype=f32)

    # ---- per key-tile work ----
    k = k_ref[0]                                                  # (Sk, T)
    v = v_ref[0]                                                  # (Sk, T)
    rel = rel_ref[0]                                              # (S, Sk, T)
    if k_proj:
        k = jnp.dot(k, wk_ref[...], preferred_element_type=f32) + bk_ref[...]
    if v_proj:
        v = jnp.dot(v, wv_ref[...], preferred_element_type=f32) + bv_ref[...]
    if r_proj:
        # project only this key-tile's rel slab (pipelines against next DMA)
        rel = (jnp.dot(rel.reshape(S * Sk, T), wr_ref[...],
                       preferred_element_type=f32)
               + br_ref[...]).reshape(S, Sk, T)

    # A_C[s, h, j] = sum_d (q+u)[s, hD+d] * k[j, hD+d]  -- one MXU matmul,
    # contraction over the full T axis, all heads at once.
    ac = lax.dot_general(
        wau_ref[...].reshape(S * Hp, T), k,
        (((1,), (1,)), ((), ())),
        preferred_element_type=f32).reshape(S, Hp, Sk)

    # B_D[s, h, j] = sum_d (q+v)[s, hD+d] * rel[s, j, hD+d]  -- one batched
    # dot_general (batch = S_q, contraction = T) against the resident rel tile.
    bd = jnp.einsum('sht,sjt->shj', wbd_ref[...], rel,
                    preferred_element_type=f32)                   # (S, Hp, Sk)

    # Additive key-position mask, built once per tile (no head loop).
    total_len = len_ref[b]
    col = kb * Sk + lax.broadcasted_iota(jnp.int32, (1, Sk), 1)
    bias = jnp.where(col < total_len, 0.0, NEG_INF).astype(f32)   # (1, Sk)

    score = ac + bd + bias                                        # (S, Hp, Sk)

    # ---- flash-style online softmax over the (tiled) key axis ----
    m_prev = m_ref[...]                                           # (S, Hp)
    m_cur = jnp.max(score, axis=-1)
    m_new = jnp.maximum(m_prev, m_cur)
    alpha = jnp.exp(m_prev - m_new)                               # (S, Hp)
    p = jnp.exp(score - m_new[:, :, None])                        # (S, Hp, Sk)
    l_ref[...] = alpha * l_ref[...] + jnp.sum(p, axis=-1)
    m_ref[...] = m_new

    # attn @ V for all heads with one MXU matmul, then head-select into the
    # lane-dense flat layout: o_step[s, t] = sum_j p[s, head(t), j] * v[j, t]
    pv = jnp.dot(p.reshape(S * Hp, Sk), v,
                 preferred_element_type=f32).reshape(S, Hp, T)
    o_step = jnp.sum(pv * seg[None, :, :], axis=1)                # (S, T)

    # Expand the per-head rescale to the flat (S, T) accumulator layout.
    alpha_flat = jnp.dot(alpha, seg, preferred_element_type=f32)  # (S, T)
    acc_ref[...] = alpha_flat * acc_ref[...] + o_step

    # ---- finalize: normalize, residual + LayerNorm, single dense store ----
    @pl.when(kb == n_kb - 1)
    def _finalize():
        l_flat = jnp.dot(l_ref[...], seg, preferred_element_type=f32)  # (S, T)
        out = acc_ref[...] / l_flat                  # exact divide, once per row
        x = inp + out
        mean = jnp.mean(x, axis=-1, keepdims=True)
        cen = x - mean
        var = jnp.mean(cen * cen, axis=-1, keepdims=True)
        o_ref[0] = (cen * lax.rsqrt(var + 1e-5)).astype(o_ref.dtype)


# ------------------------------- full forward --------------------------------
def multi_head_attention_forward(query, key, value, lex_num, real_lengths,
                                 rel_pos_embedding, params, num_head,
                                 hidden_size, q_proj=True, k_proj=True,
                                 v_proj=True, r_proj=True, k_block=None):
    B, S, T = query.shape
    H, D = num_head, hidden_size
    assert T == H * D
    assert rel_pos_embedding.shape == (B, S, S, T)

    # Key-axis tile: the (1, S, k_block, T) rel block dominates VMEM/HBM; pick
    # a smaller multiple-of-8 divisor of S for large shapes.
    if k_block is None:
        k_block = 128 if S % 128 == 0 else S
    assert S % k_block == 0
    assert k_block == S or k_block % 8 == 0
    n_kb = S // k_block

    Hp = ((H + 7) // 8) * 8       # heads padded to a sublane multiple

    lengths = (jnp.asarray(real_lengths, jnp.int32)
               + jnp.asarray(lex_num, jnp.int32))

    kernel = functools.partial(_mha_kernel, D, q_proj, k_proj, v_proj, r_proj)

    def row(a):
        return jnp.asarray(a, jnp.float32).reshape(1, T)

    q_spec = pl.BlockSpec((1, S, T), lambda b, kb, lens: (b, 0, 0))
    kv_spec = pl.BlockSpec((1, k_block, T), lambda b, kb, lens: (b, kb, 0))
    rel_spec = pl.BlockSpec((1, S, k_block, T), lambda b, kb, lens: (b, 0, kb, 0))
    # TODO(synk): these blocks are grid-invariant; single-buffering them with
    # pipeline_mode=pl.Buffered(1) would halve their VMEM footprint.
    w_spec = pl.BlockSpec((T, T), lambda b, kb, lens: (0, 0))
    r_spec = pl.BlockSpec((1, T), lambda b, kb, lens: (0, 0))
    out_spec = pl.BlockSpec((1, S, T), lambda b, kb, lens: (b, 0, 0))

    grid_spec = pltpu.PrefetchScalarGridSpec(
        num_scalar_prefetch=1,
        grid=(B, n_kb),
        in_specs=[q_spec, kv_spec, kv_spec, rel_spec,
                  w_spec, r_spec,          # w_q, b_q
                  w_spec, r_spec,          # w_k, b_k
                  w_spec, r_spec,          # w_v, b_v
                  w_spec, r_spec,          # w_r, b_r
                  r_spec, r_spec],         # u, v
        out_specs=out_spec,
        scratch_shapes=[
            pltpu.VMEM((S, Hp, T), jnp.float32),   # (q+u) x head-segment mask
            pltpu.VMEM((S, Hp, T), jnp.float32),   # (q+v) x head-segment mask
            pltpu.VMEM((S, Hp), jnp.float32),      # online-softmax running max
            pltpu.VMEM((S, Hp), jnp.float32),      # online-softmax running sum
            pltpu.VMEM((S, T), jnp.float32),       # running attn @ V (flat heads)
        ],
    )

    # TODO(synk): the torch branch for seq_len > 40 (seaborn heatmap + sys.exit)
    # is a debug/visualization path and is intentionally not implemented.
    return pl.pallas_call(
        kernel,
        out_shape=jax.ShapeDtypeStruct((B, S, T), jnp.float32),
        grid_spec=grid_spec,
        compiler_params=pltpu.CompilerParams(
            dimension_semantics=("parallel", "arbitrary"),
            vmem_limit_bytes=64 * 1024 * 1024),
    )(lengths, query, key, value, rel_pos_embedding,
      params["w_q"], row(params["b_q"]),
      params["w_k"], row(params["b_k"]),
      params["w_v"], row(params["b_v"]),
      params["w_r"], row(params["b_r"]),
      row(params["u"]), row(params["v"]))


# ------------------------------ pure-JAX reference ---------------------------
def reference_forward(query, key, value, lex_num, real_lengths,
                      rel_pos_embedding, params, H, D):
    T = H * D
    inp = query
    q = query @ params["w_q"] + params["b_q"]
    k = key @ params["w_k"] + params["b_k"]
    v = value @ params["w_v"] + params["b_v"]
    r = rel_pos_embedding @ params["w_r"] + params["b_r"]
    B, S, _ = q.shape
    q = q.reshape(B, S, H, D).transpose(0, 2, 1, 3)
    k = k.reshape(B, S, H, D).transpose(0, 2, 1, 3)
    v = v.reshape(B, S, H, D).transpose(0, 2, 1, 3)
    r = r.reshape(B, S, S, H, D).transpose(0, 3, 1, 4, 2)   # B,H,Sq,D,Sk
    ac = jnp.einsum('bhid,bhjd->bhij', q + params["u"][None, :, None, :], k)
    qv = q + params["v"][None, :, None, :]
    bd = jnp.einsum('bhid,bhidj->bhij', qv, r)
    score = ac + bd
    lengths = (jnp.asarray(real_lengths, jnp.int32)
               + jnp.asarray(lex_num, jnp.int32))
    mask = jnp.arange(S)[None, :] < lengths[:, None]         # (B, S)
    score = jnp.where(mask[:, None, None, :], score, NEG_INF)
    attn = jax.nn.softmax(score, axis=-1)
    out = jnp.einsum('bhij,bhjd->bhid', attn, v)
    out = out.transpose(0, 2, 1, 3).reshape(B, S, T)
    x = inp + out
    mean = x.mean(-1, keepdims=True)
    var = ((x - mean) ** 2).mean(-1, keepdims=True)
    return (x - mean) / jnp.sqrt(var + 1e-5)


# ------------------------------------ main ------------------------------------
if __name__ == "__main__":
    B, S, H, D = 2, 8, 4, 8          # batch, seq, num_head, hidden_size
    T = H * D

    root = jax.random.PRNGKey(0)
    ks = jax.random.split(root, 16)
    scale = 1.0 / jnp.sqrt(jnp.float32(T))

    params = {
        "w_q": jax.random.normal(ks[0], (T, T), jnp.float32) * scale,
        "b_q": jax.random.normal(ks[1], (T,), jnp.float32) * 0.01,
        "w_k": jax.random.normal(ks[2], (T, T), jnp.float32) * scale,
        "b_k": jax.random.normal(ks[3], (T,), jnp.float32) * 0.01,
        "w_v": jax.random.normal(ks[4], (T, T), jnp.float32) * scale,
        "b_v": jax.random.normal(ks[5], (T,), jnp.float32) * 0.01,
        "w_r": jax.random.normal(ks[6], (T, T), jnp.float32) * scale,
        "b_r": jax.random.normal(ks[7], (T,), jnp.float32) * 0.01,
        "u": jax.random.normal(ks[8], (H, D), jnp.float32) * scale,
        "v": jax.random.normal(ks[9], (H, D), jnp.float32) * scale,
    }

    query = jax.random.normal(ks[10], (B, S, T), jnp.float32)
    key_t = jax.random.normal(ks[11], (B, S, T), jnp.float32)
    value = jax.random.normal(ks[12], (B, S, T), jnp.float32)
    rel_pos = jax.random.normal(ks[13], (B, S, S, T), jnp.float32)

    real_lengths = [5, 7]
    lex_num = [2, 1]                 # total lengths = [7, 8]

    out = multi_head_attention_forward(query, key_t, value, lex_num,
                                       real_lengths, rel_pos, params, H, D)
    out = jax.block_until_ready(out)

    ref = reference_forward(query, key_t, value, lex_num, real_lengths,
                            rel_pos, params, H, D)

    assert out.shape == (B, S, T)
    assert jnp.allclose(out, ref, atol=1e-3, rtol=1e-3), (
        "mismatch vs pure-JAX reference, max abs err = "
        f"{float(jnp.max(jnp.abs(out - ref)))}")

    print("KERNEL_OK")
</pallas_src>

<mosaic_0001>
module attributes {stable_mosaic.version = 11 : i64} {
  func.func @_mha_kernel(%arg0: i32, %arg1: i32, %arg2: memref<2xi32, #tpu.memory_space<smem>>, %arg3: memref<1x8x32xf32, #tpu.memory_space<vmem>>, %arg4: memref<1x8x32xf32, #tpu.memory_space<vmem>>, %arg5: memref<1x8x32xf32, #tpu.memory_space<vmem>>, %arg6: memref<1x8x8x32xf32, #tpu.memory_space<vmem>>, %arg7: memref<32x32xf32, #tpu.memory_space<vmem>>, %arg8: memref<1x32xf32, #tpu.memory_space<vmem>>, %arg9: memref<32x32xf32, #tpu.memory_space<vmem>>, %arg10: memref<1x32xf32, #tpu.memory_space<vmem>>, %arg11: memref<32x32xf32, #tpu.memory_space<vmem>>, %arg12: memref<1x32xf32, #tpu.memory_space<vmem>>, %arg13: memref<32x32xf32, #tpu.memory_space<vmem>>, %arg14: memref<1x32xf32, #tpu.memory_space<vmem>>, %arg15: memref<1x32xf32, #tpu.memory_space<vmem>>, %arg16: memref<1x32xf32, #tpu.memory_space<vmem>>, %arg17: memref<1x8x32xf32, #tpu.memory_space<vmem>>, %arg18: memref<8x8x32xf32, #tpu.memory_space<vmem>>, %arg19: memref<8x8x32xf32, #tpu.memory_space<vmem>>, %arg20: memref<8x8xf32, #tpu.memory_space<vmem>>, %arg21: memref<8x8xf32, #tpu.memory_space<vmem>>, %arg22: memref<8x32xf32, #tpu.memory_space<vmem>>) attributes {dimension_semantics = [#tpu.dimension_semantics<parallel>, #tpu.dimension_semantics<arbitrary>], iteration_bounds = array<i64: 2, 1>, scalar_prefetch = 1 : i64, scratch_operands = 5 : i64, tpu.core_type = #tpu.core_type<tc>, window_params = [{transform_indices = @transform_0, window_bounds = array<i64: 1, 8, 32>}, {transform_indices = @transform_1, window_bounds = array<i64: 1, 8, 32>}, {transform_indices = @transform_2, window_bounds = array<i64: 1, 8, 32>}, {transform_indices = @transform_3, window_bounds = array<i64: 1, 8, 8, 32>}, {pipeline_mode = #tpu.pipeline_mode<synchronous>, transform_indices = @transform_4, window_bounds = array<i64: 32, 32>}, {pipeline_mode = #tpu.pipeline_mode<synchronous>, transform_indices = @transform_5, window_bounds = array<i64: 1, 32>}, {pipeline_mode = #tpu.pipeline_mode<synchronous>, transform_indices = @transform_6, window_bounds = array<i64: 32, 32>}, {pipeline_mode = #tpu.pipeline_mode<synchronous>, transform_indices = @transform_7, window_bounds = array<i64: 1, 32>}, {pipeline_mode = #tpu.pipeline_mode<synchronous>, transform_indices = @transform_8, window_bounds = array<i64: 32, 32>}, {pipeline_mode = #tpu.pipeline_mode<synchronous>, transform_indices = @transform_9, window_bounds = array<i64: 1, 32>}, {pipeline_mode = #tpu.pipeline_mode<synchronous>, transform_indices = @transform_10, window_bounds = array<i64: 32, 32>}, {pipeline_mode = #tpu.pipeline_mode<synchronous>, transform_indices = @transform_11, window_bounds = array<i64: 1, 32>}, {pipeline_mode = #tpu.pipeline_mode<synchronous>, transform_indices = @transform_12, window_bounds = array<i64: 1, 32>}, {pipeline_mode = #tpu.pipeline_mode<synchronous>, transform_indices = @transform_13, window_bounds = array<i64: 1, 32>}, {transform_indices = @transform_14, window_bounds = array<i64: 1, 8, 32>}]} {
    %0 = tpu.iota {dimensions = array<i32: 1>} : vector<8x32xi32>
    %1 = tpu.iota {dimensions = array<i32: 0>} : vector<8x32xi32>
    %c8_i32 = arith.constant 8 : i32
    %2 = vector.broadcast %c8_i32 : i32 to vector<8x32xi32>
    %3 = arith.muli %1, %2 : vector<8x32xi32>
    %4 = arith.cmpi sge, %0, %3 : vector<8x32xi32>
    %c8_i32_0 = arith.constant 8 : i32
    %5 = vector.broadcast %c8_i32_0 : i32 to vector<8x32xi32>
    %6 = arith.muli %1, %5 : vector<8x32xi32>
    %c8_i32_1 = arith.constant 8 : i32
    %7 = vector.broadcast %c8_i32_1 : i32 to vector<8x32xi32>
    %8 = arith.addi %6, %7 : vector<8x32xi32>
    %9 = arith.cmpi slt, %0, %8 : vector<8x32xi32>
    %10 = arith.andi %4, %9 : vector<8x32xi1>
    %cst = arith.constant 1.000000e+00 : f32
    %cst_2 = arith.constant 0.000000e+00 : f32
    %11 = vector.broadcast %cst : f32 to vector<8x32xf32>
    %12 = vector.broadcast %cst_2 : f32 to vector<8x32xf32>
    %13 = arith.select %10, %11, %12 : vector<8x32xi1>, vector<8x32xf32>
    %c0 = arith.constant 0 : index
    %c0_3 = arith.constant 0 : index
    %c0_4 = arith.constant 0 : index
    %14 = vector.load %arg3[%c0, %c0_3, %c0_4] : memref<1x8x32xf32, #tpu.memory_space<vmem>>, vector<1x8x32xf32>
    %15 = vector.shape_cast %14 : vector<1x8x32xf32> to vector<8x32xf32>
    %c0_i32 = arith.constant 0 : i32
    %16 = arith.cmpi eq, %arg1, %c0_i32 : i32
    %17 = arith.extui %16 : i1 to i32
    %c0_i32_5 = arith.constant 0 : i32
    %18 = arith.cmpi ne, %17, %c0_i32_5 : i32
    scf.if %18 {
      %c0_61 = arith.constant 0 : index
      %c0_62 = arith.constant 0 : index
      %93 = vector.load %arg7[%c0_61, %c0_62] : memref<32x32xf32, #tpu.memory_space<vmem>>, vector<32x32xf32>
      %cst_63 = arith.constant dense<0.000000e+00> : vector<8x32xf32>
      %94 = tpu.matmul %15, %93, %cst_63 {dimension_numbers = #tpu.dot_dimension_numbers<[1], [0], [0], [1], [0, 0, 1, 1], [], []>} : vector<8x32xf32>, vector<32x32xf32>, vector<8x32xf32> -> vector<8x32xf32>
      %c0_64 = arith.constant 0 : index
      %c0_65 = arith.constant 0 : index
      %95 = vector.load %arg8[%c0_64, %c0_65] : memref<1x32xf32, #tpu.memory_space<vmem>>, vector<1x32xf32>
      %96 = vector.broadcast %95 : vector<1x32xf32> to vector<8x32xf32>
      %97 = arith.addf %94, %96 : vector<8x32xf32>
      %c0_66 = arith.constant 0 : index
      %c0_67 = arith.constant 0 : index
      %98 = vector.load %arg15[%c0_66, %c0_67] : memref<1x32xf32, #tpu.memory_space<vmem>>, vector<1x32xf32>
      %99 = vector.broadcast %98 : vector<1x32xf32> to vector<8x32xf32>
      %100 = arith.addf %97, %99 : vector<8x32xf32>
      %c0_68 = arith.constant 0 : index
      %c0_69 = arith.constant 0 : index
      %101 = vector.load %arg16[%c0_68, %c0_69] : memref<1x32xf32, #tpu.memory_space<vmem>>, vector<1x32xf32>
      %102 = vector.broadcast %101 : vector<1x32xf32> to vector<8x32xf32>
      %103 = arith.addf %97, %102 : vector<8x32xf32>
      %104 = vector.shape_cast %100 : vector<8x32xf32> to vector<8x1x32xf32>
      %105 = vector.shape_cast %13 : vector<8x32xf32> to vector<1x8x32xf32>
      %106 = vector.broadcast %104 : vector<8x1x32xf32> to vector<8x8x32xf32>
      %107 = vector.broadcast %105 : vector<1x8x32xf32> to vector<8x8x32xf32>
      %108 = arith.mulf %106, %107 : vector<8x8x32xf32>
      %c0_70 = arith.constant 0 : index
      %c0_71 = arith.constant 0 : index
      %c0_72 = arith.constant 0 : index
      %109 = vector.load %arg18[%c0_70, %c0_71, %c0_72] : memref<8x8x32xf32, #tpu.memory_space<vmem>>, vector<8x8x32xf32>
      tpu.vector_store %arg18[%c0_70, %c0_71, %c0_72], %108 {strides = array<i32>} : memref<8x8x32xf32, #tpu.memory_space<vmem>>, vector<8x8x32xf32>,
      %110 = vector.shape_cast %103 : vector<8x32xf32> to vector<8x1x32xf32>
      %111 = vector.shape_cast %13 : vector<8x32xf32> to vector<1x8x32xf32>
      %112 = vector.broadcast %110 : vector<8x1x32xf32> to vector<8x8x32xf32>
      %113 = vector.broadcast %111 : vector<1x8x32xf32> to vector<8x8x32xf32>
      %114 = arith.mulf %112, %113 : vector<8x8x32xf32>
      %c0_73 = arith.constant 0 : index
      %c0_74 = arith.constant 0 : index
      %c0_75 = arith.constant 0 : index
      %115 = vector.load %arg19[%c0_73, %c0_74, %c0_75] : memref<8x8x32xf32, #tpu.memory_space<vmem>>, vector<8x8x32xf32>
      tpu.vector_store %arg19[%c0_73, %c0_74, %c0_75], %114 {strides = array<i32>} : memref<8x8x32xf32, #tpu.memory_space<vmem>>, vector<8x8x32xf32>,
      %cst_76 = arith.constant -9.99999986E+14 : f32
      %116 = vector.broadcast %cst_76 : f32 to vector<8x8xf32>
      %c0_77 = arith.constant 0 : index
      %c0_78 = arith.constant 0 : index
      %117 = vector.load %arg20[%c0_77, %c0_78] : memref<8x8xf32, #tpu.memory_space<vmem>>, vector<8x8xf32>
      tpu.vector_store %arg20[%c0_77, %c0_78], %116 {strides = array<i32>} : memref<8x8xf32, #tpu.memory_space<vmem>>, vector<8x8xf32>,
      %cst_79 = arith.constant 0.000000e+00 : f32
      %118 = vector.broadcast %cst_79 : f32 to vector<8x8xf32>
      %c0_80 = arith.constant 0 : index
      %c0_81 = arith.constant 0 : index
      %119 = vector.load %arg21[%c0_80, %c0_81] : memref<8x8xf32, #tpu.memory_space<vmem>>, vector<8x8xf32>
      tpu.vector_store %arg21[%c0_80, %c0_81], %118 {strides = array<i32>} : memref<8x8xf32, #tpu.memory_space<vmem>>, vector<8x8xf32>,
      %cst_82 = arith.constant 0.000000e+00 : f32
      %120 = vector.broadcast %cst_82 : f32 to vector<8x32xf32>
      %c0_83 = arith.constant 0 : index
      %c0_84 = arith.constant 0 : index
      %121 = vector.load %arg22[%c0_83, %c0_84] : memref<8x32xf32, #tpu.memory_space<vmem>>, vector<8x32xf32>
      tpu.vector_store %arg22[%c0_83, %c0_84], %120 {strides = array<i32>} : memref<8x32xf32, #tpu.memory_space<vmem>>, vector<8x32xf32>,
    } else {
    }
    %c0_6 = arith.constant 0 : index
    %c0_7 = arith.constant 0 : index
    %c0_8 = arith.constant 0 : index
    %19 = vector.load %arg4[%c0_6, %c0_7, %c0_8] : memref<1x8x32xf32, #tpu.memory_space<vmem>>, vector<1x8x32xf32>
    %20 = vector.shape_cast %19 : vector<1x8x32xf32> to vector<8x32xf32>
    %c0_9 = arith.constant 0 : index
    %c0_10 = arith.constant 0 : index
    %c0_11 = arith.constant 0 : index
    %21 = vector.load %arg5[%c0_9, %c0_10, %c0_11] : memref<1x8x32xf32, #tpu.memory_space<vmem>>, vector<1x8x32xf32>
    %22 = vector.shape_cast %21 : vector<1x8x32xf32> to vector<8x32xf32>
    %c0_12 = arith.constant 0 : index
    %c0_13 = arith.constant 0 : index
    %c0_14 = arith.constant 0 : index
    %c0_15 = arith.constant 0 : index
    %23 = vector.load %arg6[%c0_12, %c0_13, %c0_14, %c0_15] : memref<1x8x8x32xf32, #tpu.memory_space<vmem>>, vector<1x8x8x32xf32>
    %24 = vector.shape_cast %23 : vector<1x8x8x32xf32> to vector<8x8x32xf32>
    %c0_16 = arith.constant 0 : index
    %c0_17 = arith.constant 0 : index
    %25 = vector.load %arg9[%c0_16, %c0_17] : memref<32x32xf32, #tpu.memory_space<vmem>>, vector<32x32xf32>
    %cst_18 = arith.constant dense<0.000000e+00> : vector<8x32xf32>
    %26 = tpu.matmul %20, %25, %cst_18 {dimension_numbers = #tpu.dot_dimension_numbers<[1], [0], [0], [1], [0, 0, 1, 1], [], []>} : vector<8x32xf32>, vector<32x32xf32>, vector<8x32xf32> -> vector<8x32xf32>
    %c0_19 = arith.constant 0 : index
    %c0_20 = arith.constant 0 : index
    %27 = vector.load %arg10[%c0_19, %c0_20] : memref<1x32xf32, #tpu.memory_space<vmem>>, vector<1x32xf32>
    %28 = vector.broadcast %27 : vector<1x32xf32> to vector<8x32xf32>
    %29 = arith.addf %26, %28 : vector<8x32xf32>
    %c0_21 = arith.constant 0 : index
    %c0_22 = arith.constant 0 : index
    %30 = vector.load %arg11[%c0_21, %c0_22] : memref<32x32xf32, #tpu.memory_space<vmem>>, vector<32x32xf32>
    %cst_23 = arith.constant dense<0.000000e+00> : vector<8x32xf32>
    %31 = tpu.matmul %22, %30, %cst_23 {dimension_numbers = #tpu.dot_dimension_numbers<[1], [0], [0], [1], [0, 0, 1, 1], [], []>} : vector<8x32xf32>, vector<32x32xf32>, vector<8x32xf32> -> vector<8x32xf32>
    %c0_24 = arith.constant 0 : index
    %c0_25 = arith.constant 0 : index
    %32 = vector.load %arg12[%c0_24, %c0_25] : memref<1x32xf32, #tpu.memory_space<vmem>>, vector<1x32xf32>
    %33 = vector.broadcast %32 : vector<1x32xf32> to vector<8x32xf32>
    %34 = arith.addf %31, %33 : vector<8x32xf32>
    %35 = vector.shape_cast %24 : vector<8x8x32xf32> to vector<64x32xf32>
    %c0_26 = arith.constant 0 : index
    %c0_27 = arith.constant 0 : index
    %36 = vector.load %arg13[%c0_26, %c0_27] : memref<32x32xf32, #tpu.memory_space<vmem>>, vector<32x32xf32>
    %cst_28 = arith.constant dense<0.000000e+00> : vector<64x32xf32>
    %37 = tpu.matmul %35, %36, %cst_28 {dimension_numbers = #tpu.dot_dimension_numbers<[1], [0], [0], [1], [0, 0, 1, 1], [], []>} : vector<64x32xf32>, vector<32x32xf32>, vector<64x32xf32> -> vector<64x32xf32>
    %c0_29 = arith.constant 0 : index
    %c0_30 = arith.constant 0 : index
    %38 = vector.load %arg14[%c0_29, %c0_30] : memref<1x32xf32, #tpu.memory_space<vmem>>, vector<1x32xf32>
    %39 = vector.broadcast %38 : vector<1x32xf32> to vector<64x32xf32>
    %40 = arith.addf %37, %39 : vector<64x32xf32>
    %41 = vector.shape_cast %40 : vector<64x32xf32> to vector<8x8x32xf32>
    %c0_31 = arith.constant 0 : index
    %c0_32 = arith.constant 0 : index
    %c0_33 = arith.constant 0 : index
    %42 = vector.load %arg18[%c0_31, %c0_32, %c0_33] : memref<8x8x32xf32, #tpu.memory_space<vmem>>, vector<8x8x32xf32>
    %43 = vector.shape_cast %42 : vector<8x8x32xf32> to vector<64x32xf32>
    %cst_34 = arith.constant dense<0.000000e+00> : vector<64x8xf32>
    %44 = tpu.matmul %43, %29, %cst_34 {dimension_numbers = #tpu.dot_dimension_numbers<[1], [1], [0], [0], [0, 0, 1, 0], [], []>} : vector<64x32xf32>, vector<8x32xf32>, vector<64x8xf32> -> vector<64x8xf32>
    %45 = vector.shape_cast %44 : vector<64x8xf32> to vector<8x8x8xf32>
    %c0_35 = arith.constant 0 : index
    %c0_36 = arith.constant 0 : index
    %c0_37 = arith.constant 0 : index
    %46 = vector.load %arg19[%c0_35, %c0_36, %c0_37] : memref<8x8x32xf32, #tpu.memory_space<vmem>>, vector<8x8x32xf32>
    "tpu.trace_start"() <{level = 10 : i32, message = "sht,sjt->shj"}> : () -> ()
    %cst_38 = arith.constant dense<0.000000e+00> : vector<8x8x8xf32>
    %47 = tpu.matmul %46, %41, %cst_38 {dimension_numbers = #tpu.dot_dimension_numbers<[2], [2], [1], [1], [0, 0, 0, 1, 1, 1], [0], [0]>} : vector<8x8x32xf32>, vector<8x8x32xf32>, vector<8x8x8xf32> -> vector<8x8x8xf32>
    "tpu.trace_stop"() : () -> ()
    %48 = arith.index_cast %arg0 : i32 to index
    %49 = memref.load %arg2[%48] : memref<2xi32, #tpu.memory_space<smem>>
    %c8_i32_39 = arith.constant 8 : i32
    %50 = arith.muli %arg1, %c8_i32_39 : i32
    %51 = tpu.iota {dimensions = array<i32: 1>} : vector<1x8xi32>
    %52 = vector.broadcast %50 : i32 to vector<1x8xi32>
    %53 = arith.addi %52, %51 : vector<1x8xi32>
    %54 = vector.broadcast %49 : i32 to vector<1x8xi32>
    %55 = arith.cmpi slt, %53, %54 : vector<1x8xi32>
    %cst_40 = arith.constant 0.000000e+00 : f32
    %cst_41 = arith.constant -9.99999986E+14 : f32
    %56 = vector.broadcast %cst_40 : f32 to vector<1x8xf32>
    %57 = vector.broadcast %cst_41 : f32 to vector<1x8xf32>
    %58 = arith.select %55, %56, %57 : vector<1x8xi1>, vector<1x8xf32>
    %59 = arith.addf %45, %47 : vector<8x8x8xf32>
    %60 = vector.shape_cast %58 : vector<1x8xf32> to vector<1x1x8xf32>
    %61 = vector.broadcast %60 : vector<1x1x8xf32> to vector<8x8x8xf32>
    %62 = arith.addf %59, %61 : vector<8x8x8xf32>
    %c0_42 = arith.constant 0 : index
    %c0_43 = arith.constant 0 : index
    %63 = vector.load %arg20[%c0_42, %c0_43] : memref<8x8xf32, #tpu.memory_space<vmem>>, vector<8x8xf32>
    %cst_44 = arith.constant dense<0xFF800000> : vector<8x8xf32>
    %64 = vector.multi_reduction <maximumf>, %62, %cst_44 [2] : vector<8x8x8xf32> to vector<8x8xf32>
    %65 = arith.maximumf %63, %64 : vector<8x8xf32>
    %66 = arith.subf %63, %65 : vector<8x8xf32>
    %67 = math.exp %66 : vector<8x8xf32>
    %68 = vector.shape_cast %65 : vector<8x8xf32> to vector<8x8x1xf32>
    %69 = vector.broadcast %68 : vector<8x8x1xf32> to vector<8x8x8xf32>
    %70 = arith.subf %62, %69 : vector<8x8x8xf32>
    %71 = math.exp %70 : vector<8x8x8xf32>
    %c0_45 = arith.constant 0 : index
    %c0_46 = arith.constant 0 : index
    %72 = vector.load %arg21[%c0_45, %c0_46] : memref<8x8xf32, #tpu.memory_space<vmem>>, vector<8x8xf32>
    %73 = arith.mulf %67, %72 : vector<8x8xf32>
    %cst_47 = arith.constant dense<0.000000e+00> : vector<8x8xf32>
    %74 = vector.multi_reduction <add>, %71, %cst_47 [2] : vector<8x8x8xf32> to vector<8x8xf32>
    %75 = arith.addf %73, %74 : vector<8x8xf32>
    %c0_48 = arith.constant 0 : index
    %c0_49 = arith.constant 0 : index
    %76 = vector.load %arg21[%c0_48, %c0_49] : memref<8x8xf32, #tpu.memory_space<vmem>>, vector<8x8xf32>
    tpu.vector_store %arg21[%c0_48, %c0_49], %75 {strides = array<i32>} : memref<8x8xf32, #tpu.memory_space<vmem>>, vector<8x8xf32>,
    %c0_50 = arith.constant 0 : index
    %c0_51 = arith.constant 0 : index
    %77 = vector.load %arg20[%c0_50, %c0_51] : memref<8x8xf32, #tpu.memory_space<vmem>>, vector<8x8xf32>
    tpu.vector_store %arg20[%c0_50, %c0_51], %65 {strides = array<i32>} : memref<8x8xf32, #tpu.memory_space<vmem>>, vector<8x8xf32>,
    %78 = vector.shape_cast %71 : vector<8x8x8xf32> to vector<64x8xf32>
    %cst_52 = arith.constant dense<0.000000e+00> : vector<64x32xf32>
    %79 = tpu.matmul %78, %34, %cst_52 {dimension_numbers = #tpu.dot_dimension_numbers<[1], [0], [0], [1], [0, 0, 1, 1], [], []>} : vector<64x8xf32>, vector<8x32xf32>, vector<64x32xf32> -> vector<64x32xf32>
    %80 = vector.shape_cast %79 : vector<64x32xf32> to vector<8x8x32xf32>
    %81 = vector.shape_cast %13 : vector<8x32xf32> to vector<1x8x32xf32>
    %82 = vector.broadcast %81 : vector<1x8x32xf32> to vector<8x8x32xf32>
    %83 = arith.mulf %80, %82 : vector<8x8x32xf32>
    %cst_53 = arith.constant dense<0.000000e+00> : vector<8x32xf32>
    %84 = vector.multi_reduction <add>, %83, %cst_53 [1] : vector<8x8x32xf32> to vector<8x32xf32>
    %cst_54 = arith.constant dense<0.000000e+00> : vector<8x32xf32>
    %85 = tpu.matmul %67, %13, %cst_54 {dimension_numbers = #tpu.dot_dimension_numbers<[1], [0], [0], [1], [0, 0, 1, 1], [], []>} : vector<8x8xf32>, vector<8x32xf32>, vector<8x32xf32> -> vector<8x32xf32>
    %c0_55 = arith.constant 0 : index
    %c0_56 = arith.constant 0 : index
    %86 = vector.load %arg22[%c0_55, %c0_56] : memref<8x32xf32, #tpu.memory_space<vmem>>, vector<8x32xf32>
    %87 = arith.mulf %85, %86 : vector<8x32xf32>
    %88 = arith.addf %87, %84 : vector<8x32xf32>
    %c0_57 = arith.constant 0 : index
    %c0_58 = arith.constant 0 : index
    %89 = vector.load %arg22[%c0_57, %c0_58] : memref<8x32xf32, #tpu.memory_space<vmem>>, vector<8x32xf32>
    tpu.vector_store %arg22[%c0_57, %c0_58], %88 {strides = array<i32>} : memref<8x32xf32, #tpu.memory_space<vmem>>, vector<8x32xf32>,
    %c0_i32_59 = arith.constant 0 : i32
    %90 = arith.cmpi eq, %arg1, %c0_i32_59 : i32
    %91 = arith.extui %90 : i1 to i32
    %c0_i32_60 = arith.constant 0 : i32
    %92 = arith.cmpi ne, %91, %c0_i32_60 : i32
    scf.if %92 {
      %c0_61 = arith.constant 0 : index
      %c0_62 = arith.constant 0 : index
      %93 = vector.load %arg21[%c0_61, %c0_62] : memref<8x8xf32, #tpu.memory_space<vmem>>, vector<8x8xf32>
      %cst_63 = arith.constant dense<0.000000e+00> : vector<8x32xf32>
      %94 = tpu.matmul %93, %13, %cst_63 {dimension_numbers = #tpu.dot_dimension_numbers<[1], [0], [0], [1], [0, 0, 1, 1], [], []>} : vector<8x8xf32>, vector<8x32xf32>, vector<8x32xf32> -> vector<8x32xf32>
      %c0_64 = arith.constant 0 : index
      %c0_65 = arith.constant 0 : index
      %95 = vector.load %arg22[%c0_64, %c0_65] : memref<8x32xf32, #tpu.memory_space<vmem>>, vector<8x32xf32>
      %96 = arith.divf %95, %94 : vector<8x32xf32>
      %97 = arith.addf %15, %96 : vector<8x32xf32>
      %cst_66 = arith.constant dense<0.000000e+00> : vector<8xf32>
      %98 = vector.multi_reduction <add>, %97, %cst_66 [1] : vector<8x32xf32> to vector<8xf32>
      %99 = vector.shape_cast %98 : vector<8xf32> to vector<8x1xf32>
      %cst_67 = arith.constant 3.200000e+01 : f32
      %100 = vector.broadcast %cst_67 : f32 to vector<8x1xf32>
      %101 = arith.divf %99, %100 : vector<8x1xf32>
      %102 = vector.broadcast %101 : vector<8x1xf32> to vector<8x32xf32>
      %103 = arith.subf %97, %102 : vector<8x32xf32>
      %104 = arith.mulf %103, %103 : vector<8x32xf32>
      %cst_68 = arith.constant dense<0.000000e+00> : vector<8xf32>
      %105 = vector.multi_reduction <add>, %104, %cst_68 [1] : vector<8x32xf32> to vector<8xf32>
      %106 = vector.shape_cast %105 : vector<8xf32> to vector<8x1xf32>
      %cst_69 = arith.constant 3.200000e+01 : f32
      %107 = vector.broadcast %cst_69 : f32 to vector<8x1xf32>
      %108 = arith.divf %106, %107 : vector<8x1xf32>
      %cst_70 = arith.constant 9.99999974E-6 : f32
      %109 = vector.broadcast %cst_70 : f32 to vector<8x1xf32>
      %110 = arith.addf %108, %109 : vector<8x1xf32>
      %111 = math.rsqrt %110 : vector<8x1xf32>
      %112 = vector.broadcast %111 : vector<8x1xf32> to vector<8x32xf32>
      %113 = arith.mulf %103, %112 : vector<8x32xf32>
      %c0_71 = arith.constant 0 : index
      %c0_72 = arith.constant 0 : index
      %c0_73 = arith.constant 0 : index
      %114 = vector.load %arg17[%c0_71, %c0_72, %c0_73] : memref<1x8x32xf32, #tpu.memory_space<vmem>>, vector<1x8x32xf32>
      %115 = vector.shape_cast %114 : vector<1x8x32xf32> to vector<8x32xf32>
      %116 = vector.shape_cast %113 : vector<8x32xf32> to vector<1x8x32xf32>
      tpu.vector_store %arg17[%c0_71, %c0_72, %c0_73], %116 {strides = array<i32>} : memref<1x8x32xf32, #tpu.memory_space<vmem>>, vector<1x8x32xf32>,
    } else {
    }
    return
  }
  func.func @transform_0(%arg0: i32, %arg1: i32, %arg2: memref<2xi32, #tpu.memory_space<smem>>) -> (i32, i32, i32) {
    %c0_i32 = arith.constant 0 : i32
    %c0_i32_0 = arith.constant 0 : i32
    %c0_i32_1 = arith.constant 0 : i32
    return %arg0, %c0_i32, %c0_i32_0 : i32, i32, i32
  }
  func.func @transform_1(%arg0: i32, %arg1: i32, %arg2: memref<2xi32, #tpu.memory_space<smem>>) -> (i32, i32, i32) {
    %c0_i32 = arith.constant 0 : i32
    %c0_i32_0 = arith.constant 0 : i32
    return %arg0, %arg1, %c0_i32 : i32, i32, i32
  }
  func.func @transform_2(%arg0: i32, %arg1: i32, %arg2: memref<2xi32, #tpu.memory_space<smem>>) -> (i32, i32, i32) {
    %c0_i32 = arith.constant 0 : i32
    %c0_i32_0 = arith.constant 0 : i32
    return %arg0, %arg1, %c0_i32 : i32, i32, i32
  }
  func.func @transform_3(%arg0: i32, %arg1: i32, %arg2: memref<2xi32, #tpu.memory_space<smem>>) -> (i32, i32, i32, i32) {
    %c0_i32 = arith.constant 0 : i32
    %c0_i32_0 = arith.constant 0 : i32
    %c0_i32_1 = arith.constant 0 : i32
    return %arg0, %c0_i32, %arg1, %c0_i32_0 : i32, i32, i32, i32
  }
  func.func @transform_4(%arg0: i32, %arg1: i32, %arg2: memref<2xi32, #tpu.memory_space<smem>>) -> (i32, i32) {
    %c0_i32 = arith.constant 0 : i32
    %c0_i32_0 = arith.constant 0 : i32
    %c0_i32_1 = arith.constant 0 : i32
    return %c0_i32, %c0_i32_0 : i32, i32
  }
  func.func @transform_5(%arg0: i32, %arg1: i32, %arg2: memref<2xi32, #tpu.memory_space<smem>>) -> (i32, i32) {
    %c0_i32 = arith.constant 0 : i32
    %c0_i32_0 = arith.constant 0 : i32
    %c0_i32_1 = arith.constant 0 : i32
    return %c0_i32, %c0_i32_0 : i32, i32
  }
  func.func @transform_6(%arg0: i32, %arg1: i32, %arg2: memref<2xi32, #tpu.memory_space<smem>>) -> (i32, i32) {
    %c0_i32 = arith.constant 0 : i32
    %c0_i32_0 = arith.constant 0 : i32
    %c0_i32_1 = arith.constant 0 : i32
    return %c0_i32, %c0_i32_0 : i32, i32
  }
  func.func @transform_7(%arg0: i32, %arg1: i32, %arg2: memref<2xi32, #tpu.memory_space<smem>>) -> (i32, i32) {
    %c0_i32 = arith.constant 0 : i32
    %c0_i32_0 = arith.constant 0 : i32
    %c0_i32_1 = arith.constant 0 : i32
    return %c0_i32, %c0_i32_0 : i32, i32
  }
  func.func @transform_8(%arg0: i32, %arg1: i32, %arg2: memref<2xi32, #tpu.memory_space<smem>>) -> (i32, i32) {
    %c0_i32 = arith.constant 0 : i32
    %c0_i32_0 = arith.constant 0 : i32
    %c0_i32_1 = arith.constant 0 : i32
    return %c0_i32, %c0_i32_0 : i32, i32
  }
  func.func @transform_9(%arg0: i32, %arg1: i32, %arg2: memref<2xi32, #tpu.memory_space<smem>>) -> (i32, i32) {
    %c0_i32 = arith.constant 0 : i32
    %c0_i32_0 = arith.constant 0 : i32
    %c0_i32_1 = arith.constant 0 : i32
    return %c0_i32, %c0_i32_0 : i32, i32
  }
  func.func @transform_10(%arg0: i32, %arg1: i32, %arg2: memref<2xi32, #tpu.memory_space<smem>>) -> (i32, i32) {
    %c0_i32 = arith.constant 0 : i32
    %c0_i32_0 = arith.constant 0 : i32
    %c0_i32_1 = arith.constant 0 : i32
    return %c0_i32, %c0_i32_0 : i32, i32
  }
  func.func @transform_11(%arg0: i32, %arg1: i32, %arg2: memref<2xi32, #tpu.memory_space<smem>>) -> (i32, i32) {
    %c0_i32 = arith.constant 0 : i32
    %c0_i32_0 = arith.constant 0 : i32
    %c0_i32_1 = arith.constant 0 : i32
    return %c0_i32, %c0_i32_0 : i32, i32
  }
  func.func @transform_12(%arg0: i32, %arg1: i32, %arg2: memref<2xi32, #tpu.memory_space<smem>>) -> (i32, i32) {
    %c0_i32 = arith.constant 0 : i32
    %c0_i32_0 = arith.constant 0 : i32
    %c0_i32_1 = arith.constant 0 : i32
    return %c0_i32, %c0_i32_0 : i32, i32
  }
  func.func @transform_13(%arg0: i32, %arg1: i32, %arg2: memref<2xi32, #tpu.memory_space<smem>>) -> (i32, i32) {
    %c0_i32 = arith.constant 0 : i32
    %c0_i32_0 = arith.constant 0 : i32
    %c0_i32_1 = arith.constant 0 : i32
    return %c0_i32, %c0_i32_0 : i32, i32
  }
  func.func @transform_14(%arg0: i32, %arg1: i32, %arg2: memref<2xi32, #tpu.memory_space<smem>>) -> (i32, i32, i32) {
    %c0_i32 = arith.constant 0 : i32
    %c0_i32_0 = arith.constant 0 : i32
    %c0_i32_1 = arith.constant 0 : i32
    return %arg0, %c0_i32, %c0_i32_0 : i32, i32, i32
  }
}

</mosaic_0001>

<llo_original>
// kernel: tpu_custom_call.1
$region0: #{tpu_custom_call.1}
  #allocation0 [shape = 'u32[]', space=smem, size = 0x4, offset = 0x4, fixed_abs, tag = 'smem constant byte address 0x4 - core index']
  #allocation1 [shape = 'u32[144,128]{1,0:T(1,128)}', space=vmem, size = 0x12000, scoped, tag = 'internal scratch']
  #allocation2 [shape = 'f32[8,8,32]{2,1,0:T(8,128)}', space=vmem, size = 0x8000, scoped, tag = 'scratch operand']
  #allocation3 [shape = 'f32[8,8,32]{2,1,0:T(8,128)}', space=vmem, size = 0x8000, scoped, tag = 'scratch operand']
  #allocation4 [shape = 'f32[8,8]{1,0:T(8,128)}', space=vmem, size = 0x1000, scoped, tag = 'scratch operand']
  #allocation5 [shape = 'f32[8,8]{1,0:T(8,128)}', space=vmem, size = 0x1000, scoped, tag = 'scratch operand']
  #allocation6 [shape = 'f32[8,32]{1,0:T(8,128)}', space=vmem, size = 0x1000, scoped, tag = 'scratch operand']
  #allocation7 [shape = 's32[1]{0}', space=sflag, size = 0x4, scoped, tag = 'scoped memory for tpu_custom_call.1']
  #allocation8 [shape = 'u8[512]{0}', space=smem, size = 0x200, scoped, tag = 'prefetched SMEM operand 0']
  %s0 = inlined_call_operand.hbm [shape: s32[2], index: 0, kind: input, shape index: {}]
  %s1 = inlined_call_operand.hbm [shape: f32[2,8,32], index: 1, kind: input, shape index: {}]
  %s2 = inlined_call_operand.hbm [shape: f32[2,8,32], index: 2, kind: input, shape index: {}]
  %s3 = inlined_call_operand.hbm [shape: f32[2,8,32], index: 3, kind: input, shape index: {}]
  %s4 = inlined_call_operand.hbm [shape: f32[2,8,8,32], index: 4, kind: input, shape index: {}]
  %s5 = inlined_call_operand.hbm [shape: f32[32,32], index: 5, kind: input, shape index: {}]
  %s6 = inlined_call_operand.vmem [shape: f32[1,32], index: 6, kind: input, shape index: {}]
  %s7 = inlined_call_operand.hbm [shape: f32[32,32], index: 7, kind: input, shape index: {}]
  %s8 = inlined_call_operand.vmem [shape: f32[1,32], index: 8, kind: input, shape index: {}]
  %s9 = inlined_call_operand.hbm [shape: f32[32,32], index: 9, kind: input, shape index: {}]
  %s10 = inlined_call_operand.vmem [shape: f32[1,32], index: 10, kind: input, shape index: {}]
  %s11 = inlined_call_operand.hbm [shape: f32[32,32], index: 11, kind: input, shape index: {}]
  %s12 = inlined_call_operand.vmem [shape: f32[1,32], index: 12, kind: input, shape index: {}]
  %s13 = inlined_call_operand.vmem [shape: f32[1,32], index: 13, kind: input, shape index: {}]
  %s14 = inlined_call_operand.vmem [shape: f32[1,32], index: 14, kind: input, shape index: {}]
  %s15 = inlined_call_operand.hbm [shape: f32[2,8,32], index: 15, kind: output, shape index: {}]
  %s16 = sld [smem:[#allocation0]]
  $region129: #{tpu_custom_call.1} parent=0
    _
  %s18 = ssub.s32 1, %s16
  %s19 = scalar_select 0, %s18, %s16
  %21 = dma.hbm_to_smem %s0, 16, [#allocation8], [#allocation7]
  %22 = dma.done [#allocation7], 16
  %23 = sfence
  $region1: #{tpu_custom_call.1} parent=0
    #allocation9 [shape = 'u8[8192]{0}', space=vmem, size = 0x2000, scoped, tag = 'input window, operand 1']
    #allocation10 [shape = 's32[2]{0}', space=sflag, size = 0x8, scoped, tag = 'scoped memory for tpu_custom_call.1']
    #allocation11 [shape = 's32[2]{0}', space=sflag, size = 0x8, scoped, tag = 'scoped memory for tpu_custom_call.1']
    #allocation12 [shape = 'u8[8192]{0}', space=vmem, size = 0x2000, scoped, tag = 'input window, operand 2']
    #allocation13 [shape = 's32[2]{0}', space=sflag, size = 0x8, scoped, tag = 'scoped memory for tpu_custom_call.1']
    #allocation14 [shape = 'u8[8192]{0}', space=vmem, size = 0x2000, scoped, tag = 'input window, operand 3']
    #allocation15 [shape = 'u8[65536]{0}', space=vmem, size = 0x10000, scoped, tag = 'input window, operand 4']
    #allocation16 [shape = 's32[2]{0}', space=sflag, size = 0x8, scoped, tag = 'scoped memory for tpu_custom_call.1']
    #allocation17 [shape = 'u8[16384]{0}', space=vmem, size = 0x4000, scoped, tag = 'input window, operand 5, single buffered']
    #allocation18 [shape = 'u8[16384]{0}', space=vmem, size = 0x4000, scoped, tag = 'input window, operand 7, single buffered']
    #allocation19 [shape = 's32[1]{0}', space=sflag, size = 0x4, scoped, tag = 'scoped memory for tpu_custom_call.1']
    #allocation20 [shape = 'u8[16384]{0}', space=vmem, size = 0x4000, scoped, tag = 'input window, operand 9, single buffered']
    #allocation21 [shape = 'u8[16384]{0}', space=vmem, size = 0x4000, scoped, tag = 'input window, operand 11, single buffered']
    #allocation22 [shape = 's32[1]{0}', space=sflag, size = 0x4, scoped, tag = 'scoped memory for tpu_custom_call.1']
    #allocation23 [shape = 'u8[8192]{0}', space=vmem, size = 0x2000, scoped, tag = 'output window, operand 0']
    %24 = vsyncpa [#allocation10], 0
    %s25 = scalar_lea.sflag [#allocation10], 1
    %26 = vsyncpa %s25, 0
    %27 = vsyncpa [#allocation13], 0
    %s28 = scalar_lea.sflag [#allocation13], 1
    %29 = vsyncpa %s28, 0
    %30 = vsyncpa [#allocation16], 0
    %s31 = scalar_lea.sflag [#allocation16], 1
    %32 = vsyncpa %s31, 0
    %33 = vsyncpa [#allocation19], 0
    %34 = vsyncpa [#allocation22], 0
    %35 = vsyncpa [#allocation11], 0
    %s36 = scalar_lea.sflag [#allocation11], 1
    %37 = vsyncpa %s36, 0
    loop: start=0, step=1, limit=4
    $region2: #{tpu_custom_call.1} parent=1 // loop_pre_header
      _
    $region3: #{tpu_custom_call.1} parent=1 // loop_header
      %s39 = sphi 0, %s43
      %p40 = scmp.ge.s32.totalorder %s39, 4
      %s46 = sphi 0, %s58
      %s47 = sphi 0, %s54
      %s48 = sphi 0, %s46
      %s49 = sphi 0, %s47
      %s50 = sphi 0, %s48
      %s51 = sphi 0, %s49
      %s61 = sphi 0, %s63
      %s64 = sphi 0, %s61
      %s65 = sphi 0, %s64
      %s81 = sphi 0, %s65
      %s89 = sphi 0, %s91
      %s92 = sphi 0, %s89
      %s93 = sphi 0, %s92
      %s109 = sphi 0, %s93
      %s117 = sphi 0, %s119
      %s120 = sphi 0, %s117
      %s121 = sphi 0, %s120
      %s137 = sphi 0, %s121
      %s145 = sphi 0, %s147
      %s148 = sphi 0, %s145
      %s149 = sphi 0, %s148
      %s165 = sphi 0, %s149
      %s169 = sphi 0, %s169
      %s171 = sphi 0, %s169
      %s172 = sphi 0, %s171
      %s186 = sphi 0, %s172
      %s190 = sphi 0, %s190
      %s192 = sphi 0, %s190
      %s193 = sphi 0, %s192
      %s207 = sphi 0, %s193
      %s211 = sphi 0, %s211
      %s213 = sphi 0, %s211
      %s214 = sphi 0, %s213
      %s228 = sphi 0, %s214
      %s232 = sphi 0, %s232
      %s234 = sphi 0, %s232
      %s235 = sphi 0, %s234
      %s249 = sphi 0, %s235
      %s253 = sphi 0, %s253
      %s255 = sphi 0, %s253
      %s256 = sphi 0, %s255
      %s270 = sphi 0, %s256
      %s274 = sphi 0, %s274
      %s276 = sphi 0, %s274
      %s277 = sphi 0, %s276
      %s291 = sphi 0, %s277
      %s295 = sphi 0, %s295
      %s297 = sphi 0, %s295
      %s298 = sphi 0, %s297
      %s312 = sphi 0, %s298
      %s316 = sphi 0, %s316
      %s318 = sphi 0, %s316
      %s319 = sphi 0, %s318
      %s333 = sphi 0, %s319
      %s337 = sphi 0, %s337
      %s339 = sphi 0, %s337
      %s340 = sphi 0, %s339
      %s354 = sphi 0, %s340
      %s358 = sphi 0, %s358
      %s360 = sphi 0, %s358
      %s361 = sphi 0, %s360
      %s375 = sphi 0, %s361
      %s381 = sphi 0, %s383
      %s384 = sphi 0, %s381
      %s385 = sphi 0, %s384
      %s401 = sphi 0, %s385
    $region4: #{tpu_custom_call.1} parent=1 // loop_header_branch
      %42 = sbr.rel (%p40) target = $region8
    $region5: #{tpu_custom_call.1} parent=1 // loop_body
      %s44 = ssub.s32 %s39, 1
      %s45 = ssub.s32 %s39, 2
      %s52 = sadd.s32 1, %s47
      %p53 = scmp.ge.s32.totalorder %s52, 1
      %s54 = scalar_select %p53, 0, %s52
      %s55 = sadd.s32 1, %s46
      %s56 = scalar_select %p53, %s55, %s46
      %p57 = scmp.ge.s32.totalorder %s56, 2
      %s58 = scalar_select %p57, 0, %s56
      %s59 = ssub.s32 %s46, %s58
      %p60 = scmp.eq.s32.totalorder %s59, 0
      %s62 = sadd.s32 %s61, 1
      %s63 = scalar_select %p60, %s61, %s62
      %p66 = pneg %p60
      %p67 = scmp.eq.s32.totalorder %s39, 1
      %p68 = por %p66, %p67
      %p69 = scmp.ne.s32.totalorder %s61, %s64
      %p70 = scmp.eq.s32.totalorder %s39, 0
      %p71 = por %p69, %p70
      %p72 = scmp.ne.s32.totalorder %s61, %s64
      %p73 = scmp.eq.s32.totalorder %s44, 1
      %p74 = por %p72, %p73
      %p75 = scmp.ne.s32.totalorder %s64, %s65
      %p76 = scmp.eq.s32.totalorder %s44, 0
      %p77 = por %p75, %p76
      %p78 = scmp.ne.s32.totalorder %s64, %s65
      %p79 = scmp.eq.s32.totalorder %s45, 1
      %p80 = por %p78, %p79
      %p82 = scmp.ne.s32.totalorder %s65, %s81
      %p83 = scmp.eq.s32.totalorder %s45, 0
      %p84 = por %p82, %p83
      %s85 = ssub.s32 %s46, %s58
      %s86 = ssub.s32 %s47, %s54
      %s87 = sor.u32 %s85, %s86
      %p88 = scmp.eq.s32.totalorder %s87, 0
      %s90 = sadd.s32 %s89, 1
      %s91 = scalar_select %p88, %s89, %s90
      %p94 = pneg %p88
      %p95 = scmp.eq.s32.totalorder %s39, 1
      %p96 = por %p94, %p95
      %p97 = scmp.ne.s32.totalorder %s89, %s92
      %p98 = scmp.eq.s32.totalorder %s39, 0
      %p99 = por %p97, %p98
      %p100 = scmp.ne.s32.totalorder %s89, %s92
      %p101 = scmp.eq.s32.totalorder %s44, 1
      %p102 = por %p100, %p101
      %p103 = scmp.ne.s32.totalorder %s92, %s93
      %p104 = scmp.eq.s32.totalorder %s44, 0
      %p105 = por %p103, %p104
      %p106 = scmp.ne.s32.totalorder %s92, %s93
      %p107 = scmp.eq.s32.totalorder %s45, 1
      %p108 = por %p106, %p107
      %p110 = scmp.ne.s32.totalorder %s93, %s109
      %p111 = scmp.eq.s32.totalorder %s45, 0
      %p112 = por %p110, %p111
      %s113 = ssub.s32 %s46, %s58
      %s114 = ssub.s32 %s47, %s54
      %s115 = sor.u32 %s113, %s114
      %p116 = scmp.eq.s32.totalorder %s115, 0
      %s118 = sadd.s32 %s117, 1
      %s119 = scalar_select %p116, %s117, %s118
      %p122 = pneg %p116
      %p123 = scmp.eq.s32.totalorder %s39, 1
      %p124 = por %p122, %p123
      %p125 = scmp.ne.s32.totalorder %s117, %s120
      %p126 = scmp.eq.s32.totalorder %s39, 0
      %p127 = por %p125, %p126
      %p128 = scmp.ne.s32.totalorder %s117, %s120
      %p129 = scmp.eq.s32.totalorder %s44, 1
      %p130 = por %p128, %p129
      %p131 = scmp.ne.s32.totalorder %s120, %s121
      %p132 = scmp.eq.s32.totalorder %s44, 0
      %p133 = por %p131, %p132
      %p134 = scmp.ne.s32.totalorder %s120, %s121
      %p135 = scmp.eq.s32.totalorder %s45, 1
      %p136 = por %p134, %p135
      %p138 = scmp.ne.s32.totalorder %s121, %s137
      %p139 = scmp.eq.s32.totalorder %s45, 0
      %p140 = por %p138, %p139
      %s141 = ssub.s32 %s46, %s58
      %s142 = ssub.s32 %s47, %s54
      %s143 = sor.u32 %s141, %s142
      %p144 = scmp.eq.s32.totalorder %s143, 0
      %s146 = sadd.s32 %s145, 1
      %s147 = scalar_select %p144, %s145, %s146
      %p150 = pneg %p144
      %p151 = scmp.eq.s32.totalorder %s39, 1
      %p152 = por %p150, %p151
      %p153 = scmp.ne.s32.totalorder %s145, %s148
      %p154 = scmp.eq.s32.totalorder %s39, 0
      %p155 = por %p153, %p154
      %p156 = scmp.ne.s32.totalorder %s145, %s148
      %p157 = scmp.eq.s32.totalorder %s44, 1
      %p158 = por %p156, %p157
      %p159 = scmp.ne.s32.totalorder %s148, %s149
      %p160 = scmp.eq.s32.totalorder %s44, 0
      %p161 = por %p159, %p160
      %p162 = scmp.ne.s32.totalorder %s148, %s149
      %p163 = scmp.eq.s32.totalorder %s45, 1
      %p164 = por %p162, %p163
      %p166 = scmp.ne.s32.totalorder %s149, %s165
      %p167 = scmp.eq.s32.totalorder %s45, 0
      %p168 = por %p166, %p167
      %s170 = sadd.s32 %s169, 1
      %p173 = scmp.eq.s32.totalorder %s39, 1
      %p174 = scmp.ne.s32.totalorder %s169, %s171
      %p175 = scmp.eq.s32.totalorder %s39, 0
      %p176 = por %p174, %p175
      %p177 = scmp.ne.s32.totalorder %s169, %s171
      %p178 = scmp.eq.s32.totalorder %s44, 1
      %p179 = por %p177, %p178
      %p180 = scmp.ne.s32.totalorder %s171, %s172
      %p181 = scmp.eq.s32.totalorder %s44, 0
      %p182 = por %p180, %p181
      %p183 = scmp.ne.s32.totalorder %s171, %s172
      %p184 = scmp.eq.s32.totalorder %s45, 1
      %p185 = por %p183, %p184
      %p187 = scmp.ne.s32.totalorder %s172, %s186
      %p188 = scmp.eq.s32.totalorder %s45, 0
      %p189 = por %p187, %p188
      %s191 = sadd.s32 %s190, 1
      %p194 = scmp.eq.s32.totalorder %s39, 1
      %p195 = scmp.ne.s32.totalorder %s190, %s192
      %p196 = scmp.eq.s32.totalorder %s39, 0
      %p197 = por %p195, %p196
      %p198 = scmp.ne.s32.totalorder %s190, %s192
      %p199 = scmp.eq.s32.totalorder %s44, 1
      %p200 = por %p198, %p199
      %p201 = scmp.ne.s32.totalorder %s192, %s193
      %p202 = scmp.eq.s32.totalorder %s44, 0
      %p203 = por %p201, %p202
      %p204 = scmp.ne.s32.totalorder %s192, %s193
      %p205 = scmp.eq.s32.totalorder %s45, 1
      %p206 = por %p204, %p205
      %p208 = scmp.ne.s32.totalorder %s193, %s207
      %p209 = scmp.eq.s32.totalorder %s45, 0
      %p210 = por %p208, %p209
      %s212 = sadd.s32 %s211, 1
      %p215 = scmp.eq.s32.totalorder %s39, 1
      %p216 = scmp.ne.s32.totalorder %s211, %s213
      %p217 = scmp.eq.s32.totalorder %s39, 0
      %p218 = por %p216, %p217
      %p219 = scmp.ne.s32.totalorder %s211, %s213
      %p220 = scmp.eq.s32.totalorder %s44, 1
      %p221 = por %p219, %p220
      %p222 = scmp.ne.s32.totalorder %s213, %s214
      %p223 = scmp.eq.s32.totalorder %s44, 0
      %p224 = por %p222, %p223
      %p225 = scmp.ne.s32.totalorder %s213, %s214
      %p226 = scmp.eq.s32.totalorder %s45, 1
      %p227 = por %p225, %p226
      %p229 = scmp.ne.s32.totalorder %s214, %s228
      %p230 = scmp.eq.s32.totalorder %s45, 0
      %p231 = por %p229, %p230
      %s233 = sadd.s32 %s232, 1
      %p236 = scmp.eq.s32.totalorder %s39, 1
      %p237 = scmp.ne.s32.totalorder %s232, %s234
      %p238 = scmp.eq.s32.totalorder %s39, 0
      %p239 = por %p237, %p238
      %p240 = scmp.ne.s32.totalorder %s232, %s234
      %p241 = scmp.eq.s32.totalorder %s44, 1
      %p242 = por %p240, %p241
      %p243 = scmp.ne.s32.totalorder %s234, %s235
      %p244 = scmp.eq.s32.totalorder %s44, 0
      %p245 = por %p243, %p244
      %p246 = scmp.ne.s32.totalorder %s234, %s235
      %p247 = scmp.eq.s32.totalorder %s45, 1
      %p248 = por %p246, %p247
      %p250 = scmp.ne.s32.totalorder %s235, %s249
      %p251 = scmp.eq.s32.totalorder %s45, 0
      %p252 = por %p250, %p251
      %s254 = sadd.s32 %s253, 1
      %p257 = scmp.eq.s32.totalorder %s39, 1
      %p258 = scmp.ne.s32.totalorder %s253, %s255
      %p259 = scmp.eq.s32.totalorder %s39, 0
      %p260 = por %p258, %p259
      %p261 = scmp.ne.s32.totalorder %s253, %s255
      %p262 = scmp.eq.s32.totalorder %s44, 1
      %p263 = por %p261, %p262
      %p264 = scmp.ne.s32.totalorder %s255, %s256
      %p265 = scmp.eq.s32.totalorder %s44, 0
      %p266 = por %p264, %p265
      %p267 = scmp.ne.s32.totalorder %s255, %s256
      %p268 = scmp.eq.s32.totalorder %s45, 1
      %p269 = por %p267, %p268
      %p271 = scmp.ne.s32.totalorder %s256, %s270
      %p272 = scmp.eq.s32.totalorder %s45, 0
      %p273 = por %p271, %p272
      %s275 = sadd.s32 %s274, 1
      %p278 = scmp.eq.s32.totalorder %s39, 1
      %p279 = scmp.ne.s32.totalorder %s274, %s276
      %p280 = scmp.eq.s32.totalorder %s39, 0
      %p281 = por %p279, %p280
      %p282 = scmp.ne.s32.totalorder %s274, %s276
      %p283 = scmp.eq.s32.totalorder %s44, 1
      %p284 = por %p282, %p283
      %p285 = scmp.ne.s32.totalorder %s276, %s277
      %p286 = scmp.eq.s32.totalorder %s44, 0
      %p287 = por %p285, %p286
      %p288 = scmp.ne.s32.totalorder %s276, %s277
      %p289 = scmp.eq.s32.totalorder %s45, 1
      %p290 = por %p288, %p289
      %p292 = scmp.ne.s32.totalorder %s277, %s291
      %p293 = scmp.eq.s32.totalorder %s45, 0
      %p294 = por %p292, %p293
      %s296 = sadd.s32 %s295, 1
      %p299 = scmp.eq.s32.totalorder %s39, 1
      %p300 = scmp.ne.s32.totalorder %s295, %s297
      %p301 = scmp.eq.s32.totalorder %s39, 0
      %p302 = por %p300, %p301
      %p303 = scmp.ne.s32.totalorder %s295, %s297
      %p304 = scmp.eq.s32.totalorder %s44, 1
      %p305 = por %p303, %p304
      %p306 = scmp.ne.s32.totalorder %s297, %s298
      %p307 = scmp.eq.s32.totalorder %s44, 0
      %p308 = por %p306, %p307
      %p309 = scmp.ne.s32.totalorder %s297, %s298
      %p310 = scmp.eq.s32.totalorder %s45, 1
      %p311 = por %p309, %p310
      %p313 = scmp.ne.s32.totalorder %s298, %s312
      %p314 = scmp.eq.s32.totalorder %s45, 0
      %p315 = por %p313, %p314
      %s317 = sadd.s32 %s316, 1
      %p320 = scmp.eq.s32.totalorder %s39, 1
      %p321 = scmp.ne.s32.totalorder %s316, %s318
      %p322 = scmp.eq.s32.totalorder %s39, 0
      %p323 = por %p321, %p322
      %p324 = scmp.ne.s32.totalorder %s316, %s318
      %p325 = scmp.eq.s32.totalorder %s44, 1
      %p326 = por %p324, %p325
      %p327 = scmp.ne.s32.totalorder %s318, %s319
      %p328 = scmp.eq.s32.totalorder %s44, 0
      %p329 = por %p327, %p328
      %p330 = scmp.ne.s32.totalorder %s318, %s319
      %p331 = scmp.eq.s32.totalorder %s45, 1
      %p332 = por %p330, %p331
      %p334 = scmp.ne.s32.totalorder %s319, %s333
      %p335 = scmp.eq.s32.totalorder %s45, 0
      %p336 = por %p334, %p335
      %s338 = sadd.s32 %s337, 1
      %p341 = scmp.eq.s32.totalorder %s39, 1
      %p342 = scmp.ne.s32.totalorder %s337, %s339
      %p343 = scmp.eq.s32.totalorder %s39, 0
      %p344 = por %p342, %p343
      %p345 = scmp.ne.s32.totalorder %s337, %s339
      %p346 = scmp.eq.s32.totalorder %s44, 1
      %p347 = por %p345, %p346
      %p348 = scmp.ne.s32.totalorder %s339, %s340
      %p349 = scmp.eq.s32.totalorder %s44, 0
      %p350 = por %p348, %p349
      %p351 = scmp.ne.s32.totalorder %s339, %s340
      %p352 = scmp.eq.s32.totalorder %s45, 1
      %p353 = por %p351, %p352
      %p355 = scmp.ne.s32.totalorder %s340, %s354
      %p356 = scmp.eq.s32.totalorder %s45, 0
      %p357 = por %p355, %p356
      %s359 = sadd.s32 %s358, 1
      %p362 = scmp.eq.s32.totalorder %s39, 1
      %p363 = scmp.ne.s32.totalorder %s358, %s360
      %p364 = scmp.eq.s32.totalorder %s39, 0
      %p365 = por %p363, %p364
      %p366 = scmp.ne.s32.totalorder %s358, %s360
      %p367 = scmp.eq.s32.totalorder %s44, 1
      %p368 = por %p366, %p367
      %p369 = scmp.ne.s32.totalorder %s360, %s361
      %p370 = scmp.eq.s32.totalorder %s44, 0
      %p371 = por %p369, %p370
      %p372 = scmp.ne.s32.totalorder %s360, %s361
      %p373 = scmp.eq.s32.totalorder %s45, 1
      %p374 = por %p372, %p373
      %p376 = scmp.ne.s32.totalorder %s361, %s375
      %p377 = scmp.eq.s32.totalorder %s45, 0
      %p378 = por %p376, %p377
      %s379 = ssub.s32 %s46, %s58
      %p380 = scmp.eq.s32.totalorder %s379, 0
      %s382 = sadd.s32 %s381, 1
      %s383 = scalar_select %p380, %s381, %s382
      %p386 = pneg %p380
      %p387 = scmp.eq.s32.totalorder %s39, 1
      %p388 = por %p386, %p387
      %p389 = scmp.ne.s32.totalorder %s381, %s384
      %p390 = scmp.eq.s32.totalorder %s39, 0
      %p391 = por %p389, %p390
      %p392 = scmp.ne.s32.totalorder %s381, %s384
      %p393 = scmp.eq.s32.totalorder %s44, 1
      %p394 = por %p392, %p393
      %p395 = scmp.ne.s32.totalorder %s384, %s385
      %p396 = scmp.eq.s32.totalorder %s44, 0
      %p397 = por %p395, %p396
      %p398 = scmp.ne.s32.totalorder %s384, %s385
      %p399 = scmp.eq.s32.totalorder %s45, 1
      %p400 = por %p398, %p399
      %p402 = scmp.ne.s32.totalorder %s385, %s401
      %p403 = scmp.eq.s32.totalorder %s45, 0
      %p404 = por %p402, %p403
      %p405 = scmp.le.s32.totalorder 1, %s39
      %p406 = scmp.lt.s32.totalorder %s39, 3
      %p407 = pnand %p405, %p406
      %p408 = pneg %p407
      // Predicated region
      $region9: #{tpu_custom_call.1} parent=5 // pred_check
        _
      $region10: #{tpu_custom_call.1} parent=5 // pred_check_branch
        %410 = sbr.rel (%p407) target = $region12
      $region11: #{tpu_custom_call.1} parent=5 // pred_region
        %s411 = ssub.s32 %s39, 1
        // Predicated region
        $region13: #{tpu_custom_call.1} parent=11 // pred_check
          %p412 = pneg %p182
        $region14: #{tpu_custom_call.1} parent=11 // pred_check_branch
          %414 = sbr.rel (%p412) target = $region16
        $region15: #{tpu_custom_call.1} parent=11 // pred_region
          %s416 = ssub.s32 512, 512
          %417 = vsyncadd [#allocation16], %s416
          %s418 = sshll.u32 [#allocation17], 4
          %s419 = int_to_ptr.vmem [resolvable:$true] %s418
          %424 = dma.hbm_to_vmem [thread:$0]  %s5, 512, %s419, [#allocation16], 128, 128, 8
        $region16: #{tpu_custom_call.1} parent=11 // pred_fallthru
          _
        // Predicated region
        $region17: #{tpu_custom_call.1} parent=11 // pred_check
          %p425 = pneg %p203
        $region18: #{tpu_custom_call.1} parent=11 // pred_check_branch
          %427 = sbr.rel (%p425) target = $region20
        $region19: #{tpu_custom_call.1} parent=11 // pred_region
          _
        $region20: #{tpu_custom_call.1} parent=11 // pred_fallthru
          _
        // Predicated region
        $region21: #{tpu_custom_call.1} parent=11 // pred_check
          %p428 = pneg %p224
        $region22: #{tpu_custom_call.1} parent=11 // pred_check_branch
          %430 = sbr.rel (%p428) target = $region24
        $region23: #{tpu_custom_call.1} parent=11 // pred_region
          %s432 = ssub.s32 512, 512
          %433 = vsyncadd [#allocation19], %s432
          %s434 = sshll.u32 [#allocation18], 4
          %s435 = int_to_ptr.vmem [resolvable:$true] %s434
          %440 = dma.hbm_to_vmem [thread:$0]  %s7, 512, %s435, [#allocation19], 128, 128, 8
        $region24: #{tpu_custom_call.1} parent=11 // pred_fallthru
          _
        // Predicated region
        $region25: #{tpu_custom_call.1} parent=11 // pred_check
          %p441 = pneg %p245
        $region26: #{tpu_custom_call.1} parent=11 // pred_check_branch
          %443 = sbr.rel (%p441) target = $region28
        $region27: #{tpu_custom_call.1} parent=11 // pred_region
          _
        $region28: #{tpu_custom_call.1} parent=11 // pred_fallthru
          _
        // Predicated region
        $region29: #{tpu_custom_call.1} parent=11 // pred_check
          %p444 = pneg %p266
        $region30: #{tpu_custom_call.1} parent=11 // pred_check_branch
          %446 = sbr.rel (%p444) target = $region32
        $region31: #{tpu_custom_call.1} parent=11 // pred_region
          %s448 = ssub.s32 512, 512
          %449 = vsyncadd [#allocation19], %s448
          %s450 = sshll.u32 [#allocation20], 4
          %s451 = int_to_ptr.vmem [resolvable:$true] %s450
          %456 = dma.hbm_to_vmem [thread:$0]  %s9, 512, %s451, [#allocation19], 128, 128, 8
        $region32: #{tpu_custom_call.1} parent=11 // pred_fallthru
          _
        // Predicated region
        $region33: #{tpu_custom_call.1} parent=11 // pred_check
          %p457 = pneg %p287
        $region34: #{tpu_custom_call.1} parent=11 // pred_check_branch
          %459 = sbr.rel (%p457) target = $region36
        $region35: #{tpu_custom_call.1} parent=11 // pred_region
          _
        $region36: #{tpu_custom_call.1} parent=11 // pred_fallthru
          _
        // Predicated region
        $region37: #{tpu_custom_call.1} parent=11 // pred_check
          %p460 = pneg %p308
        $region38: #{tpu_custom_call.1} parent=11 // pred_check_branch
          %462 = sbr.rel (%p460) target = $region40
        $region39: #{tpu_custom_call.1} parent=11 // pred_region
          %s464 = ssub.s32 512, 512
          %465 = vsyncadd [#allocation22], %s464
          %s466 = sshll.u32 [#allocation21], 4
          %s467 = int_to_ptr.vmem [resolvable:$true] %s466
          %472 = dma.hbm_to_vmem [thread:$0]  %s11, 512, %s467, [#allocation22], 128, 128, 8
        $region40: #{tpu_custom_call.1} parent=11 // pred_fallthru
          _
        // Predicated region
        $region41: #{tpu_custom_call.1} parent=11 // pred_check
          %p473 = pneg %p329
        $region42: #{tpu_custom_call.1} parent=11 // pred_check_branch
          %475 = sbr.rel (%p473) target = $region44
        $region43: #{tpu_custom_call.1} parent=11 // pred_region
          _
        $region44: #{tpu_custom_call.1} parent=11 // pred_fallthru
          _
        // Predicated region
        $region45: #{tpu_custom_call.1} parent=11 // pred_check
          %p476 = pneg %p350
        $region46: #{tpu_custom_call.1} parent=11 // pred_check_branch
          %478 = sbr.rel (%p476) target = $region48
        $region47: #{tpu_custom_call.1} parent=11 // pred_region
          _
        $region48: #{tpu_custom_call.1} parent=11 // pred_fallthru
          _
        // Predicated region
        $region49: #{tpu_custom_call.1} parent=11 // pred_check
          %p479 = pneg %p371
        $region50: #{tpu_custom_call.1} parent=11 // pred_check_branch
          %481 = sbr.rel (%p479) target = $region52
        $region51: #{tpu_custom_call.1} parent=11 // pred_region
          _
        $region52: #{tpu_custom_call.1} parent=11 // pred_fallthru
          _
      $region12: #{tpu_custom_call.1} parent=5 // pred_fallthru
        _
      %p482 = scmp.lt.s32.totalorder %s39, 2
      // Predicated region
      $region53: #{tpu_custom_call.1} parent=5 // pred_check
        %p483 = pneg %p482
      $region54: #{tpu_custom_call.1} parent=5 // pred_check_branch
        %485 = sbr.rel (%p483) target = $region56
      $region55: #{tpu_custom_call.1} parent=5 // pred_region
        // Predicated region
        $region57: #{tpu_custom_call.1} parent=55 // pred_check
          %p486 = pneg %p71
        $region58: #{tpu_custom_call.1} parent=55 // pred_check_branch
          %488 = sbr.rel (%p486) target = $region60
        $region59: #{tpu_custom_call.1} parent=55 // pred_region
          %s489 = sand.u32 %s61, 1
          %s490 = scalar_lea.sflag [#allocation10], %s489
          %s491 = sand.u32 %s61, 1
          %s492 = smul.addr %s491, 8
          %s493 = scalar_lea.vmem [#allocation9], %s492
          %s495 = ssub.s32 128, 128
          %496 = vsyncadd %s490, %s495
          %s497 = smul.addr %s46, 128
          %s498 = scalar_lea.hbm %s1, %s497
          %s500 = sshll.u32 %s493, 4
          %s501 = int_to_ptr.vmem [resolvable:$true] %s500
          %503 = dma.hbm_to_vmem [thread:$0]  %s498, 128, %s501, %s490
        $region60: #{tpu_custom_call.1} parent=55 // pred_fallthru
          _
        // Predicated region
        $region61: #{tpu_custom_call.1} parent=55 // pred_check
          %p504 = pneg %p99
        $region62: #{tpu_custom_call.1} parent=55 // pred_check_branch
          %506 = sbr.rel (%p504) target = $region64
        $region63: #{tpu_custom_call.1} parent=55 // pred_region
          %s507 = sand.u32 %s39, 1
          %s508 = scalar_lea.sflag [#allocation13], %s507
          %s509 = sand.u32 %s89, 1
          %s510 = smul.addr %s509, 8
          %s511 = scalar_lea.vmem [#allocation12], %s510
          %s513 = ssub.s32 128, 128
          %514 = vsyncadd %s508, %s513
          %s515 = sadd.s32 %s47, %s46
          %s516 = smul.addr %s515, 128
          %s517 = scalar_lea.hbm %s2, %s516
          %s519 = sshll.u32 %s511, 4
          %s520 = int_to_ptr.vmem [resolvable:$true] %s519
          %522 = dma.hbm_to_vmem [thread:$0]  %s517, 128, %s520, %s508
        $region64: #{tpu_custom_call.1} parent=55 // pred_fallthru
          _
        // Predicated region
        $region65: #{tpu_custom_call.1} parent=55 // pred_check
          %p523 = pneg %p127
        $region66: #{tpu_custom_call.1} parent=55 // pred_check_branch
          %525 = sbr.rel (%p523) target = $region68
        $region67: #{tpu_custom_call.1} parent=55 // pred_region
          %s526 = sand.u32 %s39, 1
          %s527 = scalar_lea.sflag [#allocation13], %s526
          %s528 = sand.u32 %s117, 1
          %s529 = smul.addr %s528, 8
          %s530 = scalar_lea.vmem [#allocation14], %s529
          %s532 = ssub.s32 128, 128
          %533 = vsyncadd %s527, %s532
          %s534 = sadd.s32 %s47, %s46
          %s535 = smul.addr %s534, 128
          %s536 = scalar_lea.hbm %s3, %s535
          %s538 = sshll.u32 %s530, 4
          %s539 = int_to_ptr.vmem [resolvable:$true] %s538
          %541 = dma.hbm_to_vmem [thread:$0]  %s536, 128, %s539, %s527
        $region68: #{tpu_custom_call.1} parent=55 // pred_fallthru
          _
        // Predicated region
        $region69: #{tpu_custom_call.1} parent=55 // pred_check
          %p542 = pneg %p155
        $region70: #{tpu_custom_call.1} parent=55 // pred_check_branch
          %544 = sbr.rel (%p542) target = $region72
        $region71: #{tpu_custom_call.1} parent=55 // pred_region
          %s545 = sand.u32 %s39, 1
          %s546 = scalar_lea.sflag [#allocation16], %s545
          %s547 = sand.u32 %s145, 1
          %s548 = smul.addr %s547, 64
          %s549 = scalar_lea.vmem [#allocation15], %s548
          %s551 = ssub.s32 1024, 1024
          %552 = vsyncadd %s546, %s551
          %s553 = smul.addr %s46, 8
          %s554 = sadd.s32 %s47, %s553
          %s555 = smul.addr %s554, 128
          %s556 = scalar_lea.hbm %s4, %s555
          %s557 = sshll.u32 %s549, 4
          %s558 = int_to_ptr.vmem [resolvable:$true] %s557
          %563 = dma.hbm_to_vmem [thread:$0]  %s556, 1024, %s558, %s546, 128, 128, 8
        $region72: #{tpu_custom_call.1} parent=55 // pred_fallthru
          _
      $region56: #{tpu_custom_call.1} parent=5 // pred_fallthru
        _
      %p564 = scmp.le.s32.totalorder 1, %s39
      %p565 = scmp.lt.s32.totalorder %s39, 3
      %p566 = pnand %p564, %p565
      %p567 = pneg %p566
      // Predicated region
      $region73: #{tpu_custom_call.1} parent=5 // pred_check
        _
      $region74: #{tpu_custom_call.1} parent=5 // pred_check_branch
        %569 = sbr.rel (%p566) target = $region76
      $region75: #{tpu_custom_call.1} parent=5 // pred_region
        %s570 = ssub.s32 %s39, 1
        %s571 = sand.u32 %s64, 1
        %s572 = scalar_lea.sflag [#allocation10], %s571
        %s573 = sand.u32 %s64, 1
        %s574 = smul.addr %s573, 8
        %s575 = scalar_lea.vmem [#allocation9], %s574
        // Predicated region
        $region77: #{tpu_custom_call.1} parent=75 // pred_check
          %p576 = pneg %p77
        $region78: #{tpu_custom_call.1} parent=75 // pred_check_branch
          %578 = sbr.rel (%p576) target = $region80
        $region79: #{tpu_custom_call.1} parent=75 // pred_region
          %579 = dma.done %s572, 128
        $region80: #{tpu_custom_call.1} parent=75 // pred_fallthru
          _
        %s580 = sand.u32 %s44, 1
        %s581 = scalar_lea.sflag [#allocation13], %s580
        %s582 = sand.u32 %s92, 1
        %s583 = smul.addr %s582, 8
        %s584 = scalar_lea.vmem [#allocation12], %s583
        // Predicated region
        $region81: #{tpu_custom_call.1} parent=75 // pred_check
          %p585 = pneg %p105
        $region82: #{tpu_custom_call.1} parent=75 // pred_check_branch
          %587 = sbr.rel (%p585) target = $region84
        $region83: #{tpu_custom_call.1} parent=75 // pred_region
          %588 = dma.done %s581, 128
        $region84: #{tpu_custom_call.1} parent=75 // pred_fallthru
          _
        %s589 = sand.u32 %s44, 1
        %s590 = scalar_lea.sflag [#allocation13], %s589
        %s591 = sand.u32 %s120, 1
        %s592 = smul.addr %s591, 8
        %s593 = scalar_lea.vmem [#allocation14], %s592
        // Predicated region
        $region85: #{tpu_custom_call.1} parent=75 // pred_check
          %p594 = pneg %p133
        $region86: #{tpu_custom_call.1} parent=75 // pred_check_branch
          %596 = sbr.rel (%p594) target = $region88
        $region87: #{tpu_custom_call.1} parent=75 // pred_region
          %597 = dma.done %s590, 128
        $region88: #{tpu_custom_call.1} parent=75 // pred_fallthru
          _
        %s598 = sand.u32 %s44, 1
        %s599 = scalar_lea.sflag [#allocation16], %s598
        %s600 = sand.u32 %s148, 1
        %s601 = smul.addr %s600, 64
        %s602 = scalar_lea.vmem [#allocation15], %s601
        // Predicated region
        $region89: #{tpu_custom_call.1} parent=75 // pred_check
          %p603 = pneg %p161
        $region90: #{tpu_custom_call.1} parent=75 // pred_check_branch
          %605 = sbr.rel (%p603) target = $region92
        $region91: #{tpu_custom_call.1} parent=75 // pred_region
          %606 = dma.done %s599, 1024
        $region92: #{tpu_custom_call.1} parent=75 // pred_fallthru
          _
        // Predicated region
        $region93: #{tpu_custom_call.1} parent=75 // pred_check
          %p607 = pneg %p182
        $region94: #{tpu_custom_call.1} parent=75 // pred_check_branch
          %609 = sbr.rel (%p607) target = $region96
        $region95: #{tpu_custom_call.1} parent=75 // pred_region
          %610 = dma.done [#allocation16], 512
        $region96: #{tpu_custom_call.1} parent=75 // pred_fallthru
          _
        // Predicated region
        $region97: #{tpu_custom_call.1} parent=75 // pred_check
          %p611 = pneg %p224
        $region98: #{tpu_custom_call.1} parent=75 // pred_check_branch
          %613 = sbr.rel (%p611) target = $region100
        $region99: #{tpu_custom_call.1} parent=75 // pred_region
          %614 = dma.done [#allocation19], 512
        $region100: #{tpu_custom_call.1} parent=75 // pred_fallthru
          _
        // Predicated region
        $region101: #{tpu_custom_call.1} parent=75 // pred_check
          %p615 = pneg %p266
        $region102: #{tpu_custom_call.1} parent=75 // pred_check_branch
          %617 = sbr.rel (%p615) target = $region104
        $region103: #{tpu_custom_call.1} parent=75 // pred_region
          %618 = dma.done [#allocation19], 512
        $region104: #{tpu_custom_call.1} parent=75 // pred_fallthru
          _
        // Predicated region
        $region105: #{tpu_custom_call.1} parent=75 // pred_check
          %p619 = pneg %p308
        $region106: #{tpu_custom_call.1} parent=75 // pred_check_branch
          %621 = sbr.rel (%p619) target = $region108
        $region107: #{tpu_custom_call.1} parent=75 // pred_region
          %622 = dma.done [#allocation22], 512
        $region108: #{tpu_custom_call.1} parent=75 // pred_fallthru
          _
        %s623 = sand.u32 %s64, 1
        %s624 = scalar_lea.sflag [#allocation10], %s623
        %s625 = sand.u32 %s64, 1
        %s626 = smul.addr %s625, 8
        %s627 = scalar_lea.vmem [#allocation9], %s626
        %p628 = pneg %p77
        %p629 = pneg %p74
        %s630 = sand.u32 %s44, 1
        %s631 = scalar_lea.sflag [#allocation13], %s630
        %s632 = sand.u32 %s92, 1
        %s633 = smul.addr %s632, 8
        %s634 = scalar_lea.vmem [#allocation12], %s633
        %p635 = pneg %p105
        %p636 = pneg %p102
        %s637 = sand.u32 %s44, 1
        %s638 = scalar_lea.sflag [#allocation13], %s637
        %s639 = sand.u32 %s120, 1
        %s640 = smul.addr %s639, 8
        %s641 = scalar_lea.vmem [#allocation14], %s640
        %p642 = pneg %p133
        %p643 = pneg %p130
        %s644 = sand.u32 %s44, 1
        %s645 = scalar_lea.sflag [#allocation16], %s644
        %s646 = sand.u32 %s148, 1
        %s647 = smul.addr %s646, 64
        %s648 = scalar_lea.vmem [#allocation15], %s647
        %p649 = pneg %p161
        %p650 = pneg %p158
        %p651 = pneg %p182
        %p652 = pneg %p179
        %p653 = pneg %p203
        %p654 = pneg %p200
        %p655 = pneg %p224
        %p656 = pneg %p221
        %p657 = pneg %p245
        %p658 = pneg %p242
        %p659 = pneg %p266
        %p660 = pneg %p263
        %p661 = pneg %p287
        %p662 = pneg %p284
        %p663 = pneg %p308
        %p664 = pneg %p305
        %p665 = pneg %p329
        %p666 = pneg %p326
        %p667 = pneg %p350
        %p668 = pneg %p347
        %p669 = pneg %p371
        %p670 = pneg %p368
        %p671 = pneg %p397
        %p672 = pneg %p394
        %s673 = sand.u32 %s384, 1
        %s674 = scalar_lea.sflag [#allocation11], %s673
        %s675 = sand.u32 %s384, 1
        %s676 = smul.addr %s675, 8
        %s677 = scalar_lea.vmem [#allocation23], %s676
        %v678 = vlaneseq
        %v679 = vand.u32 %v678, 127
        %v680 = vlaneseq
        %v681 = vshrl.u32 %v680, 7
        %v682 = vmul.u32 %v681, 8
        %vm683 = vcmp.ge.s32.totalorder %v679, %v682
        %v684 = vadd.s32 %v682, 8
        %vm685 = vcmp.lt.s32.totalorder %v679, %v684
        %vm686 = vmand %vm683, %vm685
        %v687 = vsel %vm686, 1.0, 0.0
        %v688 = vld [vmem:[%s575] sm:$0xff]
        %p689 = scmp.eq.s32.totalorder %s49, 0
        // Predicated region
        $region109: #{tpu_custom_call.1} parent=75 // pred_check
          %p690 = pneg %p689
        $region110: #{tpu_custom_call.1} parent=75 // pred_check_branch
          %692 = sbr.rel (%p690) target = $region112
        $region111: #{tpu_custom_call.1} parent=75 // pred_region
          %v693 = vld [vmem:[#allocation17] sm:$0xff]
          %v694 = vld [vmem:[#allocation17 + $0x8] sm:$0xff]
          %v695 = vld [vmem:[#allocation17 + $0x10] sm:$0xff]
          %v696 = vld [vmem:[#allocation17 + $0x18] sm:$0xff]
          %v697 = vld [vmem:[%s6] sm:$0x1]
          %v699 = vlaneseq
          %v700 = vshrl.u32 %v699, 7
          %v701 = vsub.s32 0, %v700
          %v702 = vrot.slane %v697, %v701
          %vm704 = vcmask 261120
          %v706 = vsel %vm704, %v688, 0
          %708 = vmatprep.subr.mxu0 0.0
          %709 = vmatpush1.msra.mxu0 0.0
          %710 = vmatprep.subr.mxu0 0.0
          %711 = vmatpush1.msra.mxu0 0.0
          %712 = vmatprep.subr.mxu0 0.0
          %713 = vmatpush1.msra.mxu0 0.0
          %714 = vmatprep.subr.mxu0 0.0
          %715 = vmatpush1.msra.mxu0 0.0
          %716 = vmatprep.subr.mxu0 0.0
          %717 = vmatpush1.msra.mxu0 0.0
          %718 = vmatprep.subr.mxu0 0.0
          %719 = vmatpush1.msra.mxu0 0.0
          %720 = vmatprep.subr.mxu0 0.0
          %721 = vmatpush1.msra.mxu0 0.0
          %722 = vmatprep.subr.mxu0 0.0
          %723 = vmatpush1.msra.mxu0 0.0
          %724 = vmatprep.subr.mxu0 0.0
          %725 = vmatpush1.msra.mxu0 0.0
          %726 = vmatprep.subr.mxu0 0.0
          %727 = vmatpush1.msra.mxu0 0.0
          %728 = vmatprep.subr.mxu0 0.0
          %729 = vmatpush1.msra.mxu0 0.0
          %730 = vmatprep.subr.mxu0 0.0
          %731 = vmatpush1.msra.mxu0 0.0
          %732 = vmatprep.subr.mxu0 0.0
          %733 = vmatpush1.msra.mxu0 %v696
          %734 = vmatprep.subr.mxu0 0.0
          %735 = vmatpush1.msra.mxu0 %v695
          %736 = vmatprep.subr.mxu0 0.0
          %737 = vmatpush1.msra.mxu0 %v694
          %738 = vmatprep.subr.mxu0 0.0
          %739 = vmatpush1.msra.mxu0 %v693
          %740 = vmatprep.subr.mxu0 0.0
          %741 = vmatpush2.msra.mxu0 0.0
          %742 = vmatprep.subr.mxu0 0.0
          %743 = vmatpush2.msra.mxu0 0.0
          %744 = vmatprep.subr.mxu0 0.0
          %745 = vmatpush2.msra.mxu0 0.0
          %746 = vmatprep.subr.mxu0 0.0
          %747 = vmatpush2.msra.mxu0 0.0
          %748 = vmatprep.subr.mxu0 0.0
          %749 = vmatpush2.msra.mxu0 0.0
          %750 = vmatprep.subr.mxu0 0.0
          %751 = vmatpush2.msra.mxu0 0.0
          %752 = vmatprep.subr.mxu0 0.0
          %753 = vmatpush2.msra.mxu0 0.0
          %754 = vmatprep.subr.mxu0 0.0
          %755 = vmatpush2.msra.mxu0 0.0
          %756 = vmatprep.subr.mxu0 0.0
          %757 = vmatpush2.msra.mxu0 0.0
          %758 = vmatprep.subr.mxu0 0.0
          %759 = vmatpush2.msra.mxu0 0.0
          %760 = vmatprep.subr.mxu0 0.0
          %761 = vmatpush2.msra.mxu0 0.0
          %762 = vmatprep.subr.mxu0 0.0
          %763 = vmatpush2.msra.mxu0 0.0
          %764 = vmatprep.subr.mxu0 0.0
          %765 = vmatpush2.msra.mxu0 0.0
          %766 = vmatprep.subr.mxu0 0.0
          %767 = vmatpush2.msra.mxu0 0.0
          %768 = vmatprep.subr.mxu0 0.0
          %769 = vmatpush2.msra.mxu0 0.0
          %770 = vmatprep.subr.mxu0 0.0
          %771 = vmatpush2.msra.mxu0 0.0
          %772 = vmatprep.mubr.f32.mxu0 0.0
          %773 = vmatmul.mubr.f32.gmra.mxu0 %v706
          %v774 = vpop.f32.mrf.mxu0
          %v775 = vadd.f32 %v702, %v774
          %v776 = vpop.f32.mrf.mxu0
          %777 = vdwg.mxu0
          %v778 = vld [vmem:[%s13] sm:$0x1]
          %v780 = vlaneseq
          %v781 = vshrl.u32 %v780, 7
          %v782 = vsub.s32 0, %v781
          %v783 = vrot.slane %v778, %v782
          %v785 = vadd.f32 %v775, %v783
          %v786 = vld [vmem:[%s14] sm:$0x1]
          %v788 = vlaneseq
          %v789 = vshrl.u32 %v788, 7
          %v790 = vsub.s32 0, %v789
          %v791 = vrot.slane %v786, %v790
          %v793 = vadd.f32 %v775, %v791
          %v795 = vcombine.high %v785, %v785
          %v797 = vunpack.c.l.s4 1966171168
          %v798 = vunpack.c.0.s8 %v797
          %v799 = vlaneseq
          %v800 = vshrl.u32 %v799, 7
          %v801 = vsub.s32 %v798, %v800
          %v802 = vrot.slane %v785, %v801
          %v804 = vunpack.c.l.s4 1966171168
          %v805 = vunpack.c.0.s8 %v804
          %v806 = vlaneseq
          %v807 = vshrl.u32 %v806, 7
          %v808 = vsub.s32 %v805, %v807
          %v809 = vrot.slane %v795, %v808
          %v810 = vcombine.high %v802, %v802
          %v811 = vcombine.high %v809, %v809
          %v813 = vunpack.c.l.s4 1966171168
          %v814 = vunpack.c.0.s8 %v813
          %v815 = vlaneseq
          %v816 = vshrl.u32 %v815, 7
          %v817 = vsub.s32 %v814, %v816
          %v818 = vrot.slane %v802, %v817
          %v820 = vunpack.c.l.s4 1966171168
          %v821 = vunpack.c.0.s8 %v820
          %v822 = vlaneseq
          %v823 = vshrl.u32 %v822, 7
          %v824 = vsub.s32 %v821, %v823
          %v825 = vrot.slane %v809, %v824
          %v827 = vunpack.c.l.s4 1966171168
          %v828 = vunpack.c.0.s8 %v827
          %v829 = vlaneseq
          %v830 = vshrl.u32 %v829, 7
          %v831 = vsub.s32 %v828, %v830
          %v832 = vrot.slane %v810, %v831
          %v834 = vunpack.c.l.s4 1966171168
          %v835 = vunpack.c.0.s8 %v834
          %v836 = vlaneseq
          %v837 = vshrl.u32 %v836, 7
          %v838 = vsub.s32 %v835, %v837
          %v839 = vrot.slane %v811, %v838
          %v840 = vcombine.high %v818, %v818
          %v841 = vcombine.high %v825, %v825
          %v842 = vcombine.high %v832, %v832
          %v843 = vcombine.high %v839, %v839
          %v844 = vlaneseq
          %v845 = vshrl.u32 %v844, 7
          %v846 = vsub.s32 0, %v845
          %v847 = vrot.slane %v818, %v846
          %v848 = vlaneseq
          %v849 = vshrl.u32 %v848, 7
          %v850 = vsub.s32 0, %v849
          %v851 = vrot.slane %v832, %v850
          %v852 = vlaneseq
          %v853 = vshrl.u32 %v852, 7
          %v854 = vsub.s32 0, %v853
          %v855 = vrot.slane %v840, %v854
          %v856 = vlaneseq
          %v857 = vshrl.u32 %v856, 7
          %v858 = vsub.s32 0, %v857
          %v859 = vrot.slane %v842, %v858
          %v860 = vlaneseq
          %v861 = vshrl.u32 %v860, 7
          %v862 = vsub.s32 0, %v861
          %v863 = vrot.slane %v825, %v862
          %v864 = vlaneseq
          %v865 = vshrl.u32 %v864, 7
          %v866 = vsub.s32 0, %v865
          %v867 = vrot.slane %v839, %v866
          %v868 = vlaneseq
          %v869 = vshrl.u32 %v868, 7
          %v870 = vsub.s32 0, %v869
          %v871 = vrot.slane %v841, %v870
          %v872 = vlaneseq
          %v873 = vshrl.u32 %v872, 7
          %v874 = vsub.s32 0, %v873
          %v875 = vrot.slane %v843, %v874
          %v884 = vmul.f32 %v847, %v687
          %v885 = vmul.f32 %v851, %v687
          %v886 = vmul.f32 %v855, %v687
          %v887 = vmul.f32 %v859, %v687
          %v888 = vmul.f32 %v863, %v687
          %v889 = vmul.f32 %v867, %v687
          %v890 = vmul.f32 %v871, %v687
          %v891 = vmul.f32 %v875, %v687
          %892 = vst.msk [vmem:[#allocation2] sm:$0xff] %vm704, %v884
          %893 = vst.msk [vmem:[#allocation2 + $0x8] sm:$0xff] %vm704, %v885
          %894 = vst.msk [vmem:[#allocation2 + $0x10] sm:$0xff] %vm704, %v886
          %895 = vst.msk [vmem:[#allocation2 + $0x18] sm:$0xff] %vm704, %v887
          %896 = vst.msk [vmem:[#allocation2 + $0x20] sm:$0xff] %vm704, %v888
          %897 = vst.msk [vmem:[#allocation2 + $0x28] sm:$0xff] %vm704, %v889
          %898 = vst.msk [vmem:[#allocation2 + $0x30] sm:$0xff] %vm704, %v890
          %899 = vst.msk [vmem:[#allocation2 + $0x38] sm:$0xff] %vm704, %v891
          %v901 = vcombine.high %v793, %v793
          %v903 = vunpack.c.l.s4 1966171168
          %v904 = vunpack.c.0.s8 %v903
          %v905 = vlaneseq
          %v906 = vshrl.u32 %v905, 7
          %v907 = vsub.s32 %v904, %v906
          %v908 = vrot.slane %v793, %v907
          %v910 = vunpack.c.l.s4 1966171168
          %v911 = vunpack.c.0.s8 %v910
          %v912 = vlaneseq
          %v913 = vshrl.u32 %v912, 7
          %v914 = vsub.s32 %v911, %v913
          %v915 = vrot.slane %v901, %v914
          %v916 = vcombine.high %v908, %v908
          %v917 = vcombine.high %v915, %v915
          %v919 = vunpack.c.l.s4 1966171168
          %v920 = vunpack.c.0.s8 %v919
          %v921 = vlaneseq
          %v922 = vshrl.u32 %v921, 7
          %v923 = vsub.s32 %v920, %v922
          %v924 = vrot.slane %v908, %v923
          %v926 = vunpack.c.l.s4 1966171168
          %v927 = vunpack.c.0.s8 %v926
          %v928 = vlaneseq
          %v929 = vshrl.u32 %v928, 7
          %v930 = vsub.s32 %v927, %v929
          %v931 = vrot.slane %v915, %v930
          %v933 = vunpack.c.l.s4 1966171168
          %v934 = vunpack.c.0.s8 %v933
          %v935 = vlaneseq
          %v936 = vshrl.u32 %v935, 7
          %v937 = vsub.s32 %v934, %v936
          %v938 = vrot.slane %v916, %v937
          %v940 = vunpack.c.l.s4 1966171168
          %v941 = vunpack.c.0.s8 %v940
          %v942 = vlaneseq
          %v943 = vshrl.u32 %v942, 7
          %v944 = vsub.s32 %v941, %v943
          %v945 = vrot.slane %v917, %v944
          %v946 = vcombine.high %v924, %v924
          %v947 = vcombine.high %v931, %v931
          %v948 = vcombine.high %v938, %v938
          %v949 = vcombine.high %v945, %v945
          %v950 = vlaneseq
          %v951 = vshrl.u32 %v950, 7
          %v952 = vsub.s32 0, %v951
          %v953 = vrot.slane %v924, %v952
          %v954 = vlaneseq
          %v955 = vshrl.u32 %v954, 7
          %v956 = vsub.s32 0, %v955
          %v957 = vrot.slane %v938, %v956
          %v958 = vlaneseq
          %v959 = vshrl.u32 %v958, 7
          %v960 = vsub.s32 0, %v959
          %v961 = vrot.slane %v946, %v960
          %v962 = vlaneseq
          %v963 = vshrl.u32 %v962, 7
          %v964 = vsub.s32 0, %v963
          %v965 = vrot.slane %v948, %v964
          %v966 = vlaneseq
          %v967 = vshrl.u32 %v966, 7
          %v968 = vsub.s32 0, %v967
          %v969 = vrot.slane %v931, %v968
          %v970 = vlaneseq
          %v971 = vshrl.u32 %v970, 7
          %v972 = vsub.s32 0, %v971
          %v973 = vrot.slane %v945, %v972
          %v974 = vlaneseq
          %v975 = vshrl.u32 %v974, 7
          %v976 = vsub.s32 0, %v975
          %v977 = vrot.slane %v947, %v976
          %v978 = vlaneseq
          %v979 = vshrl.u32 %v978, 7
          %v980 = vsub.s32 0, %v979
          %v981 = vrot.slane %v949, %v980
          %v990 = vmul.f32 %v953, %v687
          %v991 = vmul.f32 %v957, %v687
          %v992 = vmul.f32 %v961, %v687
          %v993 = vmul.f32 %v965, %v687
          %v994 = vmul.f32 %v969, %v687
          %v995 = vmul.f32 %v973, %v687
          %v996 = vmul.f32 %v977, %v687
          %v997 = vmul.f32 %v981, %v687
          %998 = vst.msk [vmem:[#allocation3] sm:$0xff] %vm704, %v990
          %999 = vst.msk [vmem:[#allocation3 + $0x8] sm:$0xff] %vm704, %v991
          %1000 = vst.msk [vmem:[#allocation3 + $0x10] sm:$0xff] %vm704, %v992
          %1001 = vst.msk [vmem:[#allocation3 + $0x18] sm:$0xff] %vm704, %v993
          %1002 = vst.msk [vmem:[#allocation3 + $0x20] sm:$0xff] %vm704, %v994
          %1003 = vst.msk [vmem:[#allocation3 + $0x28] sm:$0xff] %vm704, %v995
          %1004 = vst.msk [vmem:[#allocation3 + $0x30] sm:$0xff] %vm704, %v996
          %1005 = vst.msk [vmem:[#allocation3 + $0x38] sm:$0xff] %vm704, %v997
          %vm1006 = vcmask 64512
          %1007 = vst.msk [vmem:[#allocation4] sm:$0xff] %vm1006, -1e+15
          %1008 = vst.msk [vmem:[#allocation5] sm:$0xff] %vm1006, 0.0
          %1009 = vst.msk [vmem:[#allocation6] sm:$0xff] %vm704, 0.0
        $region112: #{tpu_custom_call.1} parent=75 // pred_fallthru
          _
        %v1010 = vld [vmem:[%s584] sm:$0xff]
        %v1011 = vld [vmem:[%s593] sm:$0xff]
        %v1012 = vld [vmem:[%s602] sm:$0xff]
        %v1013 = vld [vmem:[%s602 + $0x8] sm:$0xff]
        %v1014 = vld [vmem:[%s602 + $0x10] sm:$0xff]
        %v1015 = vld [vmem:[%s602 + $0x18] sm:$0xff]
        %v1016 = vld [vmem:[%s602 + $0x20] sm:$0xff]
        %v1017 = vld [vmem:[%s602 + $0x28] sm:$0xff]
        %v1018 = vld [vmem:[%s602 + $0x30] sm:$0xff]
        %v1019 = vld [vmem:[%s602 + $0x38] sm:$0xff]
        %v1020 = vld [vmem:[#allocation18] sm:$0xff]
        %v1021 = vld [vmem:[#allocation18 + $0x8] sm:$0xff]
        %v1022 = vld [vmem:[#allocation18 + $0x10] sm:$0xff]
        %v1023 = vld [vmem:[#allocation18 + $0x18] sm:$0xff]
        %v1024 = vld [vmem:[%s8] sm:$0x1]
        %v1026 = vlaneseq
        %v1027 = vshrl.u32 %v1026, 7
        %v1028 = vsub.s32 0, %v1027
        %v1029 = vrot.slane %v1024, %v1028
        %vm1031 = vcmask 261120
        %v1033 = vsel %vm1031, %v1010, 0
        %1035 = vmatprep.subr.mxu0 0.0
        %1036 = vmatpush1.msra.mxu0 0.0
        %1037 = vmatprep.subr.mxu0 0.0
        %1038 = vmatpush1.msra.mxu0 0.0
        %1039 = vmatprep.subr.mxu0 0.0
        %1040 = vmatpush1.msra.mxu0 0.0
        %1041 = vmatprep.subr.mxu0 0.0
        %1042 = vmatpush1.msra.mxu0 0.0
        %1043 = vmatprep.subr.mxu0 0.0
        %1044 = vmatpush1.msra.mxu0 0.0
        %1045 = vmatprep.subr.mxu0 0.0
        %1046 = vmatpush1.msra.mxu0 0.0
        %1047 = vmatprep.subr.mxu0 0.0
        %1048 = vmatpush1.msra.mxu0 0.0
        %1049 = vmatprep.subr.mxu0 0.0
        %1050 = vmatpush1.msra.mxu0 0.0
        %1051 = vmatprep.subr.mxu0 0.0
        %1052 = vmatpush1.msra.mxu0 0.0
        %1053 = vmatprep.subr.mxu0 0.0
        %1054 = vmatpush1.msra.mxu0 0.0
        %1055 = vmatprep.subr.mxu0 0.0
        %1056 = vmatpush1.msra.mxu0 0.0
        %1057 = vmatprep.subr.mxu0 0.0
        %1058 = vmatpush1.msra.mxu0 0.0
        %1059 = vmatprep.subr.mxu0 0.0
        %1060 = vmatpush1.msra.mxu0 %v1023
        %1061 = vmatprep.subr.mxu0 0.0
        %1062 = vmatpush1.msra.mxu0 %v1022
        %1063 = vmatprep.subr.mxu0 0.0
        %1064 = vmatpush1.msra.mxu0 %v1021
        %1065 = vmatprep.subr.mxu0 0.0
        %1066 = vmatpush1.msra.mxu0 %v1020
        %1067 = vmatprep.subr.mxu0 0.0
        %1068 = vmatpush2.msra.mxu0 0.0
        %1069 = vmatprep.subr.mxu0 0.0
        %1070 = vmatpush2.msra.mxu0 0.0
        %1071 = vmatprep.subr.mxu0 0.0
        %1072 = vmatpush2.msra.mxu0 0.0
        %1073 = vmatprep.subr.mxu0 0.0
        %1074 = vmatpush2.msra.mxu0 0.0
        %1075 = vmatprep.subr.mxu0 0.0
        %1076 = vmatpush2.msra.mxu0 0.0
        %1077 = vmatprep.subr.mxu0 0.0
        %1078 = vmatpush2.msra.mxu0 0.0
        %1079 = vmatprep.subr.mxu0 0.0
        %1080 = vmatpush2.msra.mxu0 0.0
        %1081 = vmatprep.subr.mxu0 0.0
        %1082 = vmatpush2.msra.mxu0 0.0
        %1083 = vmatprep.subr.mxu0 0.0
        %1084 = vmatpush2.msra.mxu0 0.0
        %1085 = vmatprep.subr.mxu0 0.0
        %1086 = vmatpush2.msra.mxu0 0.0
        %1087 = vmatprep.subr.mxu0 0.0
        %1088 = vmatpush2.msra.mxu0 0.0
        %1089 = vmatprep.subr.mxu0 0.0
        %1090 = vmatpush2.msra.mxu0 0.0
        %1091 = vmatprep.subr.mxu0 0.0
        %1092 = vmatpush2.msra.mxu0 0.0
        %1093 = vmatprep.subr.mxu0 0.0
        %1094 = vmatpush2.msra.mxu0 0.0
        %1095 = vmatprep.subr.mxu0 0.0
        %1096 = vmatpush2.msra.mxu0 0.0
        %1097 = vmatprep.subr.mxu0 0.0
        %1098 = vmatpush2.msra.mxu0 0.0
        %1099 = vmatprep.mubr.f32.mxu0 0.0
        %1100 = vmatmul.mubr.f32.gmra.mxu0 %v1033
        %v1101 = vpop.f32.mrf.mxu0
        %v1102 = vadd.f32 %v1029, %v1101
        %v1103 = vpop.f32.mrf.mxu0
        %1104 = vdwg.mxu0
        %v1105 = vld [vmem:[#allocation20] sm:$0xff]
        %v1106 = vld [vmem:[#allocation20 + $0x8] sm:$0xff]
        %v1107 = vld [vmem:[#allocation20 + $0x10] sm:$0xff]
        %v1108 = vld [vmem:[#allocation20 + $0x18] sm:$0xff]
        %v1109 = vld [vmem:[%s10] sm:$0x1]
        %v1111 = vlaneseq
        %v1112 = vshrl.u32 %v1111, 7
        %v1113 = vsub.s32 0, %v1112
        %v1114 = vrot.slane %v1109, %v1113
        %v1117 = vsel %vm1031, %v1011, 0
        %1119 = vmatprep.subr.mxu0 0.0
        %1120 = vmatpush1.msra.mxu0 0.0
        %1121 = vmatprep.subr.mxu0 0.0
        %1122 = vmatpush1.msra.mxu0 0.0
        %1123 = vmatprep.subr.mxu0 0.0
        %1124 = vmatpush1.msra.mxu0 0.0
        %1125 = vmatprep.subr.mxu0 0.0
        %1126 = vmatpush1.msra.mxu0 0.0
        %1127 = vmatprep.subr.mxu0 0.0
        %1128 = vmatpush1.msra.mxu0 0.0
        %1129 = vmatprep.subr.mxu0 0.0
        %1130 = vmatpush1.msra.mxu0 0.0
        %1131 = vmatprep.subr.mxu0 0.0
        %1132 = vmatpush1.msra.mxu0 0.0
        %1133 = vmatprep.subr.mxu0 0.0
        %1134 = vmatpush1.msra.mxu0 0.0
        %1135 = vmatprep.subr.mxu0 0.0
        %1136 = vmatpush1.msra.mxu0 0.0
        %1137 = vmatprep.subr.mxu0 0.0
        %1138 = vmatpush1.msra.mxu0 0.0
        %1139 = vmatprep.subr.mxu0 0.0
        %1140 = vmatpush1.msra.mxu0 0.0
        %1141 = vmatprep.subr.mxu0 0.0
        %1142 = vmatpush1.msra.mxu0 0.0
        %1143 = vmatprep.subr.mxu0 0.0
        %1144 = vmatpush1.msra.mxu0 %v1108
        %1145 = vmatprep.subr.mxu0 0.0
        %1146 = vmatpush1.msra.mxu0 %v1107
        %1147 = vmatprep.subr.mxu0 0.0
        %1148 = vmatpush1.msra.mxu0 %v1106
        %1149 = vmatprep.subr.mxu0 0.0
        %1150 = vmatpush1.msra.mxu0 %v1105
        %1151 = vmatprep.subr.mxu0 0.0
        %1152 = vmatpush2.msra.mxu0 0.0
        %1153 = vmatprep.subr.mxu0 0.0
        %1154 = vmatpush2.msra.mxu0 0.0
        %1155 = vmatprep.subr.mxu0 0.0
        %1156 = vmatpush2.msra.mxu0 0.0
        %1157 = vmatprep.subr.mxu0 0.0
        %1158 = vmatpush2.msra.mxu0 0.0
        %1159 = vmatprep.subr.mxu0 0.0
        %1160 = vmatpush2.msra.mxu0 0.0
        %1161 = vmatprep.subr.mxu0 0.0
        %1162 = vmatpush2.msra.mxu0 0.0
        %1163 = vmatprep.subr.mxu0 0.0
        %1164 = vmatpush2.msra.mxu0 0.0
        %1165 = vmatprep.subr.mxu0 0.0
        %1166 = vmatpush2.msra.mxu0 0.0
        %1167 = vmatprep.subr.mxu0 0.0
        %1168 = vmatpush2.msra.mxu0 0.0
        %1169 = vmatprep.subr.mxu0 0.0
        %1170 = vmatpush2.msra.mxu0 0.0
        %1171 = vmatprep.subr.mxu0 0.0
        %1172 = vmatpush2.msra.mxu0 0.0
        %1173 = vmatprep.subr.mxu0 0.0
        %1174 = vmatpush2.msra.mxu0 0.0
        %1175 = vmatprep.subr.mxu0 0.0
        %1176 = vmatpush2.msra.mxu0 0.0
        %1177 = vmatprep.subr.mxu0 0.0
        %1178 = vmatpush2.msra.mxu0 0.0
        %1179 = vmatprep.subr.mxu0 0.0
        %1180 = vmatpush2.msra.mxu0 0.0
        %1181 = vmatprep.subr.mxu0 0.0
        %1182 = vmatpush2.msra.mxu0 0.0
        %1183 = vmatprep.mubr.f32.mxu0 0.0
        %1184 = vmatmul.mubr.f32.gmra.mxu0 %v1117
        %v1185 = vpop.f32.mrf.mxu0
        %v1186 = vadd.f32 %v1114, %v1185
        %v1187 = vpop.f32.mrf.mxu0
        %1188 = vdwg.mxu0
        %v1189 = vld [vmem:[#allocation21] sm:$0xff]
        %v1190 = vld [vmem:[#allocation21 + $0x8] sm:$0xff]
        %v1191 = vld [vmem:[#allocation21 + $0x10] sm:$0xff]
        %v1192 = vld [vmem:[#allocation21 + $0x18] sm:$0xff]
        %v1193 = vld [vmem:[%s12] sm:$0x1]
        %v1195 = vlaneseq
        %v1196 = vshrl.u32 %v1195, 7
        %v1197 = vsub.s32 0, %v1196
        %v1198 = vrot.slane %v1193, %v1197
        %v1201 = vsel %vm1031, %v1012, 0
        %v1204 = vsel %vm1031, %v1013, 0
        %v1207 = vsel %vm1031, %v1014, 0
        %v1210 = vsel %vm1031, %v1015, 0
        %v1213 = vsel %vm1031, %v1016, 0
        %v1216 = vsel %vm1031, %v1017, 0
        %v1219 = vsel %vm1031, %v1018, 0
        %v1222 = vsel %vm1031, %v1019, 0
        %1224 = vmatprep.subr.mxu0 0.0
        %1225 = vmatpush1.msra.mxu0 0.0
        %1226 = vmatprep.subr.mxu0 0.0
        %1227 = vmatpush1.msra.mxu0 0.0
        %1228 = vmatprep.subr.mxu0 0.0
        %1229 = vmatpush1.msra.mxu0 0.0
        %1230 = vmatprep.subr.mxu0 0.0
        %1231 = vmatpush1.msra.mxu0 0.0
        %1232 = vmatprep.subr.mxu0 0.0
        %1233 = vmatpush1.msra.mxu0 0.0
        %1234 = vmatprep.subr.mxu0 0.0
        %1235 = vmatpush1.msra.mxu0 0.0
        %1236 = vmatprep.subr.mxu0 0.0
        %1237 = vmatpush1.msra.mxu0 0.0
        %1238 = vmatprep.subr.mxu0 0.0
        %1239 = vmatpush1.msra.mxu0 0.0
        %1240 = vmatprep.subr.mxu0 0.0
        %1241 = vmatpush1.msra.mxu0 0.0
        %1242 = vmatprep.subr.mxu0 0.0
        %1243 = vmatpush1.msra.mxu0 0.0
        %1244 = vmatprep.subr.mxu0 0.0
        %1245 = vmatpush1.msra.mxu0 0.0
        %1246 = vmatprep.subr.mxu0 0.0
        %1247 = vmatpush1.msra.mxu0 0.0
        %1248 = vmatprep.subr.mxu0 0.0
        %1249 = vmatpush1.msra.mxu0 %v1192
        %1250 = vmatprep.subr.mxu0 0.0
        %1251 = vmatpush1.msra.mxu0 %v1191
        %1252 = vmatprep.subr.mxu0 0.0
        %1253 = vmatpush1.msra.mxu0 %v1190
        %1254 = vmatprep.subr.mxu0 0.0
        %1255 = vmatpush1.msra.mxu0 %v1189
        %1256 = vmatprep.subr.mxu0 0.0
        %1257 = vmatpush2.msra.mxu0 0.0
        %1258 = vmatprep.subr.mxu0 0.0
        %1259 = vmatpush2.msra.mxu0 0.0
        %1260 = vmatprep.subr.mxu0 0.0
        %1261 = vmatpush2.msra.mxu0 0.0
        %1262 = vmatprep.subr.mxu0 0.0
        %1263 = vmatpush2.msra.mxu0 0.0
        %1264 = vmatprep.subr.mxu0 0.0
        %1265 = vmatpush2.msra.mxu0 0.0
        %1266 = vmatprep.subr.mxu0 0.0
        %1267 = vmatpush2.msra.mxu0 0.0
        %1268 = vmatprep.subr.mxu0 0.0
        %1269 = vmatpush2.msra.mxu0 0.0
        %1270 = vmatprep.subr.mxu0 0.0
        %1271 = vmatpush2.msra.mxu0 0.0
        %1272 = vmatprep.subr.mxu0 0.0
        %1273 = vmatpush2.msra.mxu0 0.0
        %1274 = vmatprep.subr.mxu0 0.0
        %1275 = vmatpush2.msra.mxu0 0.0
        %1276 = vmatprep.subr.mxu0 0.0
        %1277 = vmatpush2.msra.mxu0 0.0
        %1278 = vmatprep.subr.mxu0 0.0
        %1279 = vmatpush2.msra.mxu0 0.0
        %1280 = vmatprep.subr.mxu0 0.0
        %1281 = vmatpush2.msra.mxu0 0.0
        %1282 = vmatprep.subr.mxu0 0.0
        %1283 = vmatpush2.msra.mxu0 0.0
        %1284 = vmatprep.subr.mxu0 0.0
        %1285 = vmatpush2.msra.mxu0 0.0
        %1286 = vmatprep.subr.mxu0 0.0
        %1287 = vmatpush2.msra.mxu0 0.0
        %1288 = vmatprep.mubr.f32.mxu0 0.0
        %1289 = vmatmul.mubr.f32.gmra.mxu0 %v1201
        %v1290 = vpop.f32.mrf.mxu0
        %v1291 = vadd.f32 %v1198, %v1290
        %v1292 = vpop.f32.mrf.mxu0
        %1293 = vmatprep.mubr.f32.mxu0 0.0
        %1294 = vmatmul.mubr.f32.gmra.mxu0 %v1204
        %v1295 = vpop.f32.mrf.mxu0
        %v1296 = vadd.f32 %v1198, %v1295
        %v1297 = vpop.f32.mrf.mxu0
        %1298 = vmatprep.mubr.f32.mxu0 0.0
        %1299 = vmatmul.mubr.f32.gmra.mxu0 %v1207
        %v1300 = vpop.f32.mrf.mxu0
        %v1301 = vadd.f32 %v1198, %v1300
        %v1302 = vpop.f32.mrf.mxu0
        %1303 = vmatprep.mubr.f32.mxu0 0.0
        %1304 = vmatmul.mubr.f32.gmra.mxu0 %v1210
        %v1305 = vpop.f32.mrf.mxu0
        %v1306 = vadd.f32 %v1198, %v1305
        %v1307 = vpop.f32.mrf.mxu0
        %1308 = vmatprep.mubr.f32.mxu0 0.0
        %1309 = vmatmul.mubr.f32.gmra.mxu0 %v1213
        %v1310 = vpop.f32.mrf.mxu0
        %v1311 = vadd.f32 %v1198, %v1310
        %v1312 = vpop.f32.mrf.mxu0
        %1313 = vmatprep.mubr.f32.mxu0 0.0
        %1314 = vmatmul.mubr.f32.gmra.mxu0 %v1216
        %v1315 = vpop.f32.mrf.mxu0
        %v1316 = vadd.f32 %v1198, %v1315
        %v1317 = vpop.f32.mrf.mxu0
        %1318 = vmatprep.mubr.f32.mxu0 0.0
        %1319 = vmatmul.mubr.f32.gmra.mxu0 %v1219
        %v1320 = vpop.f32.mrf.mxu0
        %v1321 = vadd.f32 %v1198, %v1320
        %v1322 = vpop.f32.mrf.mxu0
        %1323 = vmatprep.mubr.f32.mxu0 0.0
        %1324 = vmatmul.mubr.f32.gmra.mxu0 %v1222
        %v1325 = vpop.f32.mrf.mxu0
        %v1326 = vadd.f32 %v1198, %v1325
        %v1327 = vpop.f32.mrf.mxu0
        %1328 = vdwg.mxu0
        %v1329 = vld [vmem:[#allocation2] sm:$0xff]
        %v1330 = vld [vmem:[#allocation2 + $0x8] sm:$0xff]
        %v1331 = vld [vmem:[#allocation2 + $0x10] sm:$0xff]
        %v1332 = vld [vmem:[#allocation2 + $0x18] sm:$0xff]
        %v1333 = vld [vmem:[#allocation2 + $0x20] sm:$0xff]
        %v1334 = vld [vmem:[#allocation2 + $0x28] sm:$0xff]
        %v1335 = vld [vmem:[#allocation2 + $0x30] sm:$0xff]
        %v1336 = vld [vmem:[#allocation2 + $0x38] sm:$0xff]
        %v1338 = vsel %vm1031, %v1329, 0
        %v1341 = vsel %vm1031, %v1330, 0
        %v1344 = vsel %vm1031, %v1331, 0
        %v1347 = vsel %vm1031, %v1332, 0
        %v1350 = vsel %vm1031, %v1333, 0
        %v1353 = vsel %vm1031, %v1334, 0
        %v1356 = vsel %vm1031, %v1335, 0
        %v1359 = vsel %vm1031, %v1336, 0
        %v1362 = vsel %vm1031, %v1102, 0
        %1364 = vmatprep.subr.mxu0 0.0
        %1365 = vmatpush1.xpose.msra.mxu0 0.0
        %1366 = vmatprep.subr.mxu0 0.0
        %1367 = vmatpush1.xpose.msra.mxu0 0.0
        %1368 = vmatprep.subr.mxu0 0.0
        %1369 = vmatpush1.xpose.msra.mxu0 0.0
        %1370 = vmatprep.subr.mxu0 0.0
        %1371 = vmatpush1.xpose.msra.mxu0 0.0
        %1372 = vmatprep.subr.mxu0 0.0
        %1373 = vmatpush1.xpose.msra.mxu0 0.0
        %1374 = vmatprep.subr.mxu0 0.0
        %1375 = vmatpush1.xpose.msra.mxu0 0.0
        %1376 = vmatprep.subr.mxu0 0.0
        %1377 = vmatpush1.xpose.msra.mxu0 0.0
        %1378 = vmatprep.subr.mxu0 0.0
        %1379 = vmatpush1.xpose.msra.mxu0 0.0
        %1380 = vmatprep.subr.mxu0 0.0
        %1381 = vmatpush1.xpose.msra.mxu0 0.0
        %1382 = vmatprep.subr.mxu0 0.0
        %1383 = vmatpush1.xpose.msra.mxu0 0.0
        %1384 = vmatprep.subr.mxu0 0.0
        %1385 = vmatpush1.xpose.msra.mxu0 0.0
        %1386 = vmatprep.subr.mxu0 0.0
        %1387 = vmatpush1.xpose.msra.mxu0 0.0
        %1388 = vmatprep.subr.mxu0 0.0
        %1389 = vmatpush1.xpose.msra.mxu0 0.0
        %1390 = vmatprep.subr.mxu0 0.0
        %1391 = vmatpush1.xpose.msra.mxu0 0.0
        %1392 = vmatprep.subr.mxu0 0.0
        %1393 = vmatpush1.xpose.msra.mxu0 0.0
        %1394 = vmatprep.subr.mxu0 0.0
        %1395 = vmatpush1.xpose.msra.mxu0 %v1362
        %1396 = vmatprep.subr.mxu0 0.0
        %1397 = vmatpush2.xpose.msra.mxu0 0.0
        %1398 = vmatprep.subr.mxu0 0.0
        %1399 = vmatpush2.xpose.msra.mxu0 0.0
        %1400 = vmatprep.subr.mxu0 0.0
        %1401 = vmatpush2.xpose.msra.mxu0 0.0
        %1402 = vmatprep.subr.mxu0 0.0
        %1403 = vmatpush2.xpose.msra.mxu0 0.0
        %1404 = vmatprep.subr.mxu0 0.0
        %1405 = vmatpush2.xpose.msra.mxu0 0.0
        %1406 = vmatprep.subr.mxu0 0.0
        %1407 = vmatpush2.xpose.msra.mxu0 0.0
        %1408 = vmatprep.subr.mxu0 0.0
        %1409 = vmatpush2.xpose.msra.mxu0 0.0
        %1410 = vmatprep.subr.mxu0 0.0
        %1411 = vmatpush2.xpose.msra.mxu0 0.0
        %1412 = vmatprep.subr.mxu0 0.0
        %1413 = vmatpush2.xpose.msra.mxu0 0.0
        %1414 = vmatprep.subr.mxu0 0.0
        %1415 = vmatpush2.xpose.msra.mxu0 0.0
        %1416 = vmatprep.subr.mxu0 0.0
        %1417 = vmatpush2.xpose.msra.mxu0 0.0
        %1418 = vmatprep.subr.mxu0 0.0
        %1419 = vmatpush2.xpose.msra.mxu0 0.0
        %1420 = vmatprep.subr.mxu0 0.0
        %1421 = vmatpush2.xpose.msra.mxu0 0.0
        %1422 = vmatprep.subr.mxu0 0.0
        %1423 = vmatpush2.xpose.msra.mxu0 0.0
        %1424 = vmatprep.subr.mxu0 0.0
        %1425 = vmatpush2.xpose.msra.mxu0 0.0
        %1426 = vmatprep.subr.mxu0 0.0
        %1427 = vmatpush2.xpose.msra.mxu0 0.0
        %1428 = vmatprep.mubr.f32.mxu0 0.0
        %1429 = vmatmul.mubr.f32.gmra.mxu0 %v1338
        %v1430 = vpop.f32.mrf.mxu0
        %v1431 = vadd.f32 0.0, %v1430
        %v1432 = vpop.f32.mrf.mxu0
        %1433 = vmatprep.mubr.f32.mxu0 0.0
        %1434 = vmatmul.mubr.f32.gmra.mxu0 %v1341
        %v1435 = vpop.f32.mrf.mxu0
        %v1436 = vadd.f32 0.0, %v1435
        %v1437 = vpop.f32.mrf.mxu0
        %1438 = vmatprep.mubr.f32.mxu0 0.0
        %1439 = vmatmul.mubr.f32.gmra.mxu0 %v1344
        %v1440 = vpop.f32.mrf.mxu0
        %v1441 = vadd.f32 0.0, %v1440
        %v1442 = vpop.f32.mrf.mxu0
        %1443 = vmatprep.mubr.f32.mxu0 0.0
        %1444 = vmatmul.mubr.f32.gmra.mxu0 %v1347
        %v1445 = vpop.f32.mrf.mxu0
        %v1446 = vadd.f32 0.0, %v1445
        %v1447 = vpop.f32.mrf.mxu0
        %1448 = vmatprep.mubr.f32.mxu0 0.0
        %1449 = vmatmul.mubr.f32.gmra.mxu0 %v1350
        %v1450 = vpop.f32.mrf.mxu0
        %v1451 = vadd.f32 0.0, %v1450
        %v1452 = vpop.f32.mrf.mxu0
        %1453 = vmatprep.mubr.f32.mxu0 0.0
        %1454 = vmatmul.mubr.f32.gmra.mxu0 %v1353
        %v1455 = vpop.f32.mrf.mxu0
        %v1456 = vadd.f32 0.0, %v1455
        %v1457 = vpop.f32.mrf.mxu0
        %1458 = vmatprep.mubr.f32.mxu0 0.0
        %1459 = vmatmul.mubr.f32.gmra.mxu0 %v1356
        %v1460 = vpop.f32.mrf.mxu0
        %v1461 = vadd.f32 0.0, %v1460
        %v1462 = vpop.f32.mrf.mxu0
        %1463 = vmatprep.mubr.f32.mxu0 0.0
        %1464 = vmatmul.mubr.f32.gmra.mxu0 %v1359
        %v1465 = vpop.f32.mrf.mxu0
        %v1466 = vadd.f32 0.0, %v1465
        %v1467 = vpop.f32.mrf.mxu0
        %1468 = vdwg.mxu0
        %v1469 = vld [vmem:[#allocation3] sm:$0xff]
        %v1470 = vld [vmem:[#allocation3 + $0x8] sm:$0xff]
        %v1471 = vld [vmem:[#allocation3 + $0x10] sm:$0xff]
        %v1472 = vld [vmem:[#allocation3 + $0x18] sm:$0xff]
        %v1473 = vld [vmem:[#allocation3 + $0x20] sm:$0xff]
        %v1474 = vld [vmem:[#allocation3 + $0x28] sm:$0xff]
        %v1475 = vld [vmem:[#allocation3 + $0x30] sm:$0xff]
        %v1476 = vld [vmem:[#allocation3 + $0x38] sm:$0xff]
        %v1478 = vsel %vm1031, %v1469, 0
        %v1481 = vsel %vm1031, %v1291, 0
        %1483 = vmatprep.subr.mxu0 0.0
        %1484 = vmatpush1.xpose.msra.mxu0 0.0
        %1485 = vmatprep.subr.mxu0 0.0
        %1486 = vmatpush1.xpose.msra.mxu0 0.0
        %1487 = vmatprep.subr.mxu0 0.0
        %1488 = vmatpush1.xpose.msra.mxu0 0.0
        %1489 = vmatprep.subr.mxu0 0.0
        %1490 = vmatpush1.xpose.msra.mxu0 0.0
        %1491 = vmatprep.subr.mxu0 0.0
        %1492 = vmatpush1.xpose.msra.mxu0 0.0
        %1493 = vmatprep.subr.mxu0 0.0
        %1494 = vmatpush1.xpose.msra.mxu0 0.0
        %1495 = vmatprep.subr.mxu0 0.0
        %1496 = vmatpush1.xpose.msra.mxu0 0.0
        %1497 = vmatprep.subr.mxu0 0.0
        %1498 = vmatpush1.xpose.msra.mxu0 0.0
        %1499 = vmatprep.subr.mxu0 0.0
        %1500 = vmatpush1.xpose.msra.mxu0 0.0
        %1501 = vmatprep.subr.mxu0 0.0
        %1502 = vmatpush1.xpose.msra.mxu0 0.0
        %1503 = vmatprep.subr.mxu0 0.0
        %1504 = vmatpush1.xpose.msra.mxu0 0.0
        %1505 = vmatprep.subr.mxu0 0.0
        %1506 = vmatpush1.xpose.msra.mxu0 0.0
        %1507 = vmatprep.subr.mxu0 0.0
        %1508 = vmatpush1.xpose.msra.mxu0 0.0
        %1509 = vmatprep.subr.mxu0 0.0
        %1510 = vmatpush1.xpose.msra.mxu0 0.0
        %1511 = vmatprep.subr.mxu0 0.0
        %1512 = vmatpush1.xpose.msra.mxu0 0.0
        %1513 = vmatprep.subr.mxu0 0.0
        %1514 = vmatpush1.xpose.msra.mxu0 %v1481
        %1515 = vmatprep.subr.mxu0 0.0
        %1516 = vmatpush2.xpose.msra.mxu0 0.0
        %1517 = vmatprep.subr.mxu0 0.0
        %1518 = vmatpush2.xpose.msra.mxu0 0.0
        %1519 = vmatprep.subr.mxu0 0.0
        %1520 = vmatpush2.xpose.msra.mxu0 0.0
        %1521 = vmatprep.subr.mxu0 0.0
        %1522 = vmatpush2.xpose.msra.mxu0 0.0
        %1523 = vmatprep.subr.mxu0 0.0
        %1524 = vmatpush2.xpose.msra.mxu0 0.0
        %1525 = vmatprep.subr.mxu0 0.0
        %1526 = vmatpush2.xpose.msra.mxu0 0.0
        %1527 = vmatprep.subr.mxu0 0.0
        %1528 = vmatpush2.xpose.msra.mxu0 0.0
        %1529 = vmatprep.subr.mxu0 0.0
        %1530 = vmatpush2.xpose.msra.mxu0 0.0
        %1531 = vmatprep.subr.mxu0 0.0
        %1532 = vmatpush2.xpose.msra.mxu0 0.0
        %1533 = vmatprep.subr.mxu0 0.0
        %1534 = vmatpush2.xpose.msra.mxu0 0.0
        %1535 = vmatprep.subr.mxu0 0.0
        %1536 = vmatpush2.xpose.msra.mxu0 0.0
        %1537 = vmatprep.subr.mxu0 0.0
        %1538 = vmatpush2.xpose.msra.mxu0 0.0
        %1539 = vmatprep.subr.mxu0 0.0
        %1540 = vmatpush2.xpose.msra.mxu0 0.0
        %1541 = vmatprep.subr.mxu0 0.0
        %1542 = vmatpush2.xpose.msra.mxu0 0.0
        %1543 = vmatprep.subr.mxu0 0.0
        %1544 = vmatpush2.xpose.msra.mxu0 0.0
        %1545 = vmatprep.subr.mxu0 0.0
        %1546 = vmatpush2.xpose.msra.mxu0 0.0
        %1547 = vmatprep.mubr.f32.mxu0 0.0
        %1548 = vmatmul.mubr.f32.gmra.mxu0 %v1478
        %v1549 = vpop.f32.mrf.mxu0
        %v1550 = vadd.f32 0.0, %v1549
        %v1551 = vpop.f32.mrf.mxu0
        %1552 = vdwg.mxu0
        %v1554 = vsel %vm1031, %v1470, 0
        %v1557 = vsel %vm1031, %v1296, 0
        %1559 = vmatprep.subr.mxu0 0.0
        %1560 = vmatpush1.xpose.msra.mxu0 0.0
        %1561 = vmatprep.subr.mxu0 0.0
        %1562 = vmatpush1.xpose.msra.mxu0 0.0
        %1563 = vmatprep.subr.mxu0 0.0
        %1564 = vmatpush1.xpose.msra.mxu0 0.0
        %1565 = vmatprep.subr.mxu0 0.0
        %1566 = vmatpush1.xpose.msra.mxu0 0.0
        %1567 = vmatprep.subr.mxu0 0.0
        %1568 = vmatpush1.xpose.msra.mxu0 0.0
        %1569 = vmatprep.subr.mxu0 0.0
        %1570 = vmatpush1.xpose.msra.mxu0 0.0
        %1571 = vmatprep.subr.mxu0 0.0
        %1572 = vmatpush1.xpose.msra.mxu0 0.0
        %1573 = vmatprep.subr.mxu0 0.0
        %1574 = vmatpush1.xpose.msra.mxu0 0.0
        %1575 = vmatprep.subr.mxu0 0.0
        %1576 = vmatpush1.xpose.msra.mxu0 0.0
        %1577 = vmatprep.subr.mxu0 0.0
        %1578 = vmatpush1.xpose.msra.mxu0 0.0
        %1579 = vmatprep.subr.mxu0 0.0
        %1580 = vmatpush1.xpose.msra.mxu0 0.0
        %1581 = vmatprep.subr.mxu0 0.0
        %1582 = vmatpush1.xpose.msra.mxu0 0.0
        %1583 = vmatprep.subr.mxu0 0.0
        %1584 = vmatpush1.xpose.msra.mxu0 0.0
        %1585 = vmatprep.subr.mxu0 0.0
        %1586 = vmatpush1.xpose.msra.mxu0 0.0
        %1587 = vmatprep.subr.mxu0 0.0
        %1588 = vmatpush1.xpose.msra.mxu0 0.0
        %1589 = vmatprep.subr.mxu0 0.0
        %1590 = vmatpush1.xpose.msra.mxu0 %v1557
        %1591 = vmatprep.subr.mxu0 0.0
        %1592 = vmatpush2.xpose.msra.mxu0 0.0
        %1593 = vmatprep.subr.mxu0 0.0
        %1594 = vmatpush2.xpose.msra.mxu0 0.0
        %1595 = vmatprep.subr.mxu0 0.0
        %1596 = vmatpush2.xpose.msra.mxu0 0.0
        %1597 = vmatprep.subr.mxu0 0.0
        %1598 = vmatpush2.xpose.msra.mxu0 0.0
        %1599 = vmatprep.subr.mxu0 0.0
        %1600 = vmatpush2.xpose.msra.mxu0 0.0
        %1601 = vmatprep.subr.mxu0 0.0
        %1602 = vmatpush2.xpose.msra.mxu0 0.0
        %1603 = vmatprep.subr.mxu0 0.0
        %1604 = vmatpush2.xpose.msra.mxu0 0.0
        %1605 = vmatprep.subr.mxu0 0.0
        %1606 = vmatpush2.xpose.msra.mxu0 0.0
        %1607 = vmatprep.subr.mxu0 0.0
        %1608 = vmatpush2.xpose.msra.mxu0 0.0
        %1609 = vmatprep.subr.mxu0 0.0
        %1610 = vmatpush2.xpose.msra.mxu0 0.0
        %1611 = vmatprep.subr.mxu0 0.0
        %1612 = vmatpush2.xpose.msra.mxu0 0.0
        %1613 = vmatprep.subr.mxu0 0.0
        %1614 = vmatpush2.xpose.msra.mxu0 0.0
        %1615 = vmatprep.subr.mxu0 0.0
        %1616 = vmatpush2.xpose.msra.mxu0 0.0
        %1617 = vmatprep.subr.mxu0 0.0
        %1618 = vmatpush2.xpose.msra.mxu0 0.0
        %1619 = vmatprep.subr.mxu0 0.0
        %1620 = vmatpush2.xpose.msra.mxu0 0.0
        %1621 = vmatprep.subr.mxu0 0.0
        %1622 = vmatpush2.xpose.msra.mxu0 0.0
        %1623 = vmatprep.mubr.f32.mxu0 0.0
        %1624 = vmatmul.mubr.f32.gmra.mxu0 %v1554
        %v1625 = vpop.f32.mrf.mxu0
        %v1626 = vadd.f32 0.0, %v1625
        %v1627 = vpop.f32.mrf.mxu0
        %1628 = vdwg.mxu0
        %v1630 = vsel %vm1031, %v1471, 0
        %v1633 = vsel %vm1031, %v1301, 0
        %1635 = vmatprep.subr.mxu0 0.0
        %1636 = vmatpush1.xpose.msra.mxu0 0.0
        %1637 = vmatprep.subr.mxu0 0.0
        %1638 = vmatpush1.xpose.msra.mxu0 0.0
        %1639 = vmatprep.subr.mxu0 0.0
        %1640 = vmatpush1.xpose.msra.mxu0 0.0
        %1641 = vmatprep.subr.mxu0 0.0
        %1642 = vmatpush1.xpose.msra.mxu0 0.0
        %1643 = vmatprep.subr.mxu0 0.0
        %1644 = vmatpush1.xpose.msra.mxu0 0.0
        %1645 = vmatprep.subr.mxu0 0.0
        %1646 = vmatpush1.xpose.msra.mxu0 0.0
        %1647 = vmatprep.subr.mxu0 0.0
        %1648 = vmatpush1.xpose.msra.mxu0 0.0
        %1649 = vmatprep.subr.mxu0 0.0
        %1650 = vmatpush1.xpose.msra.mxu0 0.0
        %1651 = vmatprep.subr.mxu0 0.0
        %1652 = vmatpush1.xpose.msra.mxu0 0.0
        %1653 = vmatprep.subr.mxu0 0.0
        %1654 = vmatpush1.xpose.msra.mxu0 0.0
        %1655 = vmatprep.subr.mxu0 0.0
        %1656 = vmatpush1.xpose.msra.mxu0 0.0
        %1657 = vmatprep.subr.mxu0 0.0
        %1658 = vmatpush1.xpose.msra.mxu0 0.0
        %1659 = vmatprep.subr.mxu0 0.0
        %1660 = vmatpush1.xpose.msra.mxu0 0.0
        %1661 = vmatprep.subr.mxu0 0.0
        %1662 = vmatpush1.xpose.msra.mxu0 0.0
        %1663 = vmatprep.subr.mxu0 0.0
        %1664 = vmatpush1.xpose.msra.mxu0 0.0
        %1665 = vmatprep.subr.mxu0 0.0
        %1666 = vmatpush1.xpose.msra.mxu0 %v1633
        %1667 = vmatprep.subr.mxu0 0.0
        %1668 = vmatpush2.xpose.msra.mxu0 0.0
        %1669 = vmatprep.subr.mxu0 0.0
        %1670 = vmatpush2.xpose.msra.mxu0 0.0
        %1671 = vmatprep.subr.mxu0 0.0
        %1672 = vmatpush2.xpose.msra.mxu0 0.0
        %1673 = vmatprep.subr.mxu0 0.0
        %1674 = vmatpush2.xpose.msra.mxu0 0.0
        %1675 = vmatprep.subr.mxu0 0.0
        %1676 = vmatpush2.xpose.msra.mxu0 0.0
        %1677 = vmatprep.subr.mxu0 0.0
        %1678 = vmatpush2.xpose.msra.mxu0 0.0
        %1679 = vmatprep.subr.mxu0 0.0
        %1680 = vmatpush2.xpose.msra.mxu0 0.0
        %1681 = vmatprep.subr.mxu0 0.0
        %1682 = vmatpush2.xpose.msra.mxu0 0.0
        %1683 = vmatprep.subr.mxu0 0.0
        %1684 = vmatpush2.xpose.msra.mxu0 0.0
        %1685 = vmatprep.subr.mxu0 0.0
        %1686 = vmatpush2.xpose.msra.mxu0 0.0
        %1687 = vmatprep.subr.mxu0 0.0
        %1688 = vmatpush2.xpose.msra.mxu0 0.0
        %1689 = vmatprep.subr.mxu0 0.0
        %1690 = vmatpush2.xpose.msra.mxu0 0.0
        %1691 = vmatprep.subr.mxu0 0.0
        %1692 = vmatpush2.xpose.msra.mxu0 0.0
        %1693 = vmatprep.subr.mxu0 0.0
        %1694 = vmatpush2.xpose.msra.mxu0 0.0
        %1695 = vmatprep.subr.mxu0 0.0
        %1696 = vmatpush2.xpose.msra.mxu0 0.0
        %1697 = vmatprep.subr.mxu0 0.0
        %1698 = vmatpush2.xpose.msra.mxu0 0.0
        %1699 = vmatprep.mubr.f32.mxu0 0.0
        %1700 = vmatmul.mubr.f32.gmra.mxu0 %v1630
        %v1701 = vpop.f32.mrf.mxu0
        %v1702 = vadd.f32 0.0, %v1701
        %v1703 = vpop.f32.mrf.mxu0
        %1704 = vdwg.mxu0
        %v1706 = vsel %vm1031, %v1472, 0
        %v1709 = vsel %vm1031, %v1306, 0
        %1711 = vmatprep.subr.mxu0 0.0
        %1712 = vmatpush1.xpose.msra.mxu0 0.0
        %1713 = vmatprep.subr.mxu0 0.0
        %1714 = vmatpush1.xpose.msra.mxu0 0.0
        %1715 = vmatprep.subr.mxu0 0.0
        %1716 = vmatpush1.xpose.msra.mxu0 0.0
        %1717 = vmatprep.subr.mxu0 0.0
        %1718 = vmatpush1.xpose.msra.mxu0 0.0
        %1719 = vmatprep.subr.mxu0 0.0
        %1720 = vmatpush1.xpose.msra.mxu0 0.0
        %1721 = vmatprep.subr.mxu0 0.0
        %1722 = vmatpush1.xpose.msra.mxu0 0.0
        %1723 = vmatprep.subr.mxu0 0.0
        %1724 = vmatpush1.xpose.msra.mxu0 0.0
        %1725 = vmatprep.subr.mxu0 0.0
        %1726 = vmatpush1.xpose.msra.mxu0 0.0
        %1727 = vmatprep.subr.mxu0 0.0
        %1728 = vmatpush1.xpose.msra.mxu0 0.0
        %1729 = vmatprep.subr.mxu0 0.0
        %1730 = vmatpush1.xpose.msra.mxu0 0.0
        %1731 = vmatprep.subr.mxu0 0.0
        %1732 = vmatpush1.xpose.msra.mxu0 0.0
        %1733 = vmatprep.subr.mxu0 0.0
        %1734 = vmatpush1.xpose.msra.mxu0 0.0
        %1735 = vmatprep.subr.mxu0 0.0
        %1736 = vmatpush1.xpose.msra.mxu0 0.0
        %1737 = vmatprep.subr.mxu0 0.0
        %1738 = vmatpush1.xpose.msra.mxu0 0.0
        %1739 = vmatprep.subr.mxu0 0.0
        %1740 = vmatpush1.xpose.msra.mxu0 0.0
        %1741 = vmatprep.subr.mxu0 0.0
        %1742 = vmatpush1.xpose.msra.mxu0 %v1709
        %1743 = vmatprep.subr.mxu0 0.0
        %1744 = vmatpush2.xpose.msra.mxu0 0.0
        %1745 = vmatprep.subr.mxu0 0.0
        %1746 = vmatpush2.xpose.msra.mxu0 0.0
        %1747 = vmatprep.subr.mxu0 0.0
        %1748 = vmatpush2.xpose.msra.mxu0 0.0
        %1749 = vmatprep.subr.mxu0 0.0
        %1750 = vmatpush2.xpose.msra.mxu0 0.0
        %1751 = vmatprep.subr.mxu0 0.0
        %1752 = vmatpush2.xpose.msra.mxu0 0.0
        %1753 = vmatprep.subr.mxu0 0.0
        %1754 = vmatpush2.xpose.msra.mxu0 0.0
        %1755 = vmatprep.subr.mxu0 0.0
        %1756 = vmatpush2.xpose.msra.mxu0 0.0
        %1757 = vmatprep.subr.mxu0 0.0
        %1758 = vmatpush2.xpose.msra.mxu0 0.0
        %1759 = vmatprep.subr.mxu0 0.0
        %1760 = vmatpush2.xpose.msra.mxu0 0.0
        %1761 = vmatprep.subr.mxu0 0.0
        %1762 = vmatpush2.xpose.msra.mxu0 0.0
        %1763 = vmatprep.subr.mxu0 0.0
        %1764 = vmatpush2.xpose.msra.mxu0 0.0
        %1765 = vmatprep.subr.mxu0 0.0
        %1766 = vmatpush2.xpose.msra.mxu0 0.0
        %1767 = vmatprep.subr.mxu0 0.0
        %1768 = vmatpush2.xpose.msra.mxu0 0.0
        %1769 = vmatprep.subr.mxu0 0.0
        %1770 = vmatpush2.xpose.msra.mxu0 0.0
        %1771 = vmatprep.subr.mxu0 0.0
        %1772 = vmatpush2.xpose.msra.mxu0 0.0
        %1773 = vmatprep.subr.mxu0 0.0
        %1774 = vmatpush2.xpose.msra.mxu0 0.0
        %1775 = vmatprep.mubr.f32.mxu0 0.0
        %1776 = vmatmul.mubr.f32.gmra.mxu0 %v1706
        %v1777 = vpop.f32.mrf.mxu0
        %v1778 = vadd.f32 0.0, %v1777
        %v1779 = vpop.f32.mrf.mxu0
        %1780 = vdwg.mxu0
        %v1782 = vsel %vm1031, %v1473, 0
        %v1785 = vsel %vm1031, %v1311, 0
        %1787 = vmatprep.subr.mxu0 0.0
        %1788 = vmatpush1.xpose.msra.mxu0 0.0
        %1789 = vmatprep.subr.mxu0 0.0
        %1790 = vmatpush1.xpose.msra.mxu0 0.0
        %1791 = vmatprep.subr.mxu0 0.0
        %1792 = vmatpush1.xpose.msra.mxu0 0.0
        %1793 = vmatprep.subr.mxu0 0.0
        %1794 = vmatpush1.xpose.msra.mxu0 0.0
        %1795 = vmatprep.subr.mxu0 0.0
        %1796 = vmatpush1.xpose.msra.mxu0 0.0
        %1797 = vmatprep.subr.mxu0 0.0
        %1798 = vmatpush1.xpose.msra.mxu0 0.0
        %1799 = vmatprep.subr.mxu0 0.0
        %1800 = vmatpush1.xpose.msra.mxu0 0.0
        %1801 = vmatprep.subr.mxu0 0.0
        %1802 = vmatpush1.xpose.msra.mxu0 0.0
        %1803 = vmatprep.subr.mxu0 0.0
        %1804 = vmatpush1.xpose.msra.mxu0 0.0
        %1805 = vmatprep.subr.mxu0 0.0
        %1806 = vmatpush1.xpose.msra.mxu0 0.0
        %1807 = vmatprep.subr.mxu0 0.0
        %1808 = vmatpush1.xpose.msra.mxu0 0.0
        %1809 = vmatprep.subr.mxu0 0.0
        %1810 = vmatpush1.xpose.msra.mxu0 0.0
        %1811 = vmatprep.subr.mxu0 0.0
        %1812 = vmatpush1.xpose.msra.mxu0 0.0
        %1813 = vmatprep.subr.mxu0 0.0
        %1814 = vmatpush1.xpose.msra.mxu0 0.0
        %1815 = vmatprep.subr.mxu0 0.0
        %1816 = vmatpush1.xpose.msra.mxu0 0.0
        %1817 = vmatprep.subr.mxu0 0.0
        %1818 = vmatpush1.xpose.msra.mxu0 %v1785
        %1819 = vmatprep.subr.mxu0 0.0
        %1820 = vmatpush2.xpose.msra.mxu0 0.0
        %1821 = vmatprep.subr.mxu0 0.0
        %1822 = vmatpush2.xpose.msra.mxu0 0.0
        %1823 = vmatprep.subr.mxu0 0.0
        %1824 = vmatpush2.xpose.msra.mxu0 0.0
        %1825 = vmatprep.subr.mxu0 0.0
        %1826 = vmatpush2.xpose.msra.mxu0 0.0
        %1827 = vmatprep.subr.mxu0 0.0
        %1828 = vmatpush2.xpose.msra.mxu0 0.0
        %1829 = vmatprep.subr.mxu0 0.0
        %1830 = vmatpush2.xpose.msra.mxu0 0.0
        %1831 = vmatprep.subr.mxu0 0.0
        %1832 = vmatpush2.xpose.msra.mxu0 0.0
        %1833 = vmatprep.subr.mxu0 0.0
        %1834 = vmatpush2.xpose.msra.mxu0 0.0
        %1835 = vmatprep.subr.mxu0 0.0
        %1836 = vmatpush2.xpose.msra.mxu0 0.0
        %1837 = vmatprep.subr.mxu0 0.0
        %1838 = vmatpush2.xpose.msra.mxu0 0.0
        %1839 = vmatprep.subr.mxu0 0.0
        %1840 = vmatpush2.xpose.msra.mxu0 0.0
        %1841 = vmatprep.subr.mxu0 0.0
        %1842 = vmatpush2.xpose.msra.mxu0 0.0
        %1843 = vmatprep.subr.mxu0 0.0
        %1844 = vmatpush2.xpose.msra.mxu0 0.0
        %1845 = vmatprep.subr.mxu0 0.0
        %1846 = vmatpush2.xpose.msra.mxu0 0.0
        %1847 = vmatprep.subr.mxu0 0.0
        %1848 = vmatpush2.xpose.msra.mxu0 0.0
        %1849 = vmatprep.subr.mxu0 0.0
        %1850 = vmatpush2.xpose.msra.mxu0 0.0
        %1851 = vmatprep.mubr.f32.mxu0 0.0
        %1852 = vmatmul.mubr.f32.gmra.mxu0 %v1782
        %v1853 = vpop.f32.mrf.mxu0
        %v1854 = vadd.f32 0.0, %v1853
        %v1855 = vpop.f32.mrf.mxu0
        %1856 = vdwg.mxu0
        %v1858 = vsel %vm1031, %v1474, 0
        %v1861 = vsel %vm1031, %v1316, 0
        %1863 = vmatprep.subr.mxu0 0.0
        %1864 = vmatpush1.xpose.msra.mxu0 0.0
        %1865 = vmatprep.subr.mxu0 0.0
        %1866 = vmatpush1.xpose.msra.mxu0 0.0
        %1867 = vmatprep.subr.mxu0 0.0
        %1868 = vmatpush1.xpose.msra.mxu0 0.0
        %1869 = vmatprep.subr.mxu0 0.0
        %1870 = vmatpush1.xpose.msra.mxu0 0.0
        %1871 = vmatprep.subr.mxu0 0.0
        %1872 = vmatpush1.xpose.msra.mxu0 0.0
        %1873 = vmatprep.subr.mxu0 0.0
        %1874 = vmatpush1.xpose.msra.mxu0 0.0
        %1875 = vmatprep.subr.mxu0 0.0
        %1876 = vmatpush1.xpose.msra.mxu0 0.0
        %1877 = vmatprep.subr.mxu0 0.0
        %1878 = vmatpush1.xpose.msra.mxu0 0.0
        %1879 = vmatprep.subr.mxu0 0.0
        %1880 = vmatpush1.xpose.msra.mxu0 0.0
        %1881 = vmatprep.subr.mxu0 0.0
        %1882 = vmatpush1.xpose.msra.mxu0 0.0
        %1883 = vmatprep.subr.mxu0 0.0
        %1884 = vmatpush1.xpose.msra.mxu0 0.0
        %1885 = vmatprep.subr.mxu0 0.0
        %1886 = vmatpush1.xpose.msra.mxu0 0.0
        %1887 = vmatprep.subr.mxu0 0.0
        %1888 = vmatpush1.xpose.msra.mxu0 0.0
        %1889 = vmatprep.subr.mxu0 0.0
        %1890 = vmatpush1.xpose.msra.mxu0 0.0
        %1891 = vmatprep.subr.mxu0 0.0
        %1892 = vmatpush1.xpose.msra.mxu0 0.0
        %1893 = vmatprep.subr.mxu0 0.0
        %1894 = vmatpush1.xpose.msra.mxu0 %v1861
        %1895 = vmatprep.subr.mxu0 0.0
        %1896 = vmatpush2.xpose.msra.mxu0 0.0
        %1897 = vmatprep.subr.mxu0 0.0
        %1898 = vmatpush2.xpose.msra.mxu0 0.0
        %1899 = vmatprep.subr.mxu0 0.0
        %1900 = vmatpush2.xpose.msra.mxu0 0.0
        %1901 = vmatprep.subr.mxu0 0.0
        %1902 = vmatpush2.xpose.msra.mxu0 0.0
        %1903 = vmatprep.subr.mxu0 0.0
        %1904 = vmatpush2.xpose.msra.mxu0 0.0
        %1905 = vmatprep.subr.mxu0 0.0
        %1906 = vmatpush2.xpose.msra.mxu0 0.0
        %1907 = vmatprep.subr.mxu0 0.0
        %1908 = vmatpush2.xpose.msra.mxu0 0.0
        %1909 = vmatprep.subr.mxu0 0.0
        %1910 = vmatpush2.xpose.msra.mxu0 0.0
        %1911 = vmatprep.subr.mxu0 0.0
        %1912 = vmatpush2.xpose.msra.mxu0 0.0
        %1913 = vmatprep.subr.mxu0 0.0
        %1914 = vmatpush2.xpose.msra.mxu0 0.0
        %1915 = vmatprep.subr.mxu0 0.0
        %1916 = vmatpush2.xpose.msra.mxu0 0.0
        %1917 = vmatprep.subr.mxu0 0.0
        %1918 = vmatpush2.xpose.msra.mxu0 0.0
        %1919 = vmatprep.subr.mxu0 0.0
        %1920 = vmatpush2.xpose.msra.mxu0 0.0
        %1921 = vmatprep.subr.mxu0 0.0
        %1922 = vmatpush2.xpose.msra.mxu0 0.0
        %1923 = vmatprep.subr.mxu0 0.0
        %1924 = vmatpush2.xpose.msra.mxu0 0.0
        %1925 = vmatprep.subr.mxu0 0.0
        %1926 = vmatpush2.xpose.msra.mxu0 0.0
        %1927 = vmatprep.mubr.f32.mxu0 0.0
        %1928 = vmatmul.mubr.f32.gmra.mxu0 %v1858
        %v1929 = vpop.f32.mrf.mxu0
        %v1930 = vadd.f32 0.0, %v1929
        %v1931 = vpop.f32.mrf.mxu0
        %1932 = vdwg.mxu0
        %v1934 = vsel %vm1031, %v1475, 0
        %v1937 = vsel %vm1031, %v1321, 0
        %1939 = vmatprep.subr.mxu0 0.0
        %1940 = vmatpush1.xpose.msra.mxu0 0.0
        %1941 = vmatprep.subr.mxu0 0.0
        %1942 = vmatpush1.xpose.msra.mxu0 0.0
        %1943 = vmatprep.subr.mxu0 0.0
        %1944 = vmatpush1.xpose.msra.mxu0 0.0
        %1945 = vmatprep.subr.mxu0 0.0
        %1946 = vmatpush1.xpose.msra.mxu0 0.0
        %1947 = vmatprep.subr.mxu0 0.0
        %1948 = vmatpush1.xpose.msra.mxu0 0.0
        %1949 = vmatprep.subr.mxu0 0.0
        %1950 = vmatpush1.xpose.msra.mxu0 0.0
        %1951 = vmatprep.subr.mxu0 0.0
        %1952 = vmatpush1.xpose.msra.mxu0 0.0
        %1953 = vmatprep.subr.mxu0 0.0
        %1954 = vmatpush1.xpose.msra.mxu0 0.0
        %1955 = vmatprep.subr.mxu0 0.0
        %1956 = vmatpush1.xpose.msra.mxu0 0.0
        %1957 = vmatprep.subr.mxu0 0.0
        %1958 = vmatpush1.xpose.msra.mxu0 0.0
        %1959 = vmatprep.subr.mxu0 0.0
        %1960 = vmatpush1.xpose.msra.mxu0 0.0
        %1961 = vmatprep.subr.mxu0 0.0
        %1962 = vmatpush1.xpose.msra.mxu0 0.0
        %1963 = vmatprep.subr.mxu0 0.0
        %1964 = vmatpush1.xpose.msra.mxu0 0.0
        %1965 = vmatprep.subr.mxu0 0.0
        %1966 = vmatpush1.xpose.msra.mxu0 0.0
        %1967 = vmatprep.subr.mxu0 0.0
        %1968 = vmatpush1.xpose.msra.mxu0 0.0
        %1969 = vmatprep.subr.mxu0 0.0
        %1970 = vmatpush1.xpose.msra.mxu0 %v1937
        %1971 = vmatprep.subr.mxu0 0.0
        %1972 = vmatpush2.xpose.msra.mxu0 0.0
        %1973 = vmatprep.subr.mxu0 0.0
        %1974 = vmatpush2.xpose.msra.mxu0 0.0
        %1975 = vmatprep.subr.mxu0 0.0
        %1976 = vmatpush2.xpose.msra.mxu0 0.0
        %1977 = vmatprep.subr.mxu0 0.0
        %1978 = vmatpush2.xpose.msra.mxu0 0.0
        %1979 = vmatprep.subr.mxu0 0.0
        %1980 = vmatpush2.xpose.msra.mxu0 0.0
        %1981 = vmatprep.subr.mxu0 0.0
        %1982 = vmatpush2.xpose.msra.mxu0 0.0
        %1983 = vmatprep.subr.mxu0 0.0
        %1984 = vmatpush2.xpose.msra.mxu0 0.0
        %1985 = vmatprep.subr.mxu0 0.0
        %1986 = vmatpush2.xpose.msra.mxu0 0.0
        %1987 = vmatprep.subr.mxu0 0.0
        %1988 = vmatpush2.xpose.msra.mxu0 0.0
        %1989 = vmatprep.subr.mxu0 0.0
        %1990 = vmatpush2.xpose.msra.mxu0 0.0
        %1991 = vmatprep.subr.mxu0 0.0
        %1992 = vmatpush2.xpose.msra.mxu0 0.0
        %1993 = vmatprep.subr.mxu0 0.0
        %1994 = vmatpush2.xpose.msra.mxu0 0.0
        %1995 = vmatprep.subr.mxu0 0.0
        %1996 = vmatpush2.xpose.msra.mxu0 0.0
        %1997 = vmatprep.subr.mxu0 0.0
        %1998 = vmatpush2.xpose.msra.mxu0 0.0
        %1999 = vmatprep.subr.mxu0 0.0
        %2000 = vmatpush2.xpose.msra.mxu0 0.0
        %2001 = vmatprep.subr.mxu0 0.0
        %2002 = vmatpush2.xpose.msra.mxu0 0.0
        %2003 = vmatprep.mubr.f32.mxu0 0.0
        %2004 = vmatmul.mubr.f32.gmra.mxu0 %v1934
        %v2005 = vpop.f32.mrf.mxu0
        %v2006 = vadd.f32 0.0, %v2005
        %v2007 = vpop.f32.mrf.mxu0
        %2008 = vdwg.mxu0
        %v2010 = vsel %vm1031, %v1476, 0
        %v2013 = vsel %vm1031, %v1326, 0
        %2015 = vmatprep.subr.mxu0 0.0
        %2016 = vmatpush1.xpose.msra.mxu0 0.0
        %2017 = vmatprep.subr.mxu0 0.0
        %2018 = vmatpush1.xpose.msra.mxu0 0.0
        %2019 = vmatprep.subr.mxu0 0.0
        %2020 = vmatpush1.xpose.msra.mxu0 0.0
        %2021 = vmatprep.subr.mxu0 0.0
        %2022 = vmatpush1.xpose.msra.mxu0 0.0
        %2023 = vmatprep.subr.mxu0 0.0
        %2024 = vmatpush1.xpose.msra.mxu0 0.0
        %2025 = vmatprep.subr.mxu0 0.0
        %2026 = vmatpush1.xpose.msra.mxu0 0.0
        %2027 = vmatprep.subr.mxu0 0.0
        %2028 = vmatpush1.xpose.msra.mxu0 0.0
        %2029 = vmatprep.subr.mxu0 0.0
        %2030 = vmatpush1.xpose.msra.mxu0 0.0
        %2031 = vmatprep.subr.mxu0 0.0
        %2032 = vmatpush1.xpose.msra.mxu0 0.0
        %2033 = vmatprep.subr.mxu0 0.0
        %2034 = vmatpush1.xpose.msra.mxu0 0.0
        %2035 = vmatprep.subr.mxu0 0.0
        %2036 = vmatpush1.xpose.msra.mxu0 0.0
        %2037 = vmatprep.subr.mxu0 0.0
        %2038 = vmatpush1.xpose.msra.mxu0 0.0
        %2039 = vmatprep.subr.mxu0 0.0
        %2040 = vmatpush1.xpose.msra.mxu0 0.0
        %2041 = vmatprep.subr.mxu0 0.0
        %2042 = vmatpush1.xpose.msra.mxu0 0.0
        %2043 = vmatprep.subr.mxu0 0.0
        %2044 = vmatpush1.xpose.msra.mxu0 0.0
        %2045 = vmatprep.subr.mxu0 0.0
        %2046 = vmatpush1.xpose.msra.mxu0 %v2013
        %2047 = vmatprep.subr.mxu0 0.0
        %2048 = vmatpush2.xpose.msra.mxu0 0.0
        %2049 = vmatprep.subr.mxu0 0.0
        %2050 = vmatpush2.xpose.msra.mxu0 0.0
        %2051 = vmatprep.subr.mxu0 0.0
        %2052 = vmatpush2.xpose.msra.mxu0 0.0
        %2053 = vmatprep.subr.mxu0 0.0
        %2054 = vmatpush2.xpose.msra.mxu0 0.0
        %2055 = vmatprep.subr.mxu0 0.0
        %2056 = vmatpush2.xpose.msra.mxu0 0.0
        %2057 = vmatprep.subr.mxu0 0.0
        %2058 = vmatpush2.xpose.msra.mxu0 0.0
        %2059 = vmatprep.subr.mxu0 0.0
        %2060 = vmatpush2.xpose.msra.mxu0 0.0
        %2061 = vmatprep.subr.mxu0 0.0
        %2062 = vmatpush2.xpose.msra.mxu0 0.0
        %2063 = vmatprep.subr.mxu0 0.0
        %2064 = vmatpush2.xpose.msra.mxu0 0.0
        %2065 = vmatprep.subr.mxu0 0.0
        %2066 = vmatpush2.xpose.msra.mxu0 0.0
        %2067 = vmatprep.subr.mxu0 0.0
        %2068 = vmatpush2.xpose.msra.mxu0 0.0
        %2069 = vmatprep.subr.mxu0 0.0
        %2070 = vmatpush2.xpose.msra.mxu0 0.0
        %2071 = vmatprep.subr.mxu0 0.0
        %2072 = vmatpush2.xpose.msra.mxu0 0.0
        %2073 = vmatprep.subr.mxu0 0.0
        %2074 = vmatpush2.xpose.msra.mxu0 0.0
        %2075 = vmatprep.subr.mxu0 0.0
        %2076 = vmatpush2.xpose.msra.mxu0 0.0
        %2077 = vmatprep.subr.mxu0 0.0
        %2078 = vmatpush2.xpose.msra.mxu0 0.0
        %2079 = vmatprep.mubr.f32.mxu0 0.0
        %2080 = vmatmul.mubr.f32.gmra.mxu0 %v2010
        %v2081 = vpop.f32.mrf.mxu0
        %v2082 = vadd.f32 0.0, %v2081
        %v2083 = vpop.f32.mrf.mxu0
        %2084 = vdwg.mxu0
        %s2085 = sld [smem:[#allocation8 + %s48]]
        %s2086 = smul.u32 %s49, 8
        %v2087 = vstv %s2086
        %v2088 = vadd.s32 %v2087, %v679
        %v2089 = vstv %s2085
        %vm2090 = vcmp.lt.s32.totalorder %v2088, %v2089
        %v2091 = vsel %vm2090, 0.0, -1e+15
        %v2092 = vadd.f32 %v1431, %v1550
        %v2093 = vadd.f32 %v1436, %v1626
        %v2094 = vadd.f32 %v1441, %v1702
        %v2095 = vadd.f32 %v1446, %v1778
        %v2096 = vadd.f32 %v1451, %v1854
        %v2097 = vadd.f32 %v1456, %v1930
        %v2098 = vadd.f32 %v1461, %v2006
        %v2099 = vadd.f32 %v1466, %v2082
        %v2100 = vadd.f32 %v2092, %v2091
        %v2101 = vadd.f32 %v2093, %v2091
        %v2102 = vadd.f32 %v2094, %v2091
        %v2103 = vadd.f32 %v2095, %v2091
        %v2104 = vadd.f32 %v2096, %v2091
        %v2105 = vadd.f32 %v2097, %v2091
        %v2106 = vadd.f32 %v2098, %v2091
        %v2107 = vadd.f32 %v2099, %v2091
        %v2108 = vld [vmem:[#allocation4] sm:$0xff]
        %vm2109 = vcmask 64512
        %v2110 = vsel %vm2109, %v2100, -inf
        %2111 = vmax.xlane.f32.xlu0 %v2110
        %v2112 = vpop.xlane.xlu0 %2111
        %v2113 = vsel %vm2109, %v2101, -inf
        %2114 = vmax.xlane.f32.xlu0 %v2113
        %v2115 = vpop.xlane.xlu0 %2114
        %v2116 = vsel %vm2109, %v2102, -inf
        %2117 = vmax.xlane.f32.xlu0 %v2116
        %v2118 = vpop.xlane.xlu0 %2117
        %v2119 = vsel %vm2109, %v2103, -inf
        %2120 = vmax.xlane.f32.xlu0 %v2119
        %v2121 = vpop.xlane.xlu0 %2120
        %v2122 = vsel %vm2109, %v2104, -inf
        %2123 = vmax.xlane.f32.xlu0 %v2122
        %v2124 = vpop.xlane.xlu0 %2123
        %v2125 = vsel %vm2109, %v2105, -inf
        %2126 = vmax.xlane.f32.xlu0 %v2125
        %v2127 = vpop.xlane.xlu0 %2126
        %v2128 = vsel %vm2109, %v2106, -inf
        %2129 = vmax.xlane.f32.xlu0 %v2128
        %v2130 = vpop.xlane.xlu0 %2129
        %v2131 = vsel %vm2109, %v2107, -inf
        %2132 = vmax.xlane.f32.xlu0 %v2131
        %v2133 = vpop.xlane.xlu0 %2132
        %v2142 = vlaneseq
        %v2143 = vshrl.u32 %v2142, 7
        %v2144 = vsub.s32 %v679, %v2143
        %v2145 = vrot.slane %v2112, %v2144
        %v2146 = vlaneseq
        %v2147 = vshrl.u32 %v2146, 7
        %v2148 = vsub.s32 %v679, %v2147
        %v2149 = vrot.slane %v2115, %v2148
        %v2150 = vlaneseq
        %v2151 = vshrl.u32 %v2150, 7
        %v2152 = vsub.s32 %v679, %v2151
        %v2153 = vrot.slane %v2118, %v2152
        %v2154 = vlaneseq
        %v2155 = vshrl.u32 %v2154, 7
        %v2156 = vsub.s32 %v679, %v2155
        %v2157 = vrot.slane %v2121, %v2156
        %v2158 = vlaneseq
        %v2159 = vshrl.u32 %v2158, 7
        %v2160 = vsub.s32 %v679, %v2159
        %v2161 = vrot.slane %v2124, %v2160
        %v2162 = vlaneseq
        %v2163 = vshrl.u32 %v2162, 7
        %v2164 = vsub.s32 %v679, %v2163
        %v2165 = vrot.slane %v2127, %v2164
        %v2166 = vlaneseq
        %v2167 = vshrl.u32 %v2166, 7
        %v2168 = vsub.s32 %v679, %v2167
        %v2169 = vrot.slane %v2130, %v2168
        %v2170 = vlaneseq
        %v2171 = vshrl.u32 %v2170, 7
        %v2172 = vsub.s32 %v679, %v2171
        %v2173 = vrot.slane %v2133, %v2172
        %vm2174 = vcmask 1041409
        %v2175 = vsel %vm2174, %v2149, %v2145
        %vm2176 = vcmask 1042434
        %v2177 = vsel %vm2176, %v2153, %v2175
        %vm2178 = vcmask 1043459
        %v2179 = vsel %vm2178, %v2157, %v2177
        %vm2180 = vcmask 1044484
        %v2181 = vsel %vm2180, %v2161, %v2179
        %vm2182 = vcmask 1045509
        %v2183 = vsel %vm2182, %v2165, %v2181
        %vm2184 = vcmask 1046534
        %v2185 = vsel %vm2184, %v2169, %v2183
        %vm2186 = vcmask 1047559
        %v2187 = vsel %vm2186, %v2173, %v2185
        %v2189 = vmax.f32 %v2108, %v2187
        %v2190 = vsub.f32 %v2108, %v2189
        %v2191 = vmul.f32 %v2190, 1.442695
        %v2192 = vpow.pop %v2191
        %v2193 = vlaneseq
        %v2194 = vshrl.u32 %v2193, 7
        %v2195 = vsub.s32 0, %v2194
        %v2196 = vrot.slane %v2189, %v2195
        %2198 = vbcast.lane.b32.xlu0 %v2196, 256
        %v2199 = vpop.permute.xlu0 %2198
        %v2200 = vlaneseq
        %v2201 = vshrl.u32 %v2200, 7
        %v2202 = vsub.s32 1, %v2201
        %v2203 = vrot.slane %v2189, %v2202
        %2205 = vbcast.lane.b32.xlu0 %v2203, 256
        %v2206 = vpop.permute.xlu0 %2205
        %v2207 = vlaneseq
        %v2208 = vshrl.u32 %v2207, 7
        %v2209 = vsub.s32 2, %v2208
        %v2210 = vrot.slane %v2189, %v2209
        %2212 = vbcast.lane.b32.xlu0 %v2210, 256
        %v2213 = vpop.permute.xlu0 %2212
        %v2214 = vlaneseq
        %v2215 = vshrl.u32 %v2214, 7
        %v2216 = vsub.s32 3, %v2215
        %v2217 = vrot.slane %v2189, %v2216
        %2219 = vbcast.lane.b32.xlu0 %v2217, 256
        %v2220 = vpop.permute.xlu0 %2219
        %v2221 = vlaneseq
        %v2222 = vshrl.u32 %v2221, 7
        %v2223 = vsub.s32 4, %v2222
        %v2224 = vrot.slane %v2189, %v2223
        %2226 = vbcast.lane.b32.xlu0 %v2224, 256
        %v2227 = vpop.permute.xlu0 %2226
        %v2228 = vlaneseq
        %v2229 = vshrl.u32 %v2228, 7
        %v2230 = vsub.s32 5, %v2229
        %v2231 = vrot.slane %v2189, %v2230
        %2233 = vbcast.lane.b32.xlu0 %v2231, 256
        %v2234 = vpop.permute.xlu0 %2233
        %v2235 = vlaneseq
        %v2236 = vshrl.u32 %v2235, 7
        %v2237 = vsub.s32 6, %v2236
        %v2238 = vrot.slane %v2189, %v2237
        %2240 = vbcast.lane.b32.xlu0 %v2238, 256
        %v2241 = vpop.permute.xlu0 %2240
        %v2242 = vlaneseq
        %v2243 = vshrl.u32 %v2242, 7
        %v2244 = vsub.s32 7, %v2243
        %v2245 = vrot.slane %v2189, %v2244
        %2247 = vbcast.lane.b32.xlu0 %v2245, 256
        %v2248 = vpop.permute.xlu0 %2247
        %v2249 = vsub.f32 %v2100, %v2199
        %v2250 = vsub.f32 %v2101, %v2206
        %v2251 = vsub.f32 %v2102, %v2213
        %v2252 = vsub.f32 %v2103, %v2220
        %v2253 = vsub.f32 %v2104, %v2227
        %v2254 = vsub.f32 %v2105, %v2234
        %v2255 = vsub.f32 %v2106, %v2241
        %v2256 = vsub.f32 %v2107, %v2248
        %v2257 = vmul.f32 %v2249, 1.442695
        %v2258 = vpow.pop %v2257
        %v2259 = vmul.f32 %v2250, 1.442695
        %v2260 = vpow.pop %v2259
        %v2261 = vmul.f32 %v2251, 1.442695
        %v2262 = vpow.pop %v2261
        %v2263 = vmul.f32 %v2252, 1.442695
        %v2264 = vpow.pop %v2263
        %v2265 = vmul.f32 %v2253, 1.442695
        %v2266 = vpow.pop %v2265
        %v2267 = vmul.f32 %v2254, 1.442695
        %v2268 = vpow.pop %v2267
        %v2269 = vmul.f32 %v2255, 1.442695
        %v2270 = vpow.pop %v2269
        %v2271 = vmul.f32 %v2256, 1.442695
        %v2272 = vpow.pop %v2271
        %v2273 = vld [vmem:[#allocation5] sm:$0xff]
        %v2274 = vmul.f32 %v2192, %v2273
        %v2275 = vsel %vm2109, %v2258, 0.0
        %2276 = vadd.xlane.f32.xlu0 %v2275
        %v2277 = vpop.xlane.xlu0 %2276
        %v2278 = vsel %vm2109, %v2260, 0.0
        %2279 = vadd.xlane.f32.xlu0 %v2278
        %v2280 = vpop.xlane.xlu0 %2279
        %v2281 = vsel %vm2109, %v2262, 0.0
        %2282 = vadd.xlane.f32.xlu0 %v2281
        %v2283 = vpop.xlane.xlu0 %2282
        %v2284 = vsel %vm2109, %v2264, 0.0
        %2285 = vadd.xlane.f32.xlu0 %v2284
        %v2286 = vpop.xlane.xlu0 %2285
        %v2287 = vsel %vm2109, %v2266, 0.0
        %2288 = vadd.xlane.f32.xlu0 %v2287
        %v2289 = vpop.xlane.xlu0 %2288
        %v2290 = vsel %vm2109, %v2268, 0.0
        %2291 = vadd.xlane.f32.xlu0 %v2290
        %v2292 = vpop.xlane.xlu0 %2291
        %v2293 = vsel %vm2109, %v2270, 0.0
        %2294 = vadd.xlane.f32.xlu0 %v2293
        %v2295 = vpop.xlane.xlu0 %2294
        %v2296 = vsel %vm2109, %v2272, 0.0
        %2297 = vadd.xlane.f32.xlu0 %v2296
        %v2298 = vpop.xlane.xlu0 %2297
        %v2307 = vlaneseq
        %v2308 = vshrl.u32 %v2307, 7
        %v2309 = vsub.s32 %v679, %v2308
        %v2310 = vrot.slane %v2277, %v2309
        %v2311 = vlaneseq
        %v2312 = vshrl.u32 %v2311, 7
        %v2313 = vsub.s32 %v679, %v2312
        %v2314 = vrot.slane %v2280, %v2313
        %v2315 = vlaneseq
        %v2316 = vshrl.u32 %v2315, 7
        %v2317 = vsub.s32 %v679, %v2316
        %v2318 = vrot.slane %v2283, %v2317
        %v2319 = vlaneseq
        %v2320 = vshrl.u32 %v2319, 7
        %v2321 = vsub.s32 %v679, %v2320
        %v2322 = vrot.slane %v2286, %v2321
        %v2323 = vlaneseq
        %v2324 = vshrl.u32 %v2323, 7
        %v2325 = vsub.s32 %v679, %v2324
        %v2326 = vrot.slane %v2289, %v2325
        %v2327 = vlaneseq
        %v2328 = vshrl.u32 %v2327, 7
        %v2329 = vsub.s32 %v679, %v2328
        %v2330 = vrot.slane %v2292, %v2329
        %v2331 = vlaneseq
        %v2332 = vshrl.u32 %v2331, 7
        %v2333 = vsub.s32 %v679, %v2332
        %v2334 = vrot.slane %v2295, %v2333
        %v2335 = vlaneseq
        %v2336 = vshrl.u32 %v2335, 7
        %v2337 = vsub.s32 %v679, %v2336
        %v2338 = vrot.slane %v2298, %v2337
        %v2339 = vsel %vm2174, %v2314, %v2310
        %v2340 = vsel %vm2176, %v2318, %v2339
        %v2341 = vsel %vm2178, %v2322, %v2340
        %v2342 = vsel %vm2180, %v2326, %v2341
        %v2343 = vsel %vm2182, %v2330, %v2342
        %v2344 = vsel %vm2184, %v2334, %v2343
        %v2345 = vsel %vm2186, %v2338, %v2344
        %v2347 = vadd.f32 %v2274, %v2345
        %2348 = vst.msk [vmem:[#allocation5] sm:$0xff] %vm2109, %v2347
        %2349 = vst.msk [vmem:[#allocation4] sm:$0xff] %vm2109, %v2189
        %v2351 = vsel %vm2109, %v2258, 0
        %v2354 = vsel %vm2109, %v2260, 0
        %v2357 = vsel %vm2109, %v2262, 0
        %v2360 = vsel %vm2109, %v2264, 0
        %v2363 = vsel %vm2109, %v2266, 0
        %v2366 = vsel %vm2109, %v2268, 0
        %v2369 = vsel %vm2109, %v2270, 0
        %v2372 = vsel %vm2109, %v2272, 0
        %2374 = vmatprep.subr.mxu0 0.0
        %2375 = vmatpush1.msra.mxu0 0.0
        %2376 = vmatprep.subr.mxu0 0.0
        %2377 = vmatpush1.msra.mxu0 0.0
        %2378 = vmatprep.subr.mxu0 0.0
        %2379 = vmatpush1.msra.mxu0 0.0
        %2380 = vmatprep.subr.mxu0 0.0
        %2381 = vmatpush1.msra.mxu0 0.0
        %2382 = vmatprep.subr.mxu0 0.0
        %2383 = vmatpush1.msra.mxu0 0.0
        %2384 = vmatprep.subr.mxu0 0.0
        %2385 = vmatpush1.msra.mxu0 0.0
        %2386 = vmatprep.subr.mxu0 0.0
        %2387 = vmatpush1.msra.mxu0 0.0
        %2388 = vmatprep.subr.mxu0 0.0
        %2389 = vmatpush1.msra.mxu0 0.0
        %2390 = vmatprep.subr.mxu0 0.0
        %2391 = vmatpush1.msra.mxu0 0.0
        %2392 = vmatprep.subr.mxu0 0.0
        %2393 = vmatpush1.msra.mxu0 0.0
        %2394 = vmatprep.subr.mxu0 0.0
        %2395 = vmatpush1.msra.mxu0 0.0
        %2396 = vmatprep.subr.mxu0 0.0
        %2397 = vmatpush1.msra.mxu0 0.0
        %2398 = vmatprep.subr.mxu0 0.0
        %2399 = vmatpush1.msra.mxu0 0.0
        %2400 = vmatprep.subr.mxu0 0.0
        %2401 = vmatpush1.msra.mxu0 0.0
        %2402 = vmatprep.subr.mxu0 0.0
        %2403 = vmatpush1.msra.mxu0 0.0
        %2404 = vmatprep.subr.mxu0 0.0
        %2405 = vmatpush1.msra.mxu0 %v1186
        %2406 = vmatprep.subr.mxu0 0.0
        %2407 = vmatpush2.msra.mxu0 0.0
        %2408 = vmatprep.subr.mxu0 0.0
        %2409 = vmatpush2.msra.mxu0 0.0
        %2410 = vmatprep.subr.mxu0 0.0
        %2411 = vmatpush2.msra.mxu0 0.0
        %2412 = vmatprep.subr.mxu0 0.0
        %2413 = vmatpush2.msra.mxu0 0.0
        %2414 = vmatprep.subr.mxu0 0.0
        %2415 = vmatpush2.msra.mxu0 0.0
        %2416 = vmatprep.subr.mxu0 0.0
        %2417 = vmatpush2.msra.mxu0 0.0
        %2418 = vmatprep.subr.mxu0 0.0
        %2419 = vmatpush2.msra.mxu0 0.0
        %2420 = vmatprep.subr.mxu0 0.0
        %2421 = vmatpush2.msra.mxu0 0.0
        %2422 = vmatprep.subr.mxu0 0.0
        %2423 = vmatpush2.msra.mxu0 0.0
        %2424 = vmatprep.subr.mxu0 0.0
        %2425 = vmatpush2.msra.mxu0 0.0
        %2426 = vmatprep.subr.mxu0 0.0
        %2427 = vmatpush2.msra.mxu0 0.0
        %2428 = vmatprep.subr.mxu0 0.0
        %2429 = vmatpush2.msra.mxu0 0.0
        %2430 = vmatprep.subr.mxu0 0.0
        %2431 = vmatpush2.msra.mxu0 0.0
        %2432 = vmatprep.subr.mxu0 0.0
        %2433 = vmatpush2.msra.mxu0 0.0
        %2434 = vmatprep.subr.mxu0 0.0
        %2435 = vmatpush2.msra.mxu0 0.0
        %2436 = vmatprep.subr.mxu0 0.0
        %2437 = vmatpush2.msra.mxu0 0.0
        %2438 = vmatprep.mubr.f32.mxu0 0.0
        %2439 = vmatmul.mubr.f32.gmra.mxu0 %v2351
        %v2440 = vpop.f32.mrf.mxu0
        %v2441 = vadd.f32 0.0, %v2440
        %v2442 = vpop.f32.mrf.mxu0
        %2443 = vmatprep.mubr.f32.mxu0 0.0
        %2444 = vmatmul.mubr.f32.gmra.mxu0 %v2354
        %v2445 = vpop.f32.mrf.mxu0
        %v2446 = vadd.f32 0.0, %v2445
        %v2447 = vpop.f32.mrf.mxu0
        %2448 = vmatprep.mubr.f32.mxu0 0.0
        %2449 = vmatmul.mubr.f32.gmra.mxu0 %v2357
        %v2450 = vpop.f32.mrf.mxu0
        %v2451 = vadd.f32 0.0, %v2450
        %v2452 = vpop.f32.mrf.mxu0
        %2453 = vmatprep.mubr.f32.mxu0 0.0
        %2454 = vmatmul.mubr.f32.gmra.mxu0 %v2360
        %v2455 = vpop.f32.mrf.mxu0
        %v2456 = vadd.f32 0.0, %v2455
        %v2457 = vpop.f32.mrf.mxu0
        %2458 = vmatprep.mubr.f32.mxu0 0.0
        %2459 = vmatmul.mubr.f32.gmra.mxu0 %v2363
        %v2460 = vpop.f32.mrf.mxu0
        %v2461 = vadd.f32 0.0, %v2460
        %v2462 = vpop.f32.mrf.mxu0
        %2463 = vmatprep.mubr.f32.mxu0 0.0
        %2464 = vmatmul.mubr.f32.gmra.mxu0 %v2366
        %v2465 = vpop.f32.mrf.mxu0
        %v2466 = vadd.f32 0.0, %v2465
        %v2467 = vpop.f32.mrf.mxu0
        %2468 = vmatprep.mubr.f32.mxu0 0.0
        %2469 = vmatmul.mubr.f32.gmra.mxu0 %v2369
        %v2470 = vpop.f32.mrf.mxu0
        %v2471 = vadd.f32 0.0, %v2470
        %v2472 = vpop.f32.mrf.mxu0
        %2473 = vmatprep.mubr.f32.mxu0 0.0
        %2474 = vmatmul.mubr.f32.gmra.mxu0 %v2372
        %v2475 = vpop.f32.mrf.mxu0
        %v2476 = vadd.f32 0.0, %v2475
        %v2477 = vpop.f32.mrf.mxu0
        %2478 = vdwg.mxu0
        %v2479 = vmul.f32 %v2441, %v687
        %v2480 = vmul.f32 %v2446, %v687
        %v2481 = vmul.f32 %v2451, %v687
        %v2482 = vmul.f32 %v2456, %v687
        %v2483 = vmul.f32 %v2461, %v687
        %v2484 = vmul.f32 %v2466, %v687
        %v2485 = vmul.f32 %v2471, %v687
        %v2486 = vmul.f32 %v2476, %v687
        %v2487 = vsel %vm1031, %v2479, 0.0
        %v2488 = vrot.slane %v2487, 4
        %v2489 = vadd.f32 %v2487, %v2488
        %v2490 = vrot.slane %v2489, 2
        %v2491 = vadd.f32 %v2489, %v2490
        %v2492 = vrot.slane %v2491, 1
        %v2493 = vadd.f32 %v2491, %v2492
        %v2494 = vsel %vm1031, %v2480, 0.0
        %v2495 = vrot.slane %v2494, 4
        %v2496 = vadd.f32 %v2494, %v2495
        %v2497 = vrot.slane %v2496, 2
        %v2498 = vadd.f32 %v2496, %v2497
        %v2499 = vrot.slane %v2498, 1
        %v2500 = vadd.f32 %v2498, %v2499
        %v2501 = vsel %vm1031, %v2481, 0.0
        %v2502 = vrot.slane %v2501, 4
        %v2503 = vadd.f32 %v2501, %v2502
        %v2504 = vrot.slane %v2503, 2
        %v2505 = vadd.f32 %v2503, %v2504
        %v2506 = vrot.slane %v2505, 1
        %v2507 = vadd.f32 %v2505, %v2506
        %v2508 = vsel %vm1031, %v2482, 0.0
        %v2509 = vrot.slane %v2508, 4
        %v2510 = vadd.f32 %v2508, %v2509
        %v2511 = vrot.slane %v2510, 2
        %v2512 = vadd.f32 %v2510, %v2511
        %v2513 = vrot.slane %v2512, 1
        %v2514 = vadd.f32 %v2512, %v2513
        %v2515 = vsel %vm1031, %v2483, 0.0
        %v2516 = vrot.slane %v2515, 4
        %v2517 = vadd.f32 %v2515, %v2516
        %v2518 = vrot.slane %v2517, 2
        %v2519 = vadd.f32 %v2517, %v2518
        %v2520 = vrot.slane %v2519, 1
        %v2521 = vadd.f32 %v2519, %v2520
        %v2522 = vsel %vm1031, %v2484, 0.0
        %v2523 = vrot.slane %v2522, 4
        %v2524 = vadd.f32 %v2522, %v2523
        %v2525 = vrot.slane %v2524, 2
        %v2526 = vadd.f32 %v2524, %v2525
        %v2527 = vrot.slane %v2526, 1
        %v2528 = vadd.f32 %v2526, %v2527
        %v2529 = vsel %vm1031, %v2485, 0.0
        %v2530 = vrot.slane %v2529, 4
        %v2531 = vadd.f32 %v2529, %v2530
        %v2532 = vrot.slane %v2531, 2
        %v2533 = vadd.f32 %v2531, %v2532
        %v2534 = vrot.slane %v2533, 1
        %v2535 = vadd.f32 %v2533, %v2534
        %v2536 = vsel %vm1031, %v2486, 0.0
        %v2537 = vrot.slane %v2536, 4
        %v2538 = vadd.f32 %v2536, %v2537
        %v2539 = vrot.slane %v2538, 2
        %v2540 = vadd.f32 %v2538, %v2539
        %v2541 = vrot.slane %v2540, 1
        %v2542 = vadd.f32 %v2540, %v2541
        %v2544 = vsel %vm2109, %v2192, 0
        %2546 = vmatprep.subr.mxu0 0.0
        %2547 = vmatpush1.msra.mxu0 0.0
        %2548 = vmatprep.subr.mxu0 0.0
        %2549 = vmatpush1.msra.mxu0 0.0
        %2550 = vmatprep.subr.mxu0 0.0
        %2551 = vmatpush1.msra.mxu0 0.0
        %2552 = vmatprep.subr.mxu0 0.0
        %2553 = vmatpush1.msra.mxu0 0.0
        %2554 = vmatprep.subr.mxu0 0.0
        %2555 = vmatpush1.msra.mxu0 0.0
        %2556 = vmatprep.subr.mxu0 0.0
        %2557 = vmatpush1.msra.mxu0 0.0
        %2558 = vmatprep.subr.mxu0 0.0
        %2559 = vmatpush1.msra.mxu0 0.0
        %2560 = vmatprep.subr.mxu0 0.0
        %2561 = vmatpush1.msra.mxu0 0.0
        %2562 = vmatprep.subr.mxu0 0.0
        %2563 = vmatpush1.msra.mxu0 0.0
        %2564 = vmatprep.subr.mxu0 0.0
        %2565 = vmatpush1.msra.mxu0 0.0
        %2566 = vmatprep.subr.mxu0 0.0
        %2567 = vmatpush1.msra.mxu0 0.0
        %2568 = vmatprep.subr.mxu0 0.0
        %2569 = vmatpush1.msra.mxu0 0.0
        %2570 = vmatprep.subr.mxu0 0.0
        %2571 = vmatpush1.msra.mxu0 0.0
        %2572 = vmatprep.subr.mxu0 0.0
        %2573 = vmatpush1.msra.mxu0 0.0
        %2574 = vmatprep.subr.mxu0 0.0
        %2575 = vmatpush1.msra.mxu0 0.0
        %2576 = vmatprep.subr.mxu0 0.0
        %2577 = vmatpush1.msra.mxu0 %v687
        %2578 = vmatprep.subr.mxu0 0.0
        %2579 = vmatpush2.msra.mxu0 0.0
        %2580 = vmatprep.subr.mxu0 0.0
        %2581 = vmatpush2.msra.mxu0 0.0
        %2582 = vmatprep.subr.mxu0 0.0
        %2583 = vmatpush2.msra.mxu0 0.0
        %2584 = vmatprep.subr.mxu0 0.0
        %2585 = vmatpush2.msra.mxu0 0.0
        %2586 = vmatprep.subr.mxu0 0.0
        %2587 = vmatpush2.msra.mxu0 0.0
        %2588 = vmatprep.subr.mxu0 0.0
        %2589 = vmatpush2.msra.mxu0 0.0
        %2590 = vmatprep.subr.mxu0 0.0
        %2591 = vmatpush2.msra.mxu0 0.0
        %2592 = vmatprep.subr.mxu0 0.0
        %2593 = vmatpush2.msra.mxu0 0.0
        %2594 = vmatprep.subr.mxu0 0.0
        %2595 = vmatpush2.msra.mxu0 0.0
        %2596 = vmatprep.subr.mxu0 0.0
        %2597 = vmatpush2.msra.mxu0 0.0
        %2598 = vmatprep.subr.mxu0 0.0
        %2599 = vmatpush2.msra.mxu0 0.0
        %2600 = vmatprep.subr.mxu0 0.0
        %2601 = vmatpush2.msra.mxu0 0.0
        %2602 = vmatprep.subr.mxu0 0.0
        %2603 = vmatpush2.msra.mxu0 0.0
        %2604 = vmatprep.subr.mxu0 0.0
        %2605 = vmatpush2.msra.mxu0 0.0
        %2606 = vmatprep.subr.mxu0 0.0
        %2607 = vmatpush2.msra.mxu0 0.0
        %2608 = vmatprep.subr.mxu0 0.0
        %2609 = vmatpush2.msra.mxu0 0.0
        %2610 = vmatprep.mubr.f32.mxu0 0.0
        %2611 = vmatmul.mubr.f32.gmra.mxu0 %v2544
        %v2612 = vpop.f32.mrf.mxu0
        %v2613 = vadd.f32 0.0, %v2612
        %v2614 = vpop.f32.mrf.mxu0
        %2615 = vdwg.mxu0
        %v2616 = vld [vmem:[#allocation6] sm:$0xff]
        %v2617 = vmul.f32 %v2613, %v2616
        %v2626 = vsel %vm2174, %v2500, %v2493
        %v2627 = vsel %vm2176, %v2507, %v2626
        %v2628 = vsel %vm2178, %v2514, %v2627
        %v2629 = vsel %vm2180, %v2521, %v2628
        %v2630 = vsel %vm2182, %v2528, %v2629
        %v2631 = vsel %vm2184, %v2535, %v2630
        %v2632 = vsel %vm2186, %v2542, %v2631
        %v2634 = vadd.f32 %v2617, %v2632
        %2635 = vst.msk [vmem:[#allocation6] sm:$0xff] %vm1031, %v2634
        // Predicated region
        $region113: #{tpu_custom_call.1} parent=75 // pred_check
          %p2636 = pneg %p689
        $region114: #{tpu_custom_call.1} parent=75 // pred_check_branch
          %2638 = sbr.rel (%p2636) target = $region116
        $region115: #{tpu_custom_call.1} parent=75 // pred_region
          %v2639 = vld [vmem:[#allocation5] sm:$0xff]
          %v2641 = vsel %vm2109, %v2639, 0
          %2643 = vmatprep.subr.mxu0 0.0
          %2644 = vmatpush1.msra.mxu0 0.0
          %2645 = vmatprep.subr.mxu0 0.0
          %2646 = vmatpush1.msra.mxu0 0.0
          %2647 = vmatprep.subr.mxu0 0.0
          %2648 = vmatpush1.msra.mxu0 0.0
          %2649 = vmatprep.subr.mxu0 0.0
          %2650 = vmatpush1.msra.mxu0 0.0
          %2651 = vmatprep.subr.mxu0 0.0
          %2652 = vmatpush1.msra.mxu0 0.0
          %2653 = vmatprep.subr.mxu0 0.0
          %2654 = vmatpush1.msra.mxu0 0.0
          %2655 = vmatprep.subr.mxu0 0.0
          %2656 = vmatpush1.msra.mxu0 0.0
          %2657 = vmatprep.subr.mxu0 0.0
          %2658 = vmatpush1.msra.mxu0 0.0
          %2659 = vmatprep.subr.mxu0 0.0
          %2660 = vmatpush1.msra.mxu0 0.0
          %2661 = vmatprep.subr.mxu0 0.0
          %2662 = vmatpush1.msra.mxu0 0.0
          %2663 = vmatprep.subr.mxu0 0.0
          %2664 = vmatpush1.msra.mxu0 0.0
          %2665 = vmatprep.subr.mxu0 0.0
          %2666 = vmatpush1.msra.mxu0 0.0
          %2667 = vmatprep.subr.mxu0 0.0
          %2668 = vmatpush1.msra.mxu0 0.0
          %2669 = vmatprep.subr.mxu0 0.0
          %2670 = vmatpush1.msra.mxu0 0.0
          %2671 = vmatprep.subr.mxu0 0.0
          %2672 = vmatpush1.msra.mxu0 0.0
          %2673 = vmatprep.subr.mxu0 0.0
          %2674 = vmatpush1.msra.mxu0 %v687
          %2675 = vmatprep.subr.mxu0 0.0
          %2676 = vmatpush2.msra.mxu0 0.0
          %2677 = vmatprep.subr.mxu0 0.0
          %2678 = vmatpush2.msra.mxu0 0.0
          %2679 = vmatprep.subr.mxu0 0.0
          %2680 = vmatpush2.msra.mxu0 0.0
          %2681 = vmatprep.subr.mxu0 0.0
          %2682 = vmatpush2.msra.mxu0 0.0
          %2683 = vmatprep.subr.mxu0 0.0
          %2684 = vmatpush2.msra.mxu0 0.0
          %2685 = vmatprep.subr.mxu0 0.0
          %2686 = vmatpush2.msra.mxu0 0.0
          %2687 = vmatprep.subr.mxu0 0.0
          %2688 = vmatpush2.msra.mxu0 0.0
          %2689 = vmatprep.subr.mxu0 0.0
          %2690 = vmatpush2.msra.mxu0 0.0
          %2691 = vmatprep.subr.mxu0 0.0
          %2692 = vmatpush2.msra.mxu0 0.0
          %2693 = vmatprep.subr.mxu0 0.0
          %2694 = vmatpush2.msra.mxu0 0.0
          %2695 = vmatprep.subr.mxu0 0.0
          %2696 = vmatpush2.msra.mxu0 0.0
          %2697 = vmatprep.subr.mxu0 0.0
          %2698 = vmatpush2.msra.mxu0 0.0
          %2699 = vmatprep.subr.mxu0 0.0
          %2700 = vmatpush2.msra.mxu0 0.0
          %2701 = vmatprep.subr.mxu0 0.0
          %2702 = vmatpush2.msra.mxu0 0.0
          %2703 = vmatprep.subr.mxu0 0.0
          %2704 = vmatpush2.msra.mxu0 0.0
          %2705 = vmatprep.subr.mxu0 0.0
          %2706 = vmatpush2.msra.mxu0 0.0
          %2707 = vmatprep.mubr.f32.mxu0 0.0
          %2708 = vmatmul.mubr.f32.gmra.mxu0 %v2641
          %v2709 = vpop.f32.mrf.mxu0
          %v2710 = vadd.f32 0.0, %v2709
          %v2711 = vpop.f32.mrf.mxu0
          %2712 = vdwg.mxu0
          %v2713 = vld [vmem:[#allocation6] sm:$0xff]
          %v2714 = vrcp.pop %v2710
          %v2715 = vmul.f32 %v2713, %v2714
          %v2716 = vadd.f32 %v688, %v2715
          %v2717 = vsel %vm1031, %v2716, 0.0
          %2718 = vadd.xlane.f32.xlu0 %v2717
          %v2719 = vpop.xlane.xlu0 %2718
          %v2720 = vrcp.pop 32.0
          %v2721 = vmul.f32 %v2719, %v2720
          %v2722 = vsub.f32 %v2716, %v2721
          %v2723 = vmul.f32 %v2722, %v2722
          %v2724 = vsel %vm1031, %v2723, 0.0
          %2725 = vadd.xlane.f32.xlu0 %v2724
          %v2726 = vpop.xlane.xlu0 %2725
          %v2727 = vmul.f32 %v2726, %v2720
          %v2728 = vadd.f32 %v2727, 1e-05
          %v2729 = vrsqrt.pop %v2728
          %v2730 = vmul.f32 %v2722, %v2729
          %2731 = vst.msk [vmem:[%s677] sm:$0xff] %vm1031, %v2730
        $region116: #{tpu_custom_call.1} parent=75 // pred_fallthru
          _
        %s2732 = sand.u32 %s384, 1
        %s2733 = scalar_lea.sflag [#allocation11], %s2732
        %s2734 = sand.u32 %s384, 1
        %s2735 = smul.addr %s2734, 8
        %s2736 = scalar_lea.vmem [#allocation23], %s2735
        // Predicated region
        $region117: #{tpu_custom_call.1} parent=75 // pred_check
          %p2737 = pneg %p394
        $region118: #{tpu_custom_call.1} parent=75 // pred_check_branch
          %2739 = sbr.rel (%p2737) target = $region120
        $region119: #{tpu_custom_call.1} parent=75 // pred_region
          %s2741 = ssub.s32 128, 128
          %2742 = vsyncadd %s2733, %s2741
          %s2743 = smul.addr %s48, 128
          %s2744 = scalar_lea.hbm %s15, %s2743
          %s2746 = sshll.u32 %s2736, 4
          %s2747 = int_to_ptr.vmem [resolvable:$true] %s2746
          %2749 = dma.vmem_to_hbm [thread:$0]  %s2747, 128, %s2744, %s2733
        $region120: #{tpu_custom_call.1} parent=75 // pred_fallthru
          _
      $region76: #{tpu_custom_call.1} parent=5 // pred_fallthru
        _
      %p2750 = scmp.le.s32.totalorder 2, %s39
      // Predicated region
      $region121: #{tpu_custom_call.1} parent=5 // pred_check
        %p2751 = pneg %p2750
      $region122: #{tpu_custom_call.1} parent=5 // pred_check_branch
        %2753 = sbr.rel (%p2751) target = $region124
      $region123: #{tpu_custom_call.1} parent=5 // pred_region
        %s2754 = ssub.s32 %s39, 2
        // Predicated region
        $region125: #{tpu_custom_call.1} parent=123 // pred_check
          %p2755 = pneg %p400
        $region126: #{tpu_custom_call.1} parent=123 // pred_check_branch
          %2757 = sbr.rel (%p2755) target = $region128
        $region127: #{tpu_custom_call.1} parent=123 // pred_region
          %s2758 = sand.u32 %s385, 1
          %s2759 = scalar_lea.sflag [#allocation11], %s2758
          %s2760 = sand.u32 %s385, 1
          %s2761 = smul.addr %s2760, 8
          %s2762 = scalar_lea.vmem [#allocation23], %s2761
          %2763 = dma.done %s2759, 128
        $region128: #{tpu_custom_call.1} parent=123 // pred_fallthru
          _
      $region124: #{tpu_custom_call.1} parent=5 // pred_fallthru
        _
    $region6: #{tpu_custom_call.1} parent=1 // loop_footer
      %s43 = sadd.s32 1, %s39
    $region7: #{tpu_custom_call.1} parent=1 // loop_footer_branch
      %38 = sbr.rel target = $region3
    $region8: #{tpu_custom_call.1} parent=1 // loop_exit
      _
    %2764 = vsyncpa [#allocation10], 1
    %s2765 = scalar_lea.sflag [#allocation10], 1
    %2766 = vsyncpa %s2765, 1
    %2767 = vsyncpa [#allocation13], 1
    %s2768 = scalar_lea.sflag [#allocation13], 1
    %2769 = vsyncpa %s2768, 1
    %2770 = vsyncpa [#allocation16], 1
    %s2771 = scalar_lea.sflag [#allocation16], 1
    %2772 = vsyncpa %s2771, 1
    %2773 = vsyncpa [#allocation19], 1
    %2774 = vsyncpa [#allocation22], 1
    %2775 = vsyncpa [#allocation11], 1
    %s2776 = scalar_lea.sflag [#allocation11], 1
    %2777 = vsyncpa %s2776, 1

</llo_original>
